<compile_context>
chip_gen: v7x
topology: tpu7x:2x2x1
jax: 0.10.0
libtpu: 0.0.40
codegen_flags: <defaults>
</compile_context>

<pallas_src>
import functools

import jax
import jax.numpy as jnp
from jax.experimental import pallas as pl
from jax.experimental.pallas import tpu as pltpu

# ----------------------------- configuration -----------------------------
TGT_LEN = 8      # tgt_len
BATCH = 2        # batch
SRC_LEN = 10     # src_len
SRC_LEN_ANS = 6  # src_len of answer memory bank (unused by std path)
VOCAB = 50
EMB = 16         # embedding size == _input_size for StdRNNDecoder
HIDDEN = 32
NUM_LAYERS = 2
DROPOUT = 0.0    # nn.Dropout(0.0) == identity


# ----------------------------- fused decoder kernel -----------------------------
def _decoder_kernel(num_layers, len_ref, emb_ref, h0_ref, c0_ref, mem_ref,
                    p_ref, *rest):
    """Whole-batch fused decoder (single program, everything VMEM-resident).

    Ref shapes:
      len_ref [B,1,1] int32, emb_ref [T,B,E], h0_ref/c0_ref [L,B,H],
      mem_ref [B,S,H], p_ref [B,H,S]  (= W_in @ mem^T, precomputed in wrapper),
      per layer: W_ih [I,4H], W_hh [H,4H], b [1,4H];  w_out [2H,H],
      outputs: out [B,T,H], attn [B,T,S], hN/cN [L,B,H].
    """
    L = num_layers
    n_w = 3 * L
    layer_refs = rest[:n_w]
    w_out_ref = rest[n_w]
    out_ref, attn_ref, hN_ref, cN_ref = rest[n_w + 1:n_w + 5]

    T, B, _ = emb_ref.shape
    H = h0_ref.shape[-1]
    f32 = jnp.float32

    # Gate lane masks, hoisted out of all loops: g-gate lanes use tanh(x);
    # i/f/o lanes use sigmoid(x) = 0.5*(1 + tanh(x/2))  -> one tanh pass/step.
    lane = jax.lax.broadcasted_iota(jnp.int32, (1, 4 * H), 1)
    g_mask = jnp.logical_and(lane >= 2 * H, lane < 3 * H)
    pre_scale = jnp.where(g_mask, 1.0, 0.5).astype(f32)          # [1, 4H]

    # Weights loaded once (VMEM-resident values for the whole program).
    w_ih = [layer_refs[3 * l + 0][...] for l in range(L)]
    w_hh = [layer_refs[3 * l + 1][...] for l in range(L)]
    bias = [layer_refs[3 * l + 2][...] for l in range(L)]

    h = [h0_ref[l] for l in range(L)]          # each [B, H]
    c = [c0_ref[l] for l in range(L)]
    y = [None] * L                             # layer l's most recent output
    outs = []                                  # last layer's output sequence

    # Wavefront over (layer, time): at step s, layer l handles t = s - l, so
    # every active layer in a step only depends on results from step s-1 and
    # the L chains overlap in the MXU / EUP pipelines.  T, L static -> unrolled.
    # TODO(synk): at production H/T use lax.fori_loop(..., unroll=<small>) over
    #             time to bound live ranges instead of a full Python unroll.
    for s in range(T + L - 1):
        y_prev = list(y)
        for l in range(L):
            t = s - l
            if t < 0 or t >= T:
                continue
            x = emb_ref[t] if l == 0 else y_prev[l - 1]          # [B, I]
            gates = (jnp.dot(x, w_ih[l], preferred_element_type=f32)
                     + jnp.dot(h[l], w_hh[l], preferred_element_type=f32)
                     + bias[l])                                   # [B, 4H]
            th = jnp.tanh(gates * pre_scale)                      # one EUP pass
            acts = jnp.where(g_mask, th, 0.5 * th + 0.5)          # exact sigmoid
            i_g = acts[:, 0:H]
            f_g = acts[:, H:2 * H]
            g_g = acts[:, 2 * H:3 * H]
            o_g = acts[:, 3 * H:4 * H]
            c[l] = f_g * c[l] + i_g * g_g
            h[l] = o_g * jnp.tanh(c[l])
            y[l] = h[l]
            if l == L - 1:
                outs.append(h[l])

    for l in range(L):
        hN_ref[l] = h[l].astype(hN_ref.dtype)
        cN_ref[l] = c[l].astype(cN_ref.dtype)

    # ---------- GlobalAttention(attn_type='general'), whole batch at once ----------
    q = jnp.stack(outs, axis=1)                                   # [B, T, H]
    scores = jnp.einsum('bth,bhs->bts', q, p_ref[...],
                        preferred_element_type=f32)               # [B, T, S]
    s_pos = jax.lax.broadcasted_iota(jnp.int32, scores.shape, 2)
    scores = jnp.where(s_pos < len_ref[...], scores, -1e30)       # per-row mask
    scores = scores - jnp.max(scores, axis=-1, keepdims=True)
    e = jnp.exp(scores)
    denom = jnp.sum(e, axis=-1, keepdims=True)
    r = pl.reciprocal(denom, approx=True)      # EUP slot (otherwise idle here)
    r = r * (2.0 - denom * r)                  # one Newton step -> ~f32 accurate
    align = e * r                                                 # [B, T, S]

    ctx = jnp.einsum('bts,bsh->bth', align, mem_ref[...],
                     preferred_element_type=f32)                  # [B, T, H]
    # Fused output projection: tanh([ctx, q] @ [W_out_c; W_out_q]) in ONE matmul.
    cat = jnp.concatenate([ctx.reshape(B * T, H), q.reshape(B * T, H)], axis=-1)
    attn_h = jnp.tanh(jnp.dot(cat, w_out_ref[...],
                              preferred_element_type=f32))        # [B*T, H]

    out_ref[...] = attn_h.reshape(B, T, H).astype(out_ref.dtype)
    attn_ref[...] = align.astype(attn_ref.dtype)


# ----------------------------- decoder forward (RNNDecoderBase.forward) -----------------------------
@jax.jit
def rnn_decoder_forward(tgt, memory_bank, memory_bank_ans, state,
                        memory_lengths, memory_lengths_ans, params):
    """Mirrors RNNDecoderBase.forward with StdRNNDecoder._run_forward_pass."""
    del memory_bank_ans, memory_lengths_ans  # unused by the std attention path
    assert tgt.shape[1] == memory_bank.shape[1]  # aeq(tgt_batch, memory_batch)

    T, B = tgt.shape[0], tgt.shape[1]
    S = memory_bank.shape[0]
    h0, c0 = state["hidden"]                                     # [L,B,H] each
    L, _, H = h0.shape

    # Embedding lookup, kept time-major (the order the recurrence consumes it).
    emb_tbe = params["embedding"][tgt[:, :, 0]]                  # [T,B,E]
    mem_b = jnp.transpose(memory_bank, (1, 0, 2))                # [B,S,H] (tiny)
    # Fold the attention input projection into a precompute: P = W_in @ mem^T,
    # so the in-kernel score matmul needs no lane-dim contraction / transpose.
    p_bhs = jnp.einsum('hg,bsg->bhs', params["attn_w_in"], mem_b)   # [B,H,S]
    # Fused output-projection weight for [ctx, q].
    w_out = jnp.concatenate([params["attn_w_out_c"],
                             params["attn_w_out_q"]], axis=0)    # [2H,H]
    lens = memory_lengths.astype(jnp.int32).reshape(B, 1, 1)

    layer_w = []
    for l in range(L):
        layer_w += [params["w_ih"][l], params["w_hh"][l], params["b"][l]]

    n_in = 6 + len(layer_w) + 1
    vmem = pl.BlockSpec(memory_space=pltpu.MemorySpace.VMEM)

    out_shapes = (
        jax.ShapeDtypeStruct((B, T, H), jnp.float32),            # decoder outputs
        jax.ShapeDtypeStruct((B, T, S), jnp.float32),            # attention weights
        jax.ShapeDtypeStruct((L, B, H), jnp.float32),            # final h
        jax.ShapeDtypeStruct((L, B, H), jnp.float32),            # final c
    )

    out_bth, attn_bts, hN, cN = pl.pallas_call(
        functools.partial(_decoder_kernel, L),
        out_shape=out_shapes,
        in_specs=[vmem] * n_in,
        out_specs=(vmem, vmem, vmem, vmem),
        # Whole problem in ONE program: no grid-step overhead, everything stays
        # VMEM-resident.  32 MiB scoped VMEM is safe on v5e/v6e/v7x.
        # TODO(synk): at larger B shard a leading batch-chunk grid axis across
        #             TensorCores (dimension_semantics=("parallel",), >=2 rows
        #             per core); at production H use bf16 matmul operands and
        #             stream per-layer weights to fit v7x's 64 MiB VMEM.
        compiler_params=pltpu.CompilerParams(
            vmem_limit_bytes=32 * 1024 * 1024),
    )(lens, emb_tbe, h0, c0, mem_b, p_bhs, *layer_w, w_out)

    # Back to the module's time-major interface (tiny transposes, fused by XLA).
    decoder_outputs = jnp.transpose(out_bth, (1, 0, 2))          # [T,B,H]
    p_attn = jnp.transpose(attn_bts, (1, 0, 2))                  # [T,B,S]

    # dropout(p=0.0) is identity
    final_output = decoder_outputs[-1]                           # [B,H]
    new_state = {
        "hidden": (hN, cN),
        "input_feed": final_output[None],                        # [1,B,H]
        "coverage": None,
    }
    attns = {"std": p_attn}
    return decoder_outputs, new_state, attns


# ----------------------------- pure-JAX reference for validation -----------------------------
def _ref_forward(tgt, memory_bank, state, memory_lengths, params):
    emb = params["embedding"][tgt[:, :, 0]]
    h0, c0 = state["hidden"]
    x = emb
    hs, cs = [], []
    for l in range(NUM_LAYERS):
        def step(carry, xt, l=l):
            h, c = carry
            gates = xt @ params["w_ih"][l] + h @ params["w_hh"][l] + params["b"][l][0]
            i, f, g, o = jnp.split(gates, 4, axis=-1)
            c = jax.nn.sigmoid(f) * c + jax.nn.sigmoid(i) * jnp.tanh(g)
            h = jax.nn.sigmoid(o) * jnp.tanh(c)
            return (h, c), h
        (hN, cN), x = jax.lax.scan(step, (h0[l], c0[l]), x)
        hs.append(hN); cs.append(cN)
    q = jnp.transpose(x, (1, 0, 2))                  # [B,T,H]
    m = jnp.transpose(memory_bank, (1, 0, 2))        # [B,S,H]
    scores = jnp.einsum("bth,bsh->bts", q @ params["attn_w_in"], m)
    mask = jnp.arange(m.shape[1])[None, None, :] < memory_lengths[:, None, None]
    scores = jnp.where(mask, scores, -1e30)
    align = jax.nn.softmax(scores, axis=-1)
    ctx = jnp.einsum("bts,bsh->bth", align, m)
    out = jnp.tanh(ctx @ params["attn_w_out_c"] + q @ params["attn_w_out_q"])
    return (jnp.transpose(out, (1, 0, 2)), jnp.transpose(align, (1, 0, 2)),
            jnp.stack(hs), jnp.stack(cs))


# ----------------------------- main -----------------------------
if __name__ == "__main__":
    key = jax.random.PRNGKey(0)
    ks = jax.random.split(key, 16)

    # deterministic synthetic parameters
    params = {
        "embedding": 0.1 * jax.random.normal(ks[0], (VOCAB, EMB), jnp.float32),
        "w_ih": [0.1 * jax.random.normal(ks[1 + l],
                                         (EMB if l == 0 else HIDDEN, 4 * HIDDEN),
                                         jnp.float32) for l in range(NUM_LAYERS)],
        "w_hh": [0.1 * jax.random.normal(ks[4 + l], (HIDDEN, 4 * HIDDEN),
                                         jnp.float32) for l in range(NUM_LAYERS)],
        "b": [0.1 * jax.random.normal(ks[7 + l], (1, 4 * HIDDEN), jnp.float32)
              for l in range(NUM_LAYERS)],
        "attn_w_in": 0.1 * jax.random.normal(ks[10], (HIDDEN, HIDDEN), jnp.float32),
        "attn_w_out_c": 0.1 * jax.random.normal(ks[11], (HIDDEN, HIDDEN), jnp.float32),
        "attn_w_out_q": 0.1 * jax.random.normal(ks[12], (HIDDEN, HIDDEN), jnp.float32),
    }

    # inputs (time-major like PyTorch)
    tgt = jax.random.randint(ks[13], (TGT_LEN, BATCH, 1), 0, VOCAB, jnp.int32)
    memory_bank = jax.random.normal(ks[14], (SRC_LEN, BATCH, HIDDEN), jnp.float32)
    memory_bank_ans = jax.random.normal(ks[15], (SRC_LEN_ANS, BATCH, HIDDEN),
                                        jnp.float32)
    memory_lengths = jnp.array([SRC_LEN, SRC_LEN - 3], jnp.int32)
    memory_lengths_ans = jnp.array([SRC_LEN_ANS, SRC_LEN_ANS - 2], jnp.int32)

    # RNNDecoderState equivalent: encoder-final hidden + zero input_feed
    enc_h = jax.random.normal(jax.random.PRNGKey(42),
                              (NUM_LAYERS, BATCH, HIDDEN), jnp.float32)
    enc_c = jax.random.normal(jax.random.PRNGKey(43),
                              (NUM_LAYERS, BATCH, HIDDEN), jnp.float32)
    state = {
        "hidden": (enc_h, enc_c),
        "input_feed": jnp.zeros((1, BATCH, HIDDEN), jnp.float32),
        "coverage": None,
    }

    decoder_outputs, new_state, attns = rnn_decoder_forward(
        tgt, memory_bank, memory_bank_ans, state,
        memory_lengths, memory_lengths_ans, params)
    jax.block_until_ready(decoder_outputs)
    jax.block_until_ready(attns["std"])
    jax.block_until_ready(new_state["hidden"])

    # validate against a pure-JAX reference
    ref_out, ref_attn, ref_h, ref_c = _ref_forward(
        tgt, memory_bank, state, memory_lengths, params)
    assert decoder_outputs.shape == (TGT_LEN, BATCH, HIDDEN)
    assert attns["std"].shape == (TGT_LEN, BATCH, SRC_LEN)
    assert new_state["input_feed"].shape == (1, BATCH, HIDDEN)
    assert jnp.allclose(decoder_outputs, ref_out, atol=2e-4)
    assert jnp.allclose(attns["std"], ref_attn, atol=2e-4)
    assert jnp.allclose(new_state["hidden"][0], ref_h, atol=2e-4)
    assert jnp.allclose(new_state["hidden"][1], ref_c, atol=2e-4)

    print("KERNEL_OK")
</pallas_src>

<mosaic_0001>
module attributes {stable_mosaic.version = 11 : i64} {
  func.func @_decoder_kernel(%arg0: memref<2x1x1xi32, #tpu.memory_space<vmem>>, %arg1: memref<8x2x16xf32, #tpu.memory_space<vmem>>, %arg2: memref<2x2x32xf32, #tpu.memory_space<vmem>>, %arg3: memref<2x2x32xf32, #tpu.memory_space<vmem>>, %arg4: memref<2x10x32xf32, #tpu.memory_space<vmem>>, %arg5: memref<2x32x10xf32, #tpu.memory_space<vmem>>, %arg6: memref<16x128xf32, #tpu.memory_space<vmem>>, %arg7: memref<32x128xf32, #tpu.memory_space<vmem>>, %arg8: memref<1x128xf32, #tpu.memory_space<vmem>>, %arg9: memref<32x128xf32, #tpu.memory_space<vmem>>, %arg10: memref<32x128xf32, #tpu.memory_space<vmem>>, %arg11: memref<1x128xf32, #tpu.memory_space<vmem>>, %arg12: memref<64x32xf32, #tpu.memory_space<vmem>>, %arg13: memref<2x8x32xf32, #tpu.memory_space<vmem>>, %arg14: memref<2x8x10xf32, #tpu.memory_space<vmem>>, %arg15: memref<2x2x32xf32, #tpu.memory_space<vmem>>, %arg16: memref<2x2x32xf32, #tpu.memory_space<vmem>>) attributes {dimension_semantics = [], scalar_prefetch = 0 : i64, scratch_operands = 0 : i64, tpu.core_type = #tpu.core_type<tc>} {
    %0 = tpu.iota {dimensions = array<i32: 1>} : vector<1x128xi32>
    %c64_i32 = arith.constant 64 : i32
    %1 = vector.broadcast %c64_i32 : i32 to vector<1x128xi32>
    %2 = arith.cmpi sge, %0, %1 : vector<1x128xi32>
    %c96_i32 = arith.constant 96 : i32
    %3 = vector.broadcast %c96_i32 : i32 to vector<1x128xi32>
    %4 = arith.cmpi slt, %0, %3 : vector<1x128xi32>
    %5 = arith.andi %2, %4 : vector<1x128xi1>
    %cst = arith.constant 1.000000e+00 : f32
    %cst_0 = arith.constant 5.000000e-01 : f32
    %6 = vector.broadcast %cst : f32 to vector<1x128xf32>
    %7 = vector.broadcast %cst_0 : f32 to vector<1x128xf32>
    %8 = arith.select %5, %6, %7 : vector<1x128xi1>, vector<1x128xf32>
    %c0 = arith.constant 0 : index
    %c0_1 = arith.constant 0 : index
    %9 = vector.load %arg6[%c0, %c0_1] : memref<16x128xf32, #tpu.memory_space<vmem>>, vector<16x128xf32>
    %c0_2 = arith.constant 0 : index
    %c0_3 = arith.constant 0 : index
    %10 = vector.load %arg9[%c0_2, %c0_3] : memref<32x128xf32, #tpu.memory_space<vmem>>, vector<32x128xf32>
    %c0_4 = arith.constant 0 : index
    %c0_5 = arith.constant 0 : index
    %11 = vector.load %arg7[%c0_4, %c0_5] : memref<32x128xf32, #tpu.memory_space<vmem>>, vector<32x128xf32>
    %c0_6 = arith.constant 0 : index
    %c0_7 = arith.constant 0 : index
    %12 = vector.load %arg10[%c0_6, %c0_7] : memref<32x128xf32, #tpu.memory_space<vmem>>, vector<32x128xf32>
    %c0_8 = arith.constant 0 : index
    %c0_9 = arith.constant 0 : index
    %13 = vector.load %arg8[%c0_8, %c0_9] : memref<1x128xf32, #tpu.memory_space<vmem>>, vector<1x128xf32>
    %c0_10 = arith.constant 0 : index
    %c0_11 = arith.constant 0 : index
    %14 = vector.load %arg11[%c0_10, %c0_11] : memref<1x128xf32, #tpu.memory_space<vmem>>, vector<1x128xf32>
    %c0_12 = arith.constant 0 : index
    %c0_13 = arith.constant 0 : index
    %c0_14 = arith.constant 0 : index
    %15 = vector.load %arg2[%c0_12, %c0_13, %c0_14] : memref<2x2x32xf32, #tpu.memory_space<vmem>>, vector<1x2x32xf32>
    %16 = vector.shape_cast %15 : vector<1x2x32xf32> to vector<2x32xf32>
    %c1 = arith.constant 1 : index
    %c0_15 = arith.constant 0 : index
    %c0_16 = arith.constant 0 : index
    %17 = vector.load %arg2[%c1, %c0_15, %c0_16] : memref<2x2x32xf32, #tpu.memory_space<vmem>>, vector<1x2x32xf32>
    %18 = vector.shape_cast %17 : vector<1x2x32xf32> to vector<2x32xf32>
    %c0_17 = arith.constant 0 : index
    %c0_18 = arith.constant 0 : index
    %c0_19 = arith.constant 0 : index
    %19 = vector.load %arg3[%c0_17, %c0_18, %c0_19] : memref<2x2x32xf32, #tpu.memory_space<vmem>>, vector<1x2x32xf32>
    %20 = vector.shape_cast %19 : vector<1x2x32xf32> to vector<2x32xf32>
    %c1_20 = arith.constant 1 : index
    %c0_21 = arith.constant 0 : index
    %c0_22 = arith.constant 0 : index
    %21 = vector.load %arg3[%c1_20, %c0_21, %c0_22] : memref<2x2x32xf32, #tpu.memory_space<vmem>>, vector<1x2x32xf32>
    %22 = vector.shape_cast %21 : vector<1x2x32xf32> to vector<2x32xf32>
    %c0_23 = arith.constant 0 : index
    %c0_24 = arith.constant 0 : index
    %c0_25 = arith.constant 0 : index
    %23 = vector.load %arg1[%c0_23, %c0_24, %c0_25] : memref<8x2x16xf32, #tpu.memory_space<vmem>>, vector<1x2x16xf32>
    %24 = vector.shape_cast %23 : vector<1x2x16xf32> to vector<2x16xf32>
    %cst_26 = arith.constant dense<0.000000e+00> : vector<2x128xf32>
    %25 = tpu.matmul %24, %9, %cst_26 {dimension_numbers = #tpu.dot_dimension_numbers<[1], [0], [0], [1], [0, 0, 1, 1], [], []>} : vector<2x16xf32>, vector<16x128xf32>, vector<2x128xf32> -> vector<2x128xf32>
    %cst_27 = arith.constant dense<0.000000e+00> : vector<2x128xf32>
    %26 = tpu.matmul %16, %11, %cst_27 {dimension_numbers = #tpu.dot_dimension_numbers<[1], [0], [0], [1], [0, 0, 1, 1], [], []>} : vector<2x32xf32>, vector<32x128xf32>, vector<2x128xf32> -> vector<2x128xf32>
    %27 = arith.addf %25, %26 : vector<2x128xf32>
    %28 = vector.broadcast %13 : vector<1x128xf32> to vector<2x128xf32>
    %29 = arith.addf %27, %28 : vector<2x128xf32>
    %30 = vector.broadcast %8 : vector<1x128xf32> to vector<2x128xf32>
    %31 = arith.mulf %29, %30 : vector<2x128xf32>
    %32 = math.tanh %31 : vector<2x128xf32>
    %cst_28 = arith.constant 5.000000e-01 : f32
    %33 = vector.broadcast %cst_28 : f32 to vector<2x128xf32>
    %34 = arith.mulf %33, %32 : vector<2x128xf32>
    %cst_29 = arith.constant 5.000000e-01 : f32
    %35 = vector.broadcast %cst_29 : f32 to vector<2x128xf32>
    %36 = arith.addf %34, %35 : vector<2x128xf32>
    %37 = vector.shape_cast %5 : vector<1x128xi1> to vector<1x128xi1>
    %38 = vector.broadcast %37 : vector<1x128xi1> to vector<2x128xi1>
    %39 = arith.select %38, %32, %36 : vector<2x128xi1>, vector<2x128xf32>
    %40 = vector.extract_strided_slice %39 {offsets = [0, 0], sizes = [2, 32], strides = [1, 1]} : vector<2x128xf32> to vector<2x32xf32>
    %41 = vector.extract_strided_slice %39 {offsets = [0, 32], sizes = [2, 32], strides = [1, 1]} : vector<2x128xf32> to vector<2x32xf32>
    %42 = vector.extract_strided_slice %39 {offsets = [0, 64], sizes = [2, 32], strides = [1, 1]} : vector<2x128xf32> to vector<2x32xf32>
    %43 = vector.extract_strided_slice %39 {offsets = [0, 96], sizes = [2, 32], strides = [1, 1]} : vector<2x128xf32> to vector<2x32xf32>
    %44 = arith.mulf %41, %20 : vector<2x32xf32>
    %45 = arith.mulf %40, %42 : vector<2x32xf32>
    %46 = arith.addf %44, %45 : vector<2x32xf32>
    %47 = math.tanh %46 : vector<2x32xf32>
    %48 = arith.mulf %43, %47 : vector<2x32xf32>
    %c1_30 = arith.constant 1 : index
    %c0_31 = arith.constant 0 : index
    %c0_32 = arith.constant 0 : index
    %49 = vector.load %arg1[%c1_30, %c0_31, %c0_32] : memref<8x2x16xf32, #tpu.memory_space<vmem>>, vector<1x2x16xf32>
    %50 = vector.shape_cast %49 : vector<1x2x16xf32> to vector<2x16xf32>
    %cst_33 = arith.constant dense<0.000000e+00> : vector<2x128xf32>
    %51 = tpu.matmul %50, %9, %cst_33 {dimension_numbers = #tpu.dot_dimension_numbers<[1], [0], [0], [1], [0, 0, 1, 1], [], []>} : vector<2x16xf32>, vector<16x128xf32>, vector<2x128xf32> -> vector<2x128xf32>
    %cst_34 = arith.constant dense<0.000000e+00> : vector<2x128xf32>
    %52 = tpu.matmul %48, %11, %cst_34 {dimension_numbers = #tpu.dot_dimension_numbers<[1], [0], [0], [1], [0, 0, 1, 1], [], []>} : vector<2x32xf32>, vector<32x128xf32>, vector<2x128xf32> -> vector<2x128xf32>
    %53 = arith.addf %51, %52 : vector<2x128xf32>
    %54 = vector.broadcast %13 : vector<1x128xf32> to vector<2x128xf32>
    %55 = arith.addf %53, %54 : vector<2x128xf32>
    %56 = vector.broadcast %8 : vector<1x128xf32> to vector<2x128xf32>
    %57 = arith.mulf %55, %56 : vector<2x128xf32>
    %58 = math.tanh %57 : vector<2x128xf32>
    %cst_35 = arith.constant 5.000000e-01 : f32
    %59 = vector.broadcast %cst_35 : f32 to vector<2x128xf32>
    %60 = arith.mulf %59, %58 : vector<2x128xf32>
    %cst_36 = arith.constant 5.000000e-01 : f32
    %61 = vector.broadcast %cst_36 : f32 to vector<2x128xf32>
    %62 = arith.addf %60, %61 : vector<2x128xf32>
    %63 = vector.shape_cast %5 : vector<1x128xi1> to vector<1x128xi1>
    %64 = vector.broadcast %63 : vector<1x128xi1> to vector<2x128xi1>
    %65 = arith.select %64, %58, %62 : vector<2x128xi1>, vector<2x128xf32>
    %66 = vector.extract_strided_slice %65 {offsets = [0, 0], sizes = [2, 32], strides = [1, 1]} : vector<2x128xf32> to vector<2x32xf32>
    %67 = vector.extract_strided_slice %65 {offsets = [0, 32], sizes = [2, 32], strides = [1, 1]} : vector<2x128xf32> to vector<2x32xf32>
    %68 = vector.extract_strided_slice %65 {offsets = [0, 64], sizes = [2, 32], strides = [1, 1]} : vector<2x128xf32> to vector<2x32xf32>
    %69 = vector.extract_strided_slice %65 {offsets = [0, 96], sizes = [2, 32], strides = [1, 1]} : vector<2x128xf32> to vector<2x32xf32>
    %70 = arith.mulf %67, %46 : vector<2x32xf32>
    %71 = arith.mulf %66, %68 : vector<2x32xf32>
    %72 = arith.addf %70, %71 : vector<2x32xf32>
    %73 = math.tanh %72 : vector<2x32xf32>
    %74 = arith.mulf %69, %73 : vector<2x32xf32>
    %cst_37 = arith.constant dense<0.000000e+00> : vector<2x128xf32>
    %75 = tpu.matmul %48, %10, %cst_37 {dimension_numbers = #tpu.dot_dimension_numbers<[1], [0], [0], [1], [0, 0, 1, 1], [], []>} : vector<2x32xf32>, vector<32x128xf32>, vector<2x128xf32> -> vector<2x128xf32>
    %cst_38 = arith.constant dense<0.000000e+00> : vector<2x128xf32>
    %76 = tpu.matmul %18, %12, %cst_38 {dimension_numbers = #tpu.dot_dimension_numbers<[1], [0], [0], [1], [0, 0, 1, 1], [], []>} : vector<2x32xf32>, vector<32x128xf32>, vector<2x128xf32> -> vector<2x128xf32>
    %77 = arith.addf %75, %76 : vector<2x128xf32>
    %78 = vector.broadcast %14 : vector<1x128xf32> to vector<2x128xf32>
    %79 = arith.addf %77, %78 : vector<2x128xf32>
    %80 = vector.broadcast %8 : vector<1x128xf32> to vector<2x128xf32>
    %81 = arith.mulf %79, %80 : vector<2x128xf32>
    %82 = math.tanh %81 : vector<2x128xf32>
    %cst_39 = arith.constant 5.000000e-01 : f32
    %83 = vector.broadcast %cst_39 : f32 to vector<2x128xf32>
    %84 = arith.mulf %83, %82 : vector<2x128xf32>
    %cst_40 = arith.constant 5.000000e-01 : f32
    %85 = vector.broadcast %cst_40 : f32 to vector<2x128xf32>
    %86 = arith.addf %84, %85 : vector<2x128xf32>
    %87 = vector.shape_cast %5 : vector<1x128xi1> to vector<1x128xi1>
    %88 = vector.broadcast %87 : vector<1x128xi1> to vector<2x128xi1>
    %89 = arith.select %88, %82, %86 : vector<2x128xi1>, vector<2x128xf32>
    %90 = vector.extract_strided_slice %89 {offsets = [0, 0], sizes = [2, 32], strides = [1, 1]} : vector<2x128xf32> to vector<2x32xf32>
    %91 = vector.extract_strided_slice %89 {offsets = [0, 32], sizes = [2, 32], strides = [1, 1]} : vector<2x128xf32> to vector<2x32xf32>
    %92 = vector.extract_strided_slice %89 {offsets = [0, 64], sizes = [2, 32], strides = [1, 1]} : vector<2x128xf32> to vector<2x32xf32>
    %93 = vector.extract_strided_slice %89 {offsets = [0, 96], sizes = [2, 32], strides = [1, 1]} : vector<2x128xf32> to vector<2x32xf32>
    %94 = arith.mulf %91, %22 : vector<2x32xf32>
    %95 = arith.mulf %90, %92 : vector<2x32xf32>
    %96 = arith.addf %94, %95 : vector<2x32xf32>
    %97 = math.tanh %96 : vector<2x32xf32>
    %98 = arith.mulf %93, %97 : vector<2x32xf32>
    %c2 = arith.constant 2 : index
    %c0_41 = arith.constant 0 : index
    %c0_42 = arith.constant 0 : index
    %99 = vector.load %arg1[%c2, %c0_41, %c0_42] : memref<8x2x16xf32, #tpu.memory_space<vmem>>, vector<1x2x16xf32>
    %100 = vector.shape_cast %99 : vector<1x2x16xf32> to vector<2x16xf32>
    %cst_43 = arith.constant dense<0.000000e+00> : vector<2x128xf32>
    %101 = tpu.matmul %100, %9, %cst_43 {dimension_numbers = #tpu.dot_dimension_numbers<[1], [0], [0], [1], [0, 0, 1, 1], [], []>} : vector<2x16xf32>, vector<16x128xf32>, vector<2x128xf32> -> vector<2x128xf32>
    %cst_44 = arith.constant dense<0.000000e+00> : vector<2x128xf32>
    %102 = tpu.matmul %74, %11, %cst_44 {dimension_numbers = #tpu.dot_dimension_numbers<[1], [0], [0], [1], [0, 0, 1, 1], [], []>} : vector<2x32xf32>, vector<32x128xf32>, vector<2x128xf32> -> vector<2x128xf32>
    %103 = arith.addf %101, %102 : vector<2x128xf32>
    %104 = vector.broadcast %13 : vector<1x128xf32> to vector<2x128xf32>
    %105 = arith.addf %103, %104 : vector<2x128xf32>
    %106 = vector.broadcast %8 : vector<1x128xf32> to vector<2x128xf32>
    %107 = arith.mulf %105, %106 : vector<2x128xf32>
    %108 = math.tanh %107 : vector<2x128xf32>
    %cst_45 = arith.constant 5.000000e-01 : f32
    %109 = vector.broadcast %cst_45 : f32 to vector<2x128xf32>
    %110 = arith.mulf %109, %108 : vector<2x128xf32>
    %cst_46 = arith.constant 5.000000e-01 : f32
    %111 = vector.broadcast %cst_46 : f32 to vector<2x128xf32>
    %112 = arith.addf %110, %111 : vector<2x128xf32>
    %113 = vector.shape_cast %5 : vector<1x128xi1> to vector<1x128xi1>
    %114 = vector.broadcast %113 : vector<1x128xi1> to vector<2x128xi1>
    %115 = arith.select %114, %108, %112 : vector<2x128xi1>, vector<2x128xf32>
    %116 = vector.extract_strided_slice %115 {offsets = [0, 0], sizes = [2, 32], strides = [1, 1]} : vector<2x128xf32> to vector<2x32xf32>
    %117 = vector.extract_strided_slice %115 {offsets = [0, 32], sizes = [2, 32], strides = [1, 1]} : vector<2x128xf32> to vector<2x32xf32>
    %118 = vector.extract_strided_slice %115 {offsets = [0, 64], sizes = [2, 32], strides = [1, 1]} : vector<2x128xf32> to vector<2x32xf32>
    %119 = vector.extract_strided_slice %115 {offsets = [0, 96], sizes = [2, 32], strides = [1, 1]} : vector<2x128xf32> to vector<2x32xf32>
    %120 = arith.mulf %117, %72 : vector<2x32xf32>
    %121 = arith.mulf %116, %118 : vector<2x32xf32>
    %122 = arith.addf %120, %121 : vector<2x32xf32>
    %123 = math.tanh %122 : vector<2x32xf32>
    %124 = arith.mulf %119, %123 : vector<2x32xf32>
    %cst_47 = arith.constant dense<0.000000e+00> : vector<2x128xf32>
    %125 = tpu.matmul %74, %10, %cst_47 {dimension_numbers = #tpu.dot_dimension_numbers<[1], [0], [0], [1], [0, 0, 1, 1], [], []>} : vector<2x32xf32>, vector<32x128xf32>, vector<2x128xf32> -> vector<2x128xf32>
    %cst_48 = arith.constant dense<0.000000e+00> : vector<2x128xf32>
    %126 = tpu.matmul %98, %12, %cst_48 {dimension_numbers = #tpu.dot_dimension_numbers<[1], [0], [0], [1], [0, 0, 1, 1], [], []>} : vector<2x32xf32>, vector<32x128xf32>, vector<2x128xf32> -> vector<2x128xf32>
    %127 = arith.addf %125, %126 : vector<2x128xf32>
    %128 = vector.broadcast %14 : vector<1x128xf32> to vector<2x128xf32>
    %129 = arith.addf %127, %128 : vector<2x128xf32>
    %130 = vector.broadcast %8 : vector<1x128xf32> to vector<2x128xf32>
    %131 = arith.mulf %129, %130 : vector<2x128xf32>
    %132 = math.tanh %131 : vector<2x128xf32>
    %cst_49 = arith.constant 5.000000e-01 : f32
    %133 = vector.broadcast %cst_49 : f32 to vector<2x128xf32>
    %134 = arith.mulf %133, %132 : vector<2x128xf32>
    %cst_50 = arith.constant 5.000000e-01 : f32
    %135 = vector.broadcast %cst_50 : f32 to vector<2x128xf32>
    %136 = arith.addf %134, %135 : vector<2x128xf32>
    %137 = vector.shape_cast %5 : vector<1x128xi1> to vector<1x128xi1>
    %138 = vector.broadcast %137 : vector<1x128xi1> to vector<2x128xi1>
    %139 = arith.select %138, %132, %136 : vector<2x128xi1>, vector<2x128xf32>
    %140 = vector.extract_strided_slice %139 {offsets = [0, 0], sizes = [2, 32], strides = [1, 1]} : vector<2x128xf32> to vector<2x32xf32>
    %141 = vector.extract_strided_slice %139 {offsets = [0, 32], sizes = [2, 32], strides = [1, 1]} : vector<2x128xf32> to vector<2x32xf32>
    %142 = vector.extract_strided_slice %139 {offsets = [0, 64], sizes = [2, 32], strides = [1, 1]} : vector<2x128xf32> to vector<2x32xf32>
    %143 = vector.extract_strided_slice %139 {offsets = [0, 96], sizes = [2, 32], strides = [1, 1]} : vector<2x128xf32> to vector<2x32xf32>
    %144 = arith.mulf %141, %96 : vector<2x32xf32>
    %145 = arith.mulf %140, %142 : vector<2x32xf32>
    %146 = arith.addf %144, %145 : vector<2x32xf32>
    %147 = math.tanh %146 : vector<2x32xf32>
    %148 = arith.mulf %143, %147 : vector<2x32xf32>
    %c3 = arith.constant 3 : index
    %c0_51 = arith.constant 0 : index
    %c0_52 = arith.constant 0 : index
    %149 = vector.load %arg1[%c3, %c0_51, %c0_52] : memref<8x2x16xf32, #tpu.memory_space<vmem>>, vector<1x2x16xf32>
    %150 = vector.shape_cast %149 : vector<1x2x16xf32> to vector<2x16xf32>
    %cst_53 = arith.constant dense<0.000000e+00> : vector<2x128xf32>
    %151 = tpu.matmul %150, %9, %cst_53 {dimension_numbers = #tpu.dot_dimension_numbers<[1], [0], [0], [1], [0, 0, 1, 1], [], []>} : vector<2x16xf32>, vector<16x128xf32>, vector<2x128xf32> -> vector<2x128xf32>
    %cst_54 = arith.constant dense<0.000000e+00> : vector<2x128xf32>
    %152 = tpu.matmul %124, %11, %cst_54 {dimension_numbers = #tpu.dot_dimension_numbers<[1], [0], [0], [1], [0, 0, 1, 1], [], []>} : vector<2x32xf32>, vector<32x128xf32>, vector<2x128xf32> -> vector<2x128xf32>
    %153 = arith.addf %151, %152 : vector<2x128xf32>
    %154 = vector.broadcast %13 : vector<1x128xf32> to vector<2x128xf32>
    %155 = arith.addf %153, %154 : vector<2x128xf32>
    %156 = vector.broadcast %8 : vector<1x128xf32> to vector<2x128xf32>
    %157 = arith.mulf %155, %156 : vector<2x128xf32>
    %158 = math.tanh %157 : vector<2x128xf32>
    %cst_55 = arith.constant 5.000000e-01 : f32
    %159 = vector.broadcast %cst_55 : f32 to vector<2x128xf32>
    %160 = arith.mulf %159, %158 : vector<2x128xf32>
    %cst_56 = arith.constant 5.000000e-01 : f32
    %161 = vector.broadcast %cst_56 : f32 to vector<2x128xf32>
    %162 = arith.addf %160, %161 : vector<2x128xf32>
    %163 = vector.shape_cast %5 : vector<1x128xi1> to vector<1x128xi1>
    %164 = vector.broadcast %163 : vector<1x128xi1> to vector<2x128xi1>
    %165 = arith.select %164, %158, %162 : vector<2x128xi1>, vector<2x128xf32>
    %166 = vector.extract_strided_slice %165 {offsets = [0, 0], sizes = [2, 32], strides = [1, 1]} : vector<2x128xf32> to vector<2x32xf32>
    %167 = vector.extract_strided_slice %165 {offsets = [0, 32], sizes = [2, 32], strides = [1, 1]} : vector<2x128xf32> to vector<2x32xf32>
    %168 = vector.extract_strided_slice %165 {offsets = [0, 64], sizes = [2, 32], strides = [1, 1]} : vector<2x128xf32> to vector<2x32xf32>
    %169 = vector.extract_strided_slice %165 {offsets = [0, 96], sizes = [2, 32], strides = [1, 1]} : vector<2x128xf32> to vector<2x32xf32>
    %170 = arith.mulf %167, %122 : vector<2x32xf32>
    %171 = arith.mulf %166, %168 : vector<2x32xf32>
    %172 = arith.addf %170, %171 : vector<2x32xf32>
    %173 = math.tanh %172 : vector<2x32xf32>
    %174 = arith.mulf %169, %173 : vector<2x32xf32>
    %cst_57 = arith.constant dense<0.000000e+00> : vector<2x128xf32>
    %175 = tpu.matmul %124, %10, %cst_57 {dimension_numbers = #tpu.dot_dimension_numbers<[1], [0], [0], [1], [0, 0, 1, 1], [], []>} : vector<2x32xf32>, vector<32x128xf32>, vector<2x128xf32> -> vector<2x128xf32>
    %cst_58 = arith.constant dense<0.000000e+00> : vector<2x128xf32>
    %176 = tpu.matmul %148, %12, %cst_58 {dimension_numbers = #tpu.dot_dimension_numbers<[1], [0], [0], [1], [0, 0, 1, 1], [], []>} : vector<2x32xf32>, vector<32x128xf32>, vector<2x128xf32> -> vector<2x128xf32>
    %177 = arith.addf %175, %176 : vector<2x128xf32>
    %178 = vector.broadcast %14 : vector<1x128xf32> to vector<2x128xf32>
    %179 = arith.addf %177, %178 : vector<2x128xf32>
    %180 = vector.broadcast %8 : vector<1x128xf32> to vector<2x128xf32>
    %181 = arith.mulf %179, %180 : vector<2x128xf32>
    %182 = math.tanh %181 : vector<2x128xf32>
    %cst_59 = arith.constant 5.000000e-01 : f32
    %183 = vector.broadcast %cst_59 : f32 to vector<2x128xf32>
    %184 = arith.mulf %183, %182 : vector<2x128xf32>
    %cst_60 = arith.constant 5.000000e-01 : f32
    %185 = vector.broadcast %cst_60 : f32 to vector<2x128xf32>
    %186 = arith.addf %184, %185 : vector<2x128xf32>
    %187 = vector.shape_cast %5 : vector<1x128xi1> to vector<1x128xi1>
    %188 = vector.broadcast %187 : vector<1x128xi1> to vector<2x128xi1>
    %189 = arith.select %188, %182, %186 : vector<2x128xi1>, vector<2x128xf32>
    %190 = vector.extract_strided_slice %189 {offsets = [0, 0], sizes = [2, 32], strides = [1, 1]} : vector<2x128xf32> to vector<2x32xf32>
    %191 = vector.extract_strided_slice %189 {offsets = [0, 32], sizes = [2, 32], strides = [1, 1]} : vector<2x128xf32> to vector<2x32xf32>
    %192 = vector.extract_strided_slice %189 {offsets = [0, 64], sizes = [2, 32], strides = [1, 1]} : vector<2x128xf32> to vector<2x32xf32>
    %193 = vector.extract_strided_slice %189 {offsets = [0, 96], sizes = [2, 32], strides = [1, 1]} : vector<2x128xf32> to vector<2x32xf32>
    %194 = arith.mulf %191, %146 : vector<2x32xf32>
    %195 = arith.mulf %190, %192 : vector<2x32xf32>
    %196 = arith.addf %194, %195 : vector<2x32xf32>
    %197 = math.tanh %196 : vector<2x32xf32>
    %198 = arith.mulf %193, %197 : vector<2x32xf32>
    %c4 = arith.constant 4 : index
    %c0_61 = arith.constant 0 : index
    %c0_62 = arith.constant 0 : index
    %199 = vector.load %arg1[%c4, %c0_61, %c0_62] : memref<8x2x16xf32, #tpu.memory_space<vmem>>, vector<1x2x16xf32>
    %200 = vector.shape_cast %199 : vector<1x2x16xf32> to vector<2x16xf32>
    %cst_63 = arith.constant dense<0.000000e+00> : vector<2x128xf32>
    %201 = tpu.matmul %200, %9, %cst_63 {dimension_numbers = #tpu.dot_dimension_numbers<[1], [0], [0], [1], [0, 0, 1, 1], [], []>} : vector<2x16xf32>, vector<16x128xf32>, vector<2x128xf32> -> vector<2x128xf32>
    %cst_64 = arith.constant dense<0.000000e+00> : vector<2x128xf32>
    %202 = tpu.matmul %174, %11, %cst_64 {dimension_numbers = #tpu.dot_dimension_numbers<[1], [0], [0], [1], [0, 0, 1, 1], [], []>} : vector<2x32xf32>, vector<32x128xf32>, vector<2x128xf32> -> vector<2x128xf32>
    %203 = arith.addf %201, %202 : vector<2x128xf32>
    %204 = vector.broadcast %13 : vector<1x128xf32> to vector<2x128xf32>
    %205 = arith.addf %203, %204 : vector<2x128xf32>
    %206 = vector.broadcast %8 : vector<1x128xf32> to vector<2x128xf32>
    %207 = arith.mulf %205, %206 : vector<2x128xf32>
    %208 = math.tanh %207 : vector<2x128xf32>
    %cst_65 = arith.constant 5.000000e-01 : f32
    %209 = vector.broadcast %cst_65 : f32 to vector<2x128xf32>
    %210 = arith.mulf %209, %208 : vector<2x128xf32>
    %cst_66 = arith.constant 5.000000e-01 : f32
    %211 = vector.broadcast %cst_66 : f32 to vector<2x128xf32>
    %212 = arith.addf %210, %211 : vector<2x128xf32>
    %213 = vector.shape_cast %5 : vector<1x128xi1> to vector<1x128xi1>
    %214 = vector.broadcast %213 : vector<1x128xi1> to vector<2x128xi1>
    %215 = arith.select %214, %208, %212 : vector<2x128xi1>, vector<2x128xf32>
    %216 = vector.extract_strided_slice %215 {offsets = [0, 0], sizes = [2, 32], strides = [1, 1]} : vector<2x128xf32> to vector<2x32xf32>
    %217 = vector.extract_strided_slice %215 {offsets = [0, 32], sizes = [2, 32], strides = [1, 1]} : vector<2x128xf32> to vector<2x32xf32>
    %218 = vector.extract_strided_slice %215 {offsets = [0, 64], sizes = [2, 32], strides = [1, 1]} : vector<2x128xf32> to vector<2x32xf32>
    %219 = vector.extract_strided_slice %215 {offsets = [0, 96], sizes = [2, 32], strides = [1, 1]} : vector<2x128xf32> to vector<2x32xf32>
    %220 = arith.mulf %217, %172 : vector<2x32xf32>
    %221 = arith.mulf %216, %218 : vector<2x32xf32>
    %222 = arith.addf %220, %221 : vector<2x32xf32>
    %223 = math.tanh %222 : vector<2x32xf32>
    %224 = arith.mulf %219, %223 : vector<2x32xf32>
    %cst_67 = arith.constant dense<0.000000e+00> : vector<2x128xf32>
    %225 = tpu.matmul %174, %10, %cst_67 {dimension_numbers = #tpu.dot_dimension_numbers<[1], [0], [0], [1], [0, 0, 1, 1], [], []>} : vector<2x32xf32>, vector<32x128xf32>, vector<2x128xf32> -> vector<2x128xf32>
    %cst_68 = arith.constant dense<0.000000e+00> : vector<2x128xf32>
    %226 = tpu.matmul %198, %12, %cst_68 {dimension_numbers = #tpu.dot_dimension_numbers<[1], [0], [0], [1], [0, 0, 1, 1], [], []>} : vector<2x32xf32>, vector<32x128xf32>, vector<2x128xf32> -> vector<2x128xf32>
    %227 = arith.addf %225, %226 : vector<2x128xf32>
    %228 = vector.broadcast %14 : vector<1x128xf32> to vector<2x128xf32>
    %229 = arith.addf %227, %228 : vector<2x128xf32>
    %230 = vector.broadcast %8 : vector<1x128xf32> to vector<2x128xf32>
    %231 = arith.mulf %229, %230 : vector<2x128xf32>
    %232 = math.tanh %231 : vector<2x128xf32>
    %cst_69 = arith.constant 5.000000e-01 : f32
    %233 = vector.broadcast %cst_69 : f32 to vector<2x128xf32>
    %234 = arith.mulf %233, %232 : vector<2x128xf32>
    %cst_70 = arith.constant 5.000000e-01 : f32
    %235 = vector.broadcast %cst_70 : f32 to vector<2x128xf32>
    %236 = arith.addf %234, %235 : vector<2x128xf32>
    %237 = vector.shape_cast %5 : vector<1x128xi1> to vector<1x128xi1>
    %238 = vector.broadcast %237 : vector<1x128xi1> to vector<2x128xi1>
    %239 = arith.select %238, %232, %236 : vector<2x128xi1>, vector<2x128xf32>
    %240 = vector.extract_strided_slice %239 {offsets = [0, 0], sizes = [2, 32], strides = [1, 1]} : vector<2x128xf32> to vector<2x32xf32>
    %241 = vector.extract_strided_slice %239 {offsets = [0, 32], sizes = [2, 32], strides = [1, 1]} : vector<2x128xf32> to vector<2x32xf32>
    %242 = vector.extract_strided_slice %239 {offsets = [0, 64], sizes = [2, 32], strides = [1, 1]} : vector<2x128xf32> to vector<2x32xf32>
    %243 = vector.extract_strided_slice %239 {offsets = [0, 96], sizes = [2, 32], strides = [1, 1]} : vector<2x128xf32> to vector<2x32xf32>
    %244 = arith.mulf %241, %196 : vector<2x32xf32>
    %245 = arith.mulf %240, %242 : vector<2x32xf32>
    %246 = arith.addf %244, %245 : vector<2x32xf32>
    %247 = math.tanh %246 : vector<2x32xf32>
    %248 = arith.mulf %243, %247 : vector<2x32xf32>
    %c5 = arith.constant 5 : index
    %c0_71 = arith.constant 0 : index
    %c0_72 = arith.constant 0 : index
    %249 = vector.load %arg1[%c5, %c0_71, %c0_72] : memref<8x2x16xf32, #tpu.memory_space<vmem>>, vector<1x2x16xf32>
    %250 = vector.shape_cast %249 : vector<1x2x16xf32> to vector<2x16xf32>
    %cst_73 = arith.constant dense<0.000000e+00> : vector<2x128xf32>
    %251 = tpu.matmul %250, %9, %cst_73 {dimension_numbers = #tpu.dot_dimension_numbers<[1], [0], [0], [1], [0, 0, 1, 1], [], []>} : vector<2x16xf32>, vector<16x128xf32>, vector<2x128xf32> -> vector<2x128xf32>
    %cst_74 = arith.constant dense<0.000000e+00> : vector<2x128xf32>
    %252 = tpu.matmul %224, %11, %cst_74 {dimension_numbers = #tpu.dot_dimension_numbers<[1], [0], [0], [1], [0, 0, 1, 1], [], []>} : vector<2x32xf32>, vector<32x128xf32>, vector<2x128xf32> -> vector<2x128xf32>
    %253 = arith.addf %251, %252 : vector<2x128xf32>
    %254 = vector.broadcast %13 : vector<1x128xf32> to vector<2x128xf32>
    %255 = arith.addf %253, %254 : vector<2x128xf32>
    %256 = vector.broadcast %8 : vector<1x128xf32> to vector<2x128xf32>
    %257 = arith.mulf %255, %256 : vector<2x128xf32>
    %258 = math.tanh %257 : vector<2x128xf32>
    %cst_75 = arith.constant 5.000000e-01 : f32
    %259 = vector.broadcast %cst_75 : f32 to vector<2x128xf32>
    %260 = arith.mulf %259, %258 : vector<2x128xf32>
    %cst_76 = arith.constant 5.000000e-01 : f32
    %261 = vector.broadcast %cst_76 : f32 to vector<2x128xf32>
    %262 = arith.addf %260, %261 : vector<2x128xf32>
    %263 = vector.shape_cast %5 : vector<1x128xi1> to vector<1x128xi1>
    %264 = vector.broadcast %263 : vector<1x128xi1> to vector<2x128xi1>
    %265 = arith.select %264, %258, %262 : vector<2x128xi1>, vector<2x128xf32>
    %266 = vector.extract_strided_slice %265 {offsets = [0, 0], sizes = [2, 32], strides = [1, 1]} : vector<2x128xf32> to vector<2x32xf32>
    %267 = vector.extract_strided_slice %265 {offsets = [0, 32], sizes = [2, 32], strides = [1, 1]} : vector<2x128xf32> to vector<2x32xf32>
    %268 = vector.extract_strided_slice %265 {offsets = [0, 64], sizes = [2, 32], strides = [1, 1]} : vector<2x128xf32> to vector<2x32xf32>
    %269 = vector.extract_strided_slice %265 {offsets = [0, 96], sizes = [2, 32], strides = [1, 1]} : vector<2x128xf32> to vector<2x32xf32>
    %270 = arith.mulf %267, %222 : vector<2x32xf32>
    %271 = arith.mulf %266, %268 : vector<2x32xf32>
    %272 = arith.addf %270, %271 : vector<2x32xf32>
    %273 = math.tanh %272 : vector<2x32xf32>
    %274 = arith.mulf %269, %273 : vector<2x32xf32>
    %cst_77 = arith.constant dense<0.000000e+00> : vector<2x128xf32>
    %275 = tpu.matmul %224, %10, %cst_77 {dimension_numbers = #tpu.dot_dimension_numbers<[1], [0], [0], [1], [0, 0, 1, 1], [], []>} : vector<2x32xf32>, vector<32x128xf32>, vector<2x128xf32> -> vector<2x128xf32>
    %cst_78 = arith.constant dense<0.000000e+00> : vector<2x128xf32>
    %276 = tpu.matmul %248, %12, %cst_78 {dimension_numbers = #tpu.dot_dimension_numbers<[1], [0], [0], [1], [0, 0, 1, 1], [], []>} : vector<2x32xf32>, vector<32x128xf32>, vector<2x128xf32> -> vector<2x128xf32>
    %277 = arith.addf %275, %276 : vector<2x128xf32>
    %278 = vector.broadcast %14 : vector<1x128xf32> to vector<2x128xf32>
    %279 = arith.addf %277, %278 : vector<2x128xf32>
    %280 = vector.broadcast %8 : vector<1x128xf32> to vector<2x128xf32>
    %281 = arith.mulf %279, %280 : vector<2x128xf32>
    %282 = math.tanh %281 : vector<2x128xf32>
    %cst_79 = arith.constant 5.000000e-01 : f32
    %283 = vector.broadcast %cst_79 : f32 to vector<2x128xf32>
    %284 = arith.mulf %283, %282 : vector<2x128xf32>
    %cst_80 = arith.constant 5.000000e-01 : f32
    %285 = vector.broadcast %cst_80 : f32 to vector<2x128xf32>
    %286 = arith.addf %284, %285 : vector<2x128xf32>
    %287 = vector.shape_cast %5 : vector<1x128xi1> to vector<1x128xi1>
    %288 = vector.broadcast %287 : vector<1x128xi1> to vector<2x128xi1>
    %289 = arith.select %288, %282, %286 : vector<2x128xi1>, vector<2x128xf32>
    %290 = vector.extract_strided_slice %289 {offsets = [0, 0], sizes = [2, 32], strides = [1, 1]} : vector<2x128xf32> to vector<2x32xf32>
    %291 = vector.extract_strided_slice %289 {offsets = [0, 32], sizes = [2, 32], strides = [1, 1]} : vector<2x128xf32> to vector<2x32xf32>
    %292 = vector.extract_strided_slice %289 {offsets = [0, 64], sizes = [2, 32], strides = [1, 1]} : vector<2x128xf32> to vector<2x32xf32>
    %293 = vector.extract_strided_slice %289 {offsets = [0, 96], sizes = [2, 32], strides = [1, 1]} : vector<2x128xf32> to vector<2x32xf32>
    %294 = arith.mulf %291, %246 : vector<2x32xf32>
    %295 = arith.mulf %290, %292 : vector<2x32xf32>
    %296 = arith.addf %294, %295 : vector<2x32xf32>
    %297 = math.tanh %296 : vector<2x32xf32>
    %298 = arith.mulf %293, %297 : vector<2x32xf32>
    %c6 = arith.constant 6 : index
    %c0_81 = arith.constant 0 : index
    %c0_82 = arith.constant 0 : index
    %299 = vector.load %arg1[%c6, %c0_81, %c0_82] : memref<8x2x16xf32, #tpu.memory_space<vmem>>, vector<1x2x16xf32>
    %300 = vector.shape_cast %299 : vector<1x2x16xf32> to vector<2x16xf32>
    %cst_83 = arith.constant dense<0.000000e+00> : vector<2x128xf32>
    %301 = tpu.matmul %300, %9, %cst_83 {dimension_numbers = #tpu.dot_dimension_numbers<[1], [0], [0], [1], [0, 0, 1, 1], [], []>} : vector<2x16xf32>, vector<16x128xf32>, vector<2x128xf32> -> vector<2x128xf32>
    %cst_84 = arith.constant dense<0.000000e+00> : vector<2x128xf32>
    %302 = tpu.matmul %274, %11, %cst_84 {dimension_numbers = #tpu.dot_dimension_numbers<[1], [0], [0], [1], [0, 0, 1, 1], [], []>} : vector<2x32xf32>, vector<32x128xf32>, vector<2x128xf32> -> vector<2x128xf32>
    %303 = arith.addf %301, %302 : vector<2x128xf32>
    %304 = vector.broadcast %13 : vector<1x128xf32> to vector<2x128xf32>
    %305 = arith.addf %303, %304 : vector<2x128xf32>
    %306 = vector.broadcast %8 : vector<1x128xf32> to vector<2x128xf32>
    %307 = arith.mulf %305, %306 : vector<2x128xf32>
    %308 = math.tanh %307 : vector<2x128xf32>
    %cst_85 = arith.constant 5.000000e-01 : f32
    %309 = vector.broadcast %cst_85 : f32 to vector<2x128xf32>
    %310 = arith.mulf %309, %308 : vector<2x128xf32>
    %cst_86 = arith.constant 5.000000e-01 : f32
    %311 = vector.broadcast %cst_86 : f32 to vector<2x128xf32>
    %312 = arith.addf %310, %311 : vector<2x128xf32>
    %313 = vector.shape_cast %5 : vector<1x128xi1> to vector<1x128xi1>
    %314 = vector.broadcast %313 : vector<1x128xi1> to vector<2x128xi1>
    %315 = arith.select %314, %308, %312 : vector<2x128xi1>, vector<2x128xf32>
    %316 = vector.extract_strided_slice %315 {offsets = [0, 0], sizes = [2, 32], strides = [1, 1]} : vector<2x128xf32> to vector<2x32xf32>
    %317 = vector.extract_strided_slice %315 {offsets = [0, 32], sizes = [2, 32], strides = [1, 1]} : vector<2x128xf32> to vector<2x32xf32>
    %318 = vector.extract_strided_slice %315 {offsets = [0, 64], sizes = [2, 32], strides = [1, 1]} : vector<2x128xf32> to vector<2x32xf32>
    %319 = vector.extract_strided_slice %315 {offsets = [0, 96], sizes = [2, 32], strides = [1, 1]} : vector<2x128xf32> to vector<2x32xf32>
    %320 = arith.mulf %317, %272 : vector<2x32xf32>
    %321 = arith.mulf %316, %318 : vector<2x32xf32>
    %322 = arith.addf %320, %321 : vector<2x32xf32>
    %323 = math.tanh %322 : vector<2x32xf32>
    %324 = arith.mulf %319, %323 : vector<2x32xf32>
    %cst_87 = arith.constant dense<0.000000e+00> : vector<2x128xf32>
    %325 = tpu.matmul %274, %10, %cst_87 {dimension_numbers = #tpu.dot_dimension_numbers<[1], [0], [0], [1], [0, 0, 1, 1], [], []>} : vector<2x32xf32>, vector<32x128xf32>, vector<2x128xf32> -> vector<2x128xf32>
    %cst_88 = arith.constant dense<0.000000e+00> : vector<2x128xf32>
    %326 = tpu.matmul %298, %12, %cst_88 {dimension_numbers = #tpu.dot_dimension_numbers<[1], [0], [0], [1], [0, 0, 1, 1], [], []>} : vector<2x32xf32>, vector<32x128xf32>, vector<2x128xf32> -> vector<2x128xf32>
    %327 = arith.addf %325, %326 : vector<2x128xf32>
    %328 = vector.broadcast %14 : vector<1x128xf32> to vector<2x128xf32>
    %329 = arith.addf %327, %328 : vector<2x128xf32>
    %330 = vector.broadcast %8 : vector<1x128xf32> to vector<2x128xf32>
    %331 = arith.mulf %329, %330 : vector<2x128xf32>
    %332 = math.tanh %331 : vector<2x128xf32>
    %cst_89 = arith.constant 5.000000e-01 : f32
    %333 = vector.broadcast %cst_89 : f32 to vector<2x128xf32>
    %334 = arith.mulf %333, %332 : vector<2x128xf32>
    %cst_90 = arith.constant 5.000000e-01 : f32
    %335 = vector.broadcast %cst_90 : f32 to vector<2x128xf32>
    %336 = arith.addf %334, %335 : vector<2x128xf32>
    %337 = vector.shape_cast %5 : vector<1x128xi1> to vector<1x128xi1>
    %338 = vector.broadcast %337 : vector<1x128xi1> to vector<2x128xi1>
    %339 = arith.select %338, %332, %336 : vector<2x128xi1>, vector<2x128xf32>
    %340 = vector.extract_strided_slice %339 {offsets = [0, 0], sizes = [2, 32], strides = [1, 1]} : vector<2x128xf32> to vector<2x32xf32>
    %341 = vector.extract_strided_slice %339 {offsets = [0, 32], sizes = [2, 32], strides = [1, 1]} : vector<2x128xf32> to vector<2x32xf32>
    %342 = vector.extract_strided_slice %339 {offsets = [0, 64], sizes = [2, 32], strides = [1, 1]} : vector<2x128xf32> to vector<2x32xf32>
    %343 = vector.extract_strided_slice %339 {offsets = [0, 96], sizes = [2, 32], strides = [1, 1]} : vector<2x128xf32> to vector<2x32xf32>
    %344 = arith.mulf %341, %296 : vector<2x32xf32>
    %345 = arith.mulf %340, %342 : vector<2x32xf32>
    %346 = arith.addf %344, %345 : vector<2x32xf32>
    %347 = math.tanh %346 : vector<2x32xf32>
    %348 = arith.mulf %343, %347 : vector<2x32xf32>
    %c7 = arith.constant 7 : index
    %c0_91 = arith.constant 0 : index
    %c0_92 = arith.constant 0 : index
    %349 = vector.load %arg1[%c7, %c0_91, %c0_92] : memref<8x2x16xf32, #tpu.memory_space<vmem>>, vector<1x2x16xf32>
    %350 = vector.shape_cast %349 : vector<1x2x16xf32> to vector<2x16xf32>
    %cst_93 = arith.constant dense<0.000000e+00> : vector<2x128xf32>
    %351 = tpu.matmul %350, %9, %cst_93 {dimension_numbers = #tpu.dot_dimension_numbers<[1], [0], [0], [1], [0, 0, 1, 1], [], []>} : vector<2x16xf32>, vector<16x128xf32>, vector<2x128xf32> -> vector<2x128xf32>
    %cst_94 = arith.constant dense<0.000000e+00> : vector<2x128xf32>
    %352 = tpu.matmul %324, %11, %cst_94 {dimension_numbers = #tpu.dot_dimension_numbers<[1], [0], [0], [1], [0, 0, 1, 1], [], []>} : vector<2x32xf32>, vector<32x128xf32>, vector<2x128xf32> -> vector<2x128xf32>
    %353 = arith.addf %351, %352 : vector<2x128xf32>
    %354 = vector.broadcast %13 : vector<1x128xf32> to vector<2x128xf32>
    %355 = arith.addf %353, %354 : vector<2x128xf32>
    %356 = vector.broadcast %8 : vector<1x128xf32> to vector<2x128xf32>
    %357 = arith.mulf %355, %356 : vector<2x128xf32>
    %358 = math.tanh %357 : vector<2x128xf32>
    %cst_95 = arith.constant 5.000000e-01 : f32
    %359 = vector.broadcast %cst_95 : f32 to vector<2x128xf32>
    %360 = arith.mulf %359, %358 : vector<2x128xf32>
    %cst_96 = arith.constant 5.000000e-01 : f32
    %361 = vector.broadcast %cst_96 : f32 to vector<2x128xf32>
    %362 = arith.addf %360, %361 : vector<2x128xf32>
    %363 = vector.shape_cast %5 : vector<1x128xi1> to vector<1x128xi1>
    %364 = vector.broadcast %363 : vector<1x128xi1> to vector<2x128xi1>
    %365 = arith.select %364, %358, %362 : vector<2x128xi1>, vector<2x128xf32>
    %366 = vector.extract_strided_slice %365 {offsets = [0, 0], sizes = [2, 32], strides = [1, 1]} : vector<2x128xf32> to vector<2x32xf32>
    %367 = vector.extract_strided_slice %365 {offsets = [0, 32], sizes = [2, 32], strides = [1, 1]} : vector<2x128xf32> to vector<2x32xf32>
    %368 = vector.extract_strided_slice %365 {offsets = [0, 64], sizes = [2, 32], strides = [1, 1]} : vector<2x128xf32> to vector<2x32xf32>
    %369 = vector.extract_strided_slice %365 {offsets = [0, 96], sizes = [2, 32], strides = [1, 1]} : vector<2x128xf32> to vector<2x32xf32>
    %370 = arith.mulf %367, %322 : vector<2x32xf32>
    %371 = arith.mulf %366, %368 : vector<2x32xf32>
    %372 = arith.addf %370, %371 : vector<2x32xf32>
    %373 = math.tanh %372 : vector<2x32xf32>
    %374 = arith.mulf %369, %373 : vector<2x32xf32>
    %cst_97 = arith.constant dense<0.000000e+00> : vector<2x128xf32>
    %375 = tpu.matmul %324, %10, %cst_97 {dimension_numbers = #tpu.dot_dimension_numbers<[1], [0], [0], [1], [0, 0, 1, 1], [], []>} : vector<2x32xf32>, vector<32x128xf32>, vector<2x128xf32> -> vector<2x128xf32>
    %cst_98 = arith.constant dense<0.000000e+00> : vector<2x128xf32>
    %376 = tpu.matmul %348, %12, %cst_98 {dimension_numbers = #tpu.dot_dimension_numbers<[1], [0], [0], [1], [0, 0, 1, 1], [], []>} : vector<2x32xf32>, vector<32x128xf32>, vector<2x128xf32> -> vector<2x128xf32>
    %377 = arith.addf %375, %376 : vector<2x128xf32>
    %378 = vector.broadcast %14 : vector<1x128xf32> to vector<2x128xf32>
    %379 = arith.addf %377, %378 : vector<2x128xf32>
    %380 = vector.broadcast %8 : vector<1x128xf32> to vector<2x128xf32>
    %381 = arith.mulf %379, %380 : vector<2x128xf32>
    %382 = math.tanh %381 : vector<2x128xf32>
    %cst_99 = arith.constant 5.000000e-01 : f32
    %383 = vector.broadcast %cst_99 : f32 to vector<2x128xf32>
    %384 = arith.mulf %383, %382 : vector<2x128xf32>
    %cst_100 = arith.constant 5.000000e-01 : f32
    %385 = vector.broadcast %cst_100 : f32 to vector<2x128xf32>
    %386 = arith.addf %384, %385 : vector<2x128xf32>
    %387 = vector.shape_cast %5 : vector<1x128xi1> to vector<1x128xi1>
    %388 = vector.broadcast %387 : vector<1x128xi1> to vector<2x128xi1>
    %389 = arith.select %388, %382, %386 : vector<2x128xi1>, vector<2x128xf32>
    %390 = vector.extract_strided_slice %389 {offsets = [0, 0], sizes = [2, 32], strides = [1, 1]} : vector<2x128xf32> to vector<2x32xf32>
    %391 = vector.extract_strided_slice %389 {offsets = [0, 32], sizes = [2, 32], strides = [1, 1]} : vector<2x128xf32> to vector<2x32xf32>
    %392 = vector.extract_strided_slice %389 {offsets = [0, 64], sizes = [2, 32], strides = [1, 1]} : vector<2x128xf32> to vector<2x32xf32>
    %393 = vector.extract_strided_slice %389 {offsets = [0, 96], sizes = [2, 32], strides = [1, 1]} : vector<2x128xf32> to vector<2x32xf32>
    %394 = arith.mulf %391, %346 : vector<2x32xf32>
    %395 = arith.mulf %390, %392 : vector<2x32xf32>
    %396 = arith.addf %394, %395 : vector<2x32xf32>
    %397 = math.tanh %396 : vector<2x32xf32>
    %398 = arith.mulf %393, %397 : vector<2x32xf32>
    %cst_101 = arith.constant dense<0.000000e+00> : vector<2x128xf32>
    %399 = tpu.matmul %374, %10, %cst_101 {dimension_numbers = #tpu.dot_dimension_numbers<[1], [0], [0], [1], [0, 0, 1, 1], [], []>} : vector<2x32xf32>, vector<32x128xf32>, vector<2x128xf32> -> vector<2x128xf32>
    %cst_102 = arith.constant dense<0.000000e+00> : vector<2x128xf32>
    %400 = tpu.matmul %398, %12, %cst_102 {dimension_numbers = #tpu.dot_dimension_numbers<[1], [0], [0], [1], [0, 0, 1, 1], [], []>} : vector<2x32xf32>, vector<32x128xf32>, vector<2x128xf32> -> vector<2x128xf32>
    %401 = arith.addf %399, %400 : vector<2x128xf32>
    %402 = vector.broadcast %14 : vector<1x128xf32> to vector<2x128xf32>
    %403 = arith.addf %401, %402 : vector<2x128xf32>
    %404 = vector.broadcast %8 : vector<1x128xf32> to vector<2x128xf32>
    %405 = arith.mulf %403, %404 : vector<2x128xf32>
    %406 = math.tanh %405 : vector<2x128xf32>
    %cst_103 = arith.constant 5.000000e-01 : f32
    %407 = vector.broadcast %cst_103 : f32 to vector<2x128xf32>
    %408 = arith.mulf %407, %406 : vector<2x128xf32>
    %cst_104 = arith.constant 5.000000e-01 : f32
    %409 = vector.broadcast %cst_104 : f32 to vector<2x128xf32>
    %410 = arith.addf %408, %409 : vector<2x128xf32>
    %411 = vector.shape_cast %5 : vector<1x128xi1> to vector<1x128xi1>
    %412 = vector.broadcast %411 : vector<1x128xi1> to vector<2x128xi1>
    %413 = arith.select %412, %406, %410 : vector<2x128xi1>, vector<2x128xf32>
    %414 = vector.extract_strided_slice %413 {offsets = [0, 0], sizes = [2, 32], strides = [1, 1]} : vector<2x128xf32> to vector<2x32xf32>
    %415 = vector.extract_strided_slice %413 {offsets = [0, 32], sizes = [2, 32], strides = [1, 1]} : vector<2x128xf32> to vector<2x32xf32>
    %416 = vector.extract_strided_slice %413 {offsets = [0, 64], sizes = [2, 32], strides = [1, 1]} : vector<2x128xf32> to vector<2x32xf32>
    %417 = vector.extract_strided_slice %413 {offsets = [0, 96], sizes = [2, 32], strides = [1, 1]} : vector<2x128xf32> to vector<2x32xf32>
    %418 = arith.mulf %415, %396 : vector<2x32xf32>
    %419 = arith.mulf %414, %416 : vector<2x32xf32>
    %420 = arith.addf %418, %419 : vector<2x32xf32>
    %421 = math.tanh %420 : vector<2x32xf32>
    %422 = arith.mulf %417, %421 : vector<2x32xf32>
    %c0_105 = arith.constant 0 : index
    %c0_106 = arith.constant 0 : index
    %c0_107 = arith.constant 0 : index
    %423 = vector.load %arg15[%c0_105, %c0_106, %c0_107] : memref<2x2x32xf32, #tpu.memory_space<vmem>>, vector<1x2x32xf32>
    %424 = vector.shape_cast %423 : vector<1x2x32xf32> to vector<2x32xf32>
    %425 = vector.shape_cast %374 : vector<2x32xf32> to vector<1x2x32xf32>
    tpu.vector_store %arg15[%c0_105, %c0_106, %c0_107], %425 {strides = array<i32>} : memref<2x2x32xf32, #tpu.memory_space<vmem>>, vector<1x2x32xf32>,
    %c0_108 = arith.constant 0 : index
    %c0_109 = arith.constant 0 : index
    %c0_110 = arith.constant 0 : index
    %426 = vector.load %arg16[%c0_108, %c0_109, %c0_110] : memref<2x2x32xf32, #tpu.memory_space<vmem>>, vector<1x2x32xf32>
    %427 = vector.shape_cast %426 : vector<1x2x32xf32> to vector<2x32xf32>
    %428 = vector.shape_cast %372 : vector<2x32xf32> to vector<1x2x32xf32>
    tpu.vector_store %arg16[%c0_108, %c0_109, %c0_110], %428 {strides = array<i32>} : memref<2x2x32xf32, #tpu.memory_space<vmem>>, vector<1x2x32xf32>,
    %c1_111 = arith.constant 1 : index
    %c0_112 = arith.constant 0 : index
    %c0_113 = arith.constant 0 : index
    %429 = vector.load %arg15[%c1_111, %c0_112, %c0_113] : memref<2x2x32xf32, #tpu.memory_space<vmem>>, vector<1x2x32xf32>
    %430 = vector.shape_cast %429 : vector<1x2x32xf32> to vector<2x32xf32>
    %431 = vector.shape_cast %422 : vector<2x32xf32> to vector<1x2x32xf32>
    tpu.vector_store %arg15[%c1_111, %c0_112, %c0_113], %431 {strides = array<i32>} : memref<2x2x32xf32, #tpu.memory_space<vmem>>, vector<1x2x32xf32>,
    %c1_114 = arith.constant 1 : index
    %c0_115 = arith.constant 0 : index
    %c0_116 = arith.constant 0 : index
    %432 = vector.load %arg16[%c1_114, %c0_115, %c0_116] : memref<2x2x32xf32, #tpu.memory_space<vmem>>, vector<1x2x32xf32>
    %433 = vector.shape_cast %432 : vector<1x2x32xf32> to vector<2x32xf32>
    %434 = vector.shape_cast %420 : vector<2x32xf32> to vector<1x2x32xf32>
    tpu.vector_store %arg16[%c1_114, %c0_115, %c0_116], %434 {strides = array<i32>} : memref<2x2x32xf32, #tpu.memory_space<vmem>>, vector<1x2x32xf32>,
    %435 = vector.shape_cast %98 : vector<2x32xf32> to vector<2x1x32xf32>
    %436 = vector.shape_cast %148 : vector<2x32xf32> to vector<2x1x32xf32>
    %437 = vector.shape_cast %198 : vector<2x32xf32> to vector<2x1x32xf32>
    %438 = vector.shape_cast %248 : vector<2x32xf32> to vector<2x1x32xf32>
    %439 = vector.shape_cast %298 : vector<2x32xf32> to vector<2x1x32xf32>
    %440 = vector.shape_cast %348 : vector<2x32xf32> to vector<2x1x32xf32>
    %441 = vector.shape_cast %398 : vector<2x32xf32> to vector<2x1x32xf32>
    %442 = vector.shape_cast %422 : vector<2x32xf32> to vector<2x1x32xf32>
    %443 = tpu.concatenate %435, %436, %437, %438, %439, %440, %441, %442 in 1 : vector<2x1x32xf32>, vector<2x1x32xf32>, vector<2x1x32xf32>, vector<2x1x32xf32>, vector<2x1x32xf32>, vector<2x1x32xf32>, vector<2x1x32xf32>, vector<2x1x32xf32> -> vector<2x8x32xf32>
    %c0_117 = arith.constant 0 : index
    %c0_118 = arith.constant 0 : index
    %c0_119 = arith.constant 0 : index
    %444 = vector.load %arg5[%c0_117, %c0_118, %c0_119] : memref<2x32x10xf32, #tpu.memory_space<vmem>>, vector<2x32x10xf32>
    "tpu.trace_start"() <{level = 10 : i32, message = "bth,bhs->bts"}> : () -> ()
    %cst_120 = arith.constant dense<0.000000e+00> : vector<2x8x10xf32>
    %445 = tpu.matmul %443, %444, %cst_120 {dimension_numbers = #tpu.dot_dimension_numbers<[2], [1], [1], [2], [0, 0, 0, 1, 1, 2], [0], [0]>} : vector<2x8x32xf32>, vector<2x32x10xf32>, vector<2x8x10xf32> -> vector<2x8x10xf32>
    "tpu.trace_stop"() : () -> ()
    %446 = tpu.iota {dimensions = array<i32: 2>} : vector<2x8x10xi32>
    %c0_121 = arith.constant 0 : index
    %c0_122 = arith.constant 0 : index
    %c0_123 = arith.constant 0 : index
    %447 = vector.load %arg0[%c0_121, %c0_122, %c0_123] : memref<2x1x1xi32, #tpu.memory_space<vmem>>, vector<2x1x1xi32>
    %448 = vector.broadcast %447 : vector<2x1x1xi32> to vector<2x8x10xi32>
    %449 = arith.cmpi slt, %446, %448 : vector<2x8x10xi32>
    %cst_124 = arith.constant -1.000000e+30 : f32
    %450 = vector.broadcast %cst_124 : f32 to vector<2x8x10xf32>
    %451 = arith.select %449, %445, %450 : vector<2x8x10xi1>, vector<2x8x10xf32>
    %cst_125 = arith.constant dense<0xFF800000> : vector<2x8xf32>
    %452 = vector.multi_reduction <maximumf>, %451, %cst_125 [2] : vector<2x8x10xf32> to vector<2x8xf32>
    %453 = vector.shape_cast %452 : vector<2x8xf32> to vector<2x8x1xf32>
    %454 = vector.broadcast %453 : vector<2x8x1xf32> to vector<2x8x10xf32>
    %455 = arith.subf %451, %454 : vector<2x8x10xf32>
    %456 = math.exp %455 : vector<2x8x10xf32>
    %cst_126 = arith.constant dense<0.000000e+00> : vector<2x8xf32>
    %457 = vector.multi_reduction <add>, %456, %cst_126 [2] : vector<2x8x10xf32> to vector<2x8xf32>
    %458 = vector.shape_cast %457 : vector<2x8xf32> to vector<2x8x1xf32>
    %459 = tpu.reciprocal %458 {approx = true} : vector<2x8x1xf32> -> vector<2x8x1xf32>
    %460 = arith.mulf %458, %459 : vector<2x8x1xf32>
    %cst_127 = arith.constant 2.000000e+00 : f32
    %461 = vector.broadcast %cst_127 : f32 to vector<2x8x1xf32>
    %462 = arith.subf %461, %460 : vector<2x8x1xf32>
    %463 = arith.mulf %459, %462 : vector<2x8x1xf32>
    %464 = vector.broadcast %463 : vector<2x8x1xf32> to vector<2x8x10xf32>
    %465 = arith.mulf %456, %464 : vector<2x8x10xf32>
    %c0_128 = arith.constant 0 : index
    %c0_129 = arith.constant 0 : index
    %c0_130 = arith.constant 0 : index
    %466 = vector.load %arg4[%c0_128, %c0_129, %c0_130] : memref<2x10x32xf32, #tpu.memory_space<vmem>>, vector<2x10x32xf32>
    "tpu.trace_start"() <{level = 10 : i32, message = "bts,bsh->bth"}> : () -> ()
    %cst_131 = arith.constant dense<0.000000e+00> : vector<2x8x32xf32>
    %467 = tpu.matmul %465, %466, %cst_131 {dimension_numbers = #tpu.dot_dimension_numbers<[2], [1], [1], [2], [0, 0, 0, 1, 1, 2], [0], [0]>} : vector<2x8x10xf32>, vector<2x10x32xf32>, vector<2x8x32xf32> -> vector<2x8x32xf32>
    "tpu.trace_stop"() : () -> ()
    %468 = vector.shape_cast %467 : vector<2x8x32xf32> to vector<16x32xf32>
    %469 = vector.shape_cast %443 : vector<2x8x32xf32> to vector<16x32xf32>
    %470 = tpu.concatenate %468, %469 in 1 : vector<16x32xf32>, vector<16x32xf32> -> vector<16x64xf32>
    %c0_132 = arith.constant 0 : index
    %c0_133 = arith.constant 0 : index
    %471 = vector.load %arg12[%c0_132, %c0_133] : memref<64x32xf32, #tpu.memory_space<vmem>>, vector<64x32xf32>
    %cst_134 = arith.constant dense<0.000000e+00> : vector<16x32xf32>
    %472 = tpu.matmul %470, %471, %cst_134 {dimension_numbers = #tpu.dot_dimension_numbers<[1], [0], [0], [1], [0, 0, 1, 1], [], []>} : vector<16x64xf32>, vector<64x32xf32>, vector<16x32xf32> -> vector<16x32xf32>
    %473 = math.tanh %472 : vector<16x32xf32>
    %474 = vector.shape_cast %473 : vector<16x32xf32> to vector<2x8x32xf32>
    %c0_135 = arith.constant 0 : index
    %c0_136 = arith.constant 0 : index
    %c0_137 = arith.constant 0 : index
    %475 = vector.load %arg13[%c0_135, %c0_136, %c0_137] : memref<2x8x32xf32, #tpu.memory_space<vmem>>, vector<2x8x32xf32>
    tpu.vector_store %arg13[%c0_135, %c0_136, %c0_137], %474 {strides = array<i32>} : memref<2x8x32xf32, #tpu.memory_space<vmem>>, vector<2x8x32xf32>,
    %c0_138 = arith.constant 0 : index
    %c0_139 = arith.constant 0 : index
    %c0_140 = arith.constant 0 : index
    %476 = vector.load %arg14[%c0_138, %c0_139, %c0_140] : memref<2x8x10xf32, #tpu.memory_space<vmem>>, vector<2x8x10xf32>
    tpu.vector_store %arg14[%c0_138, %c0_139, %c0_140], %465 {strides = array<i32>} : memref<2x8x10xf32, #tpu.memory_space<vmem>>, vector<2x8x10xf32>,
    return
  }
}

</mosaic_0001>

<llo_original>
// kernel: rnn_decoder_forward.1
$region0: #{rnn_decoder_forward.1}
  #allocation0 [shape = 'u32[]', space=smem, size = 0x4, offset = 0x4, fixed_abs, tag = 'smem constant byte address 0x4 - core index']
  #allocation1 [shape = 'u32[144,128]{1,0:T(1,128)}', space=vmem, size = 0x12000, scoped, tag = 'internal scratch']
  %s0 = inlined_call_operand.vmem [shape: s32[2,1,1], index: 0, kind: input, shape index: {}]
  %s1 = inlined_call_operand.vmem [shape: f32[8,2,16], index: 1, kind: input, shape index: {}]
  %s2 = inlined_call_operand.vmem [shape: f32[2,2,32], index: 2, kind: input, shape index: {}]
  %s3 = inlined_call_operand.vmem [shape: f32[2,2,32], index: 3, kind: input, shape index: {}]
  %s4 = inlined_call_operand.vmem [shape: f32[2,10,32], index: 4, kind: input, shape index: {}]
  %s5 = inlined_call_operand.vmem [shape: f32[2,32,10], index: 5, kind: input, shape index: {}]
  %s6 = inlined_call_operand.vmem [shape: f32[16,128], index: 6, kind: input, shape index: {}]
  %s7 = inlined_call_operand.vmem [shape: f32[32,128], index: 7, kind: input, shape index: {}]
  %s8 = inlined_call_operand.vmem [shape: f32[1,128], index: 8, kind: input, shape index: {}]
  %s9 = inlined_call_operand.vmem [shape: f32[32,128], index: 9, kind: input, shape index: {}]
  %s10 = inlined_call_operand.vmem [shape: f32[32,128], index: 10, kind: input, shape index: {}]
  %s11 = inlined_call_operand.vmem [shape: f32[1,128], index: 11, kind: input, shape index: {}]
  %s12 = inlined_call_operand.vmem [shape: f32[64,32], index: 12, kind: input, shape index: {}]
  %s13 = inlined_call_operand.vmem [shape: f32[2,8,32], index: 13, kind: output, shape index: {0}]
  %s14 = inlined_call_operand.vmem [shape: f32[2,8,10], index: 14, kind: output, shape index: {1}]
  %s15 = inlined_call_operand.hbm [shape: f32[2,2,32], index: 15, kind: output, shape index: {2}]
  %s16 = inlined_call_operand.hbm [shape: f32[2,2,32], index: 16, kind: output, shape index: {3}]
  %17 = xla_tuple %s13, %s14, %s15, %s16
  %s18 = sld [smem:[#allocation0]]
  $region86: #{rnn_decoder_forward.1} parent=0
    _
  %s20 = ssub.s32 1, %s18
  %s21 = scalar_select 0, %s20, %s18
  $region1: #{rnn_decoder_forward.1} parent=0
    #allocation2 [shape = 'u8[2048]{0}', space=vmem, size = 0x800, scoped, tag = 'output window, operand 2, single buffered']
    #allocation3 [shape = 's32[1]{0}', space=sflag, size = 0x4, scoped, tag = 'scoped memory for rnn_decoder_forward.1']
    #allocation4 [shape = 'u8[2048]{0}', space=vmem, size = 0x800, scoped, tag = 'output window, operand 3, single buffered']
    #allocation5 [shape = 's32[1]{0}', space=sflag, size = 0x4, scoped, tag = 'scoped memory for rnn_decoder_forward.1']
    %22 = vsyncpa [#allocation3], 0
    %23 = vsyncpa [#allocation5], 0
    // Predicated region
    $region2: #{rnn_decoder_forward.1} parent=1 // pred_check
      _
    $region3: #{rnn_decoder_forward.1} parent=1 // pred_check_branch
      %25 = sbr.rel (0) target = $region5
    $region4: #{rnn_decoder_forward.1} parent=1 // pred_region
      _
    $region5: #{rnn_decoder_forward.1} parent=1 // pred_fallthru
      _
    // Predicated region
    $region6: #{rnn_decoder_forward.1} parent=1 // pred_check
      _
    $region7: #{rnn_decoder_forward.1} parent=1 // pred_check_branch
      %27 = sbr.rel (0) target = $region9
    $region8: #{rnn_decoder_forward.1} parent=1 // pred_region
      _
    $region9: #{rnn_decoder_forward.1} parent=1 // pred_fallthru
      _
    // Predicated region
    $region10: #{rnn_decoder_forward.1} parent=1 // pred_check
      _
    $region11: #{rnn_decoder_forward.1} parent=1 // pred_check_branch
      %29 = sbr.rel (0) target = $region13
    $region12: #{rnn_decoder_forward.1} parent=1 // pred_region
      _
    $region13: #{rnn_decoder_forward.1} parent=1 // pred_fallthru
      _
    // Predicated region
    $region14: #{rnn_decoder_forward.1} parent=1 // pred_check
      _
    $region15: #{rnn_decoder_forward.1} parent=1 // pred_check_branch
      %31 = sbr.rel (0) target = $region17
    $region16: #{rnn_decoder_forward.1} parent=1 // pred_region
      _
    $region17: #{rnn_decoder_forward.1} parent=1 // pred_fallthru
      _
    // Predicated region
    $region18: #{rnn_decoder_forward.1} parent=1 // pred_check
      _
    $region19: #{rnn_decoder_forward.1} parent=1 // pred_check_branch
      %33 = sbr.rel (0) target = $region21
    $region20: #{rnn_decoder_forward.1} parent=1 // pred_region
      _
    $region21: #{rnn_decoder_forward.1} parent=1 // pred_fallthru
      _
    // Predicated region
    $region22: #{rnn_decoder_forward.1} parent=1 // pred_check
      _
    $region23: #{rnn_decoder_forward.1} parent=1 // pred_check_branch
      %35 = sbr.rel (0) target = $region25
    $region24: #{rnn_decoder_forward.1} parent=1 // pred_region
      _
    $region25: #{rnn_decoder_forward.1} parent=1 // pred_fallthru
      _
    // Predicated region
    $region26: #{rnn_decoder_forward.1} parent=1 // pred_check
      _
    $region27: #{rnn_decoder_forward.1} parent=1 // pred_check_branch
      %37 = sbr.rel (0) target = $region29
    $region28: #{rnn_decoder_forward.1} parent=1 // pred_region
      _
    $region29: #{rnn_decoder_forward.1} parent=1 // pred_fallthru
      _
    // Predicated region
    $region30: #{rnn_decoder_forward.1} parent=1 // pred_check
      _
    $region31: #{rnn_decoder_forward.1} parent=1 // pred_check_branch
      %39 = sbr.rel (0) target = $region33
    $region32: #{rnn_decoder_forward.1} parent=1 // pred_region
      _
    $region33: #{rnn_decoder_forward.1} parent=1 // pred_fallthru
      _
    // Predicated region
    $region34: #{rnn_decoder_forward.1} parent=1 // pred_check
      _
    $region35: #{rnn_decoder_forward.1} parent=1 // pred_check_branch
      %41 = sbr.rel (0) target = $region37
    $region36: #{rnn_decoder_forward.1} parent=1 // pred_region
      _
    $region37: #{rnn_decoder_forward.1} parent=1 // pred_fallthru
      _
    // Predicated region
    $region38: #{rnn_decoder_forward.1} parent=1 // pred_check
      _
    $region39: #{rnn_decoder_forward.1} parent=1 // pred_check_branch
      %43 = sbr.rel (0) target = $region41
    $region40: #{rnn_decoder_forward.1} parent=1 // pred_region
      _
    $region41: #{rnn_decoder_forward.1} parent=1 // pred_fallthru
      _
    // Predicated region
    $region42: #{rnn_decoder_forward.1} parent=1 // pred_check
      _
    $region43: #{rnn_decoder_forward.1} parent=1 // pred_check_branch
      %45 = sbr.rel (0) target = $region45
    $region44: #{rnn_decoder_forward.1} parent=1 // pred_region
      _
    $region45: #{rnn_decoder_forward.1} parent=1 // pred_fallthru
      _
    // Predicated region
    $region46: #{rnn_decoder_forward.1} parent=1 // pred_check
      _
    $region47: #{rnn_decoder_forward.1} parent=1 // pred_check_branch
      %47 = sbr.rel (0) target = $region49
    $region48: #{rnn_decoder_forward.1} parent=1 // pred_region
      _
    $region49: #{rnn_decoder_forward.1} parent=1 // pred_fallthru
      _
    // Predicated region
    $region50: #{rnn_decoder_forward.1} parent=1 // pred_check
      _
    $region51: #{rnn_decoder_forward.1} parent=1 // pred_check_branch
      %49 = sbr.rel (0) target = $region53
    $region52: #{rnn_decoder_forward.1} parent=1 // pred_region
      _
    $region53: #{rnn_decoder_forward.1} parent=1 // pred_fallthru
      _
    %v50 = vlaneseq
    %v51 = vand.u32 %v50, 127
    %vm52 = vcmp.ge.s32.totalorder %v51, 64
    %vm53 = vcmp.lt.s32.totalorder %v51, 96
    %vm54 = vmand %vm52, %vm53
    %v55 = vsel %vm54, 1.0, 0.5
    %v56 = vld [vmem:[%s6] sm:$0xff]
    %v57 = vld [vmem:[%s6 + $0x8] sm:$0xff]
    %v58 = vld [vmem:[%s9] sm:$0xff]
    %v59 = vld [vmem:[%s9 + $0x8] sm:$0xff]
    %v60 = vld [vmem:[%s9 + $0x10] sm:$0xff]
    %v61 = vld [vmem:[%s9 + $0x18] sm:$0xff]
    %v62 = vld [vmem:[%s7] sm:$0xff]
    %v63 = vld [vmem:[%s7 + $0x8] sm:$0xff]
    %v64 = vld [vmem:[%s7 + $0x10] sm:$0xff]
    %v65 = vld [vmem:[%s7 + $0x18] sm:$0xff]
    %v66 = vld [vmem:[%s10] sm:$0xff]
    %v67 = vld [vmem:[%s10 + $0x8] sm:$0xff]
    %v68 = vld [vmem:[%s10 + $0x10] sm:$0xff]
    %v69 = vld [vmem:[%s10 + $0x18] sm:$0xff]
    %v70 = vld [vmem:[%s8] sm:$0x1]
    %v71 = vld [vmem:[%s11] sm:$0x1]
    %v72 = vld [vmem:[%s2] sm:$0x3]
    %s73 = scalar_lea.vmem %s2, 2
    %v74 = vld [vmem:[%s73] sm:$0x3]
    %v75 = vld [vmem:[%s3] sm:$0x3]
    %s76 = scalar_lea.vmem %s3, 2
    %v77 = vld [vmem:[%s76] sm:$0x3]
    %v78 = vld [vmem:[%s1] sm:$0x3]
    %vm79 = vcmask 261120
    %v81 = vsel %vm79, %v72, 0
    %83 = vmatprep.subr.mxu0 0.0
    %84 = vmatpush1.msra.mxu0 %v62
    %85 = vmatprep.subr.mxu0 0.0
    %86 = vmatpush1.msra.mxu0 %v63
    %87 = vmatprep.subr.mxu0 0.0
    %88 = vmatpush1.msra.mxu0 %v64
    %89 = vmatprep.subr.mxu0 0.0
    %90 = vmatpush1.msra.mxu0 %v65
    %91 = vmatprep.subr.mxu0 0.0
    %92 = vmatpush1.msra.mxu0 0.0
    %93 = vmatprep.subr.mxu0 0.0
    %94 = vmatpush1.msra.mxu0 0.0
    %95 = vmatprep.subr.mxu0 0.0
    %96 = vmatpush1.msra.mxu0 0.0
    %97 = vmatprep.subr.mxu0 0.0
    %98 = vmatpush1.msra.mxu0 0.0
    %99 = vmatprep.subr.mxu0 0.0
    %100 = vmatpush1.msra.mxu0 0.0
    %101 = vmatprep.subr.mxu0 0.0
    %102 = vmatpush1.msra.mxu0 0.0
    %103 = vmatprep.subr.mxu0 0.0
    %104 = vmatpush1.msra.mxu0 0.0
    %105 = vmatprep.subr.mxu0 0.0
    %106 = vmatpush1.msra.mxu0 0.0
    %107 = vmatprep.subr.mxu0 0.0
    %108 = vmatpush1.msra.mxu0 0.0
    %109 = vmatprep.subr.mxu0 0.0
    %110 = vmatpush1.msra.mxu0 0.0
    %111 = vmatprep.subr.mxu0 0.0
    %112 = vmatpush1.msra.mxu0 0.0
    %113 = vmatprep.subr.mxu0 0.0
    %114 = vmatpush1.msra.mxu0 0.0
    %115 = vmatprep.subr.mxu0 0.0
    %116 = vmatpush1.msra.mxu0 0.0
    %117 = vmatprep.subr.mxu0 0.0
    %118 = vmatpush1.msra.mxu0 0.0
    %119 = vmatprep.subr.mxu0 0.0
    %120 = vmatpush1.msra.mxu0 0.0
    %121 = vmatprep.subr.mxu0 0.0
    %122 = vmatpush1.msra.mxu0 0.0
    %123 = vmatprep.subr.mxu0 0.0
    %124 = vmatpush1.msra.mxu0 0.0
    %125 = vmatprep.subr.mxu0 0.0
    %126 = vmatpush1.msra.mxu0 0.0
    %127 = vmatprep.subr.mxu0 0.0
    %128 = vmatpush1.msra.mxu0 0.0
    %129 = vmatprep.subr.mxu0 0.0
    %130 = vmatpush1.msra.mxu0 0.0
    %131 = vmatprep.subr.mxu0 0.0
    %132 = vmatpush1.msra.mxu0 0.0
    %133 = vmatprep.subr.mxu0 0.0
    %134 = vmatpush1.msra.mxu0 0.0
    %135 = vmatprep.subr.mxu0 0.0
    %136 = vmatpush1.msra.mxu0 0.0
    %137 = vmatprep.subr.mxu0 0.0
    %138 = vmatpush1.msra.mxu0 0.0
    %139 = vmatprep.subr.mxu0 0.0
    %140 = vmatpush1.msra.mxu0 0.0
    %141 = vmatprep.subr.mxu0 0.0
    %142 = vmatpush1.msra.mxu0 0.0
    %143 = vmatprep.subr.mxu0 0.0
    %144 = vmatpush1.msra.mxu0 0.0
    %145 = vmatprep.subr.mxu0 0.0
    %146 = vmatpush1.msra.mxu0 0.0
    %147 = vmatprep.mubr.f32.mxu0 0.0
    %148 = vmatmul.mubr.f32.gmra.mrb[0].mxu0 %v81
    %v149 = vpop.f32.mrb[0].mxu0
    %v150 = vadd.f32 0.0, %v149
    %v151 = vpop.f32.mrb[0].mxu0
    %152 = vdwg.mxu0
    %vm153 = vcmask 130048
    %v155 = vsel %vm153, %v78, 0
    %157 = vmatprep.subr.mxu0 0.0
    %158 = vmatpush1.msra.mxu0 %v56
    %159 = vmatprep.subr.mxu0 0.0
    %160 = vmatpush1.msra.mxu0 %v57
    %161 = vmatprep.subr.mxu0 0.0
    %162 = vmatpush1.msra.mxu0 0.0
    %163 = vmatprep.subr.mxu0 0.0
    %164 = vmatpush1.msra.mxu0 0.0
    %165 = vmatprep.subr.mxu0 0.0
    %166 = vmatpush1.msra.mxu0 0.0
    %167 = vmatprep.subr.mxu0 0.0
    %168 = vmatpush1.msra.mxu0 0.0
    %169 = vmatprep.subr.mxu0 0.0
    %170 = vmatpush1.msra.mxu0 0.0
    %171 = vmatprep.subr.mxu0 0.0
    %172 = vmatpush1.msra.mxu0 0.0
    %173 = vmatprep.subr.mxu0 0.0
    %174 = vmatpush1.msra.mxu0 0.0
    %175 = vmatprep.subr.mxu0 0.0
    %176 = vmatpush1.msra.mxu0 0.0
    %177 = vmatprep.subr.mxu0 0.0
    %178 = vmatpush1.msra.mxu0 0.0
    %179 = vmatprep.subr.mxu0 0.0
    %180 = vmatpush1.msra.mxu0 0.0
    %181 = vmatprep.subr.mxu0 0.0
    %182 = vmatpush1.msra.mxu0 0.0
    %183 = vmatprep.subr.mxu0 0.0
    %184 = vmatpush1.msra.mxu0 0.0
    %185 = vmatprep.subr.mxu0 0.0
    %186 = vmatpush1.msra.mxu0 0.0
    %187 = vmatprep.subr.mxu0 0.0
    %188 = vmatpush1.msra.mxu0 0.0
    %189 = vmatprep.subr.mxu0 0.0
    %190 = vmatpush1.msra.mxu0 0.0
    %191 = vmatprep.subr.mxu0 0.0
    %192 = vmatpush1.msra.mxu0 0.0
    %193 = vmatprep.subr.mxu0 0.0
    %194 = vmatpush1.msra.mxu0 0.0
    %195 = vmatprep.subr.mxu0 0.0
    %196 = vmatpush1.msra.mxu0 0.0
    %197 = vmatprep.subr.mxu0 0.0
    %198 = vmatpush1.msra.mxu0 0.0
    %199 = vmatprep.subr.mxu0 0.0
    %200 = vmatpush1.msra.mxu0 0.0
    %201 = vmatprep.subr.mxu0 0.0
    %202 = vmatpush1.msra.mxu0 0.0
    %203 = vmatprep.subr.mxu0 0.0
    %204 = vmatpush1.msra.mxu0 0.0
    %205 = vmatprep.subr.mxu0 0.0
    %206 = vmatpush1.msra.mxu0 0.0
    %207 = vmatprep.subr.mxu0 0.0
    %208 = vmatpush1.msra.mxu0 0.0
    %209 = vmatprep.subr.mxu0 0.0
    %210 = vmatpush1.msra.mxu0 0.0
    %211 = vmatprep.subr.mxu0 0.0
    %212 = vmatpush1.msra.mxu0 0.0
    %213 = vmatprep.subr.mxu0 0.0
    %214 = vmatpush1.msra.mxu0 0.0
    %215 = vmatprep.subr.mxu0 0.0
    %216 = vmatpush1.msra.mxu0 0.0
    %217 = vmatprep.subr.mxu0 0.0
    %218 = vmatpush1.msra.mxu0 0.0
    %219 = vmatprep.subr.mxu0 0.0
    %220 = vmatpush1.msra.mxu0 0.0
    %221 = vmatprep.mubr.f32.mxu0 0.0
    %222 = vmatmul.mubr.f32.gmra.mrb[0].mxu0 %v155
    %v223 = vpop.f32.mrb[0].mxu0
    %v224 = vadd.f32 %v150, %v223
    %v225 = vpop.f32.mrb[0].mxu0
    %226 = vdwg.mxu0
    %v228 = vlaneseq
    %v229 = vshrl.u32 %v228, 7
    %v230 = vsub.s32 0, %v229
    %v231 = vrot.slane %v70, %v230
    %v233 = vadd.f32 %v224, %v231
    %v234 = vmul.f32 %v233, %v55
    %v235 = vtanh.pop %v234
    %v236 = vmul.f32 %v235, 0.5
    %v237 = vadd.f32 %v236, 0.5
    %v238 = vsel %vm54, 1, 0
    %vm239 = vcmp.eq.s32.totalorder %v238, 1
    %v240 = vsel %vm239, %v235, %v237
    %242 = vrot.lane.b32.xlu0 %v75, 32
    %v243 = vpop.permute.xlu0 %242
    %v245 = vmul.f32 %v240, %v243
    %247 = vrot.lane.b32.xlu0 %v240, 64
    %v248 = vpop.permute.xlu0 %247
    %v250 = vmul.f32 %v240, %v248
    %252 = vrot.lane.b32.xlu0 %v250, 32
    %v253 = vpop.permute.xlu0 %252
    %v255 = vadd.f32 %v245, %v253
    %v256 = vtanh.pop %v255
    %258 = vrot.lane.b32.xlu0 %v256, 64
    %v259 = vpop.permute.xlu0 %258
    %v261 = vmul.f32 %v240, %v259
    %s262 = scalar_lea.vmem %s1, 2
    %v263 = vld [vmem:[%s262] sm:$0x3]
    %265 = vrot.lane.b32.xlu0 %v261, 32
    %v266 = vpop.permute.xlu0 %265
    %v267 = vsel %vm79, %v266, 0
    %269 = vmatprep.subr.mxu0 0.0
    %270 = vmatpush1.msra.mxu0 %v62
    %271 = vmatprep.subr.mxu0 0.0
    %272 = vmatpush1.msra.mxu0 %v63
    %273 = vmatprep.subr.mxu0 0.0
    %274 = vmatpush1.msra.mxu0 %v64
    %275 = vmatprep.subr.mxu0 0.0
    %276 = vmatpush1.msra.mxu0 %v65
    %277 = vmatprep.subr.mxu0 0.0
    %278 = vmatpush1.msra.mxu0 0.0
    %279 = vmatprep.subr.mxu0 0.0
    %280 = vmatpush1.msra.mxu0 0.0
    %281 = vmatprep.subr.mxu0 0.0
    %282 = vmatpush1.msra.mxu0 0.0
    %283 = vmatprep.subr.mxu0 0.0
    %284 = vmatpush1.msra.mxu0 0.0
    %285 = vmatprep.subr.mxu0 0.0
    %286 = vmatpush1.msra.mxu0 0.0
    %287 = vmatprep.subr.mxu0 0.0
    %288 = vmatpush1.msra.mxu0 0.0
    %289 = vmatprep.subr.mxu0 0.0
    %290 = vmatpush1.msra.mxu0 0.0
    %291 = vmatprep.subr.mxu0 0.0
    %292 = vmatpush1.msra.mxu0 0.0
    %293 = vmatprep.subr.mxu0 0.0
    %294 = vmatpush1.msra.mxu0 0.0
    %295 = vmatprep.subr.mxu0 0.0
    %296 = vmatpush1.msra.mxu0 0.0
    %297 = vmatprep.subr.mxu0 0.0
    %298 = vmatpush1.msra.mxu0 0.0
    %299 = vmatprep.subr.mxu0 0.0
    %300 = vmatpush1.msra.mxu0 0.0
    %301 = vmatprep.subr.mxu0 0.0
    %302 = vmatpush1.msra.mxu0 0.0
    %303 = vmatprep.subr.mxu0 0.0
    %304 = vmatpush1.msra.mxu0 0.0
    %305 = vmatprep.subr.mxu0 0.0
    %306 = vmatpush1.msra.mxu0 0.0
    %307 = vmatprep.subr.mxu0 0.0
    %308 = vmatpush1.msra.mxu0 0.0
    %309 = vmatprep.subr.mxu0 0.0
    %310 = vmatpush1.msra.mxu0 0.0
    %311 = vmatprep.subr.mxu0 0.0
    %312 = vmatpush1.msra.mxu0 0.0
    %313 = vmatprep.subr.mxu0 0.0
    %314 = vmatpush1.msra.mxu0 0.0
    %315 = vmatprep.subr.mxu0 0.0
    %316 = vmatpush1.msra.mxu0 0.0
    %317 = vmatprep.subr.mxu0 0.0
    %318 = vmatpush1.msra.mxu0 0.0
    %319 = vmatprep.subr.mxu0 0.0
    %320 = vmatpush1.msra.mxu0 0.0
    %321 = vmatprep.subr.mxu0 0.0
    %322 = vmatpush1.msra.mxu0 0.0
    %323 = vmatprep.subr.mxu0 0.0
    %324 = vmatpush1.msra.mxu0 0.0
    %325 = vmatprep.subr.mxu0 0.0
    %326 = vmatpush1.msra.mxu0 0.0
    %327 = vmatprep.subr.mxu0 0.0
    %328 = vmatpush1.msra.mxu0 0.0
    %329 = vmatprep.subr.mxu0 0.0
    %330 = vmatpush1.msra.mxu0 0.0
    %331 = vmatprep.subr.mxu0 0.0
    %332 = vmatpush1.msra.mxu0 0.0
    %333 = vmatprep.mubr.f32.mxu0 0.0
    %334 = vmatmul.mubr.f32.gmra.mrb[0].mxu0 %v267
    %v335 = vpop.f32.mrb[0].mxu0
    %v336 = vadd.f32 0.0, %v335
    %v337 = vpop.f32.mrb[0].mxu0
    %338 = vdwg.mxu0
    %v340 = vsel %vm153, %v263, 0
    %342 = vmatprep.subr.mxu0 0.0
    %343 = vmatpush1.msra.mxu0 %v56
    %344 = vmatprep.subr.mxu0 0.0
    %345 = vmatpush1.msra.mxu0 %v57
    %346 = vmatprep.subr.mxu0 0.0
    %347 = vmatpush1.msra.mxu0 0.0
    %348 = vmatprep.subr.mxu0 0.0
    %349 = vmatpush1.msra.mxu0 0.0
    %350 = vmatprep.subr.mxu0 0.0
    %351 = vmatpush1.msra.mxu0 0.0
    %352 = vmatprep.subr.mxu0 0.0
    %353 = vmatpush1.msra.mxu0 0.0
    %354 = vmatprep.subr.mxu0 0.0
    %355 = vmatpush1.msra.mxu0 0.0
    %356 = vmatprep.subr.mxu0 0.0
    %357 = vmatpush1.msra.mxu0 0.0
    %358 = vmatprep.subr.mxu0 0.0
    %359 = vmatpush1.msra.mxu0 0.0
    %360 = vmatprep.subr.mxu0 0.0
    %361 = vmatpush1.msra.mxu0 0.0
    %362 = vmatprep.subr.mxu0 0.0
    %363 = vmatpush1.msra.mxu0 0.0
    %364 = vmatprep.subr.mxu0 0.0
    %365 = vmatpush1.msra.mxu0 0.0
    %366 = vmatprep.subr.mxu0 0.0
    %367 = vmatpush1.msra.mxu0 0.0
    %368 = vmatprep.subr.mxu0 0.0
    %369 = vmatpush1.msra.mxu0 0.0
    %370 = vmatprep.subr.mxu0 0.0
    %371 = vmatpush1.msra.mxu0 0.0
    %372 = vmatprep.subr.mxu0 0.0
    %373 = vmatpush1.msra.mxu0 0.0
    %374 = vmatprep.subr.mxu0 0.0
    %375 = vmatpush1.msra.mxu0 0.0
    %376 = vmatprep.subr.mxu0 0.0
    %377 = vmatpush1.msra.mxu0 0.0
    %378 = vmatprep.subr.mxu0 0.0
    %379 = vmatpush1.msra.mxu0 0.0
    %380 = vmatprep.subr.mxu0 0.0
    %381 = vmatpush1.msra.mxu0 0.0
    %382 = vmatprep.subr.mxu0 0.0
    %383 = vmatpush1.msra.mxu0 0.0
    %384 = vmatprep.subr.mxu0 0.0
    %385 = vmatpush1.msra.mxu0 0.0
    %386 = vmatprep.subr.mxu0 0.0
    %387 = vmatpush1.msra.mxu0 0.0
    %388 = vmatprep.subr.mxu0 0.0
    %389 = vmatpush1.msra.mxu0 0.0
    %390 = vmatprep.subr.mxu0 0.0
    %391 = vmatpush1.msra.mxu0 0.0
    %392 = vmatprep.subr.mxu0 0.0
    %393 = vmatpush1.msra.mxu0 0.0
    %394 = vmatprep.subr.mxu0 0.0
    %395 = vmatpush1.msra.mxu0 0.0
    %396 = vmatprep.subr.mxu0 0.0
    %397 = vmatpush1.msra.mxu0 0.0
    %398 = vmatprep.subr.mxu0 0.0
    %399 = vmatpush1.msra.mxu0 0.0
    %400 = vmatprep.subr.mxu0 0.0
    %401 = vmatpush1.msra.mxu0 0.0
    %402 = vmatprep.subr.mxu0 0.0
    %403 = vmatpush1.msra.mxu0 0.0
    %404 = vmatprep.subr.mxu0 0.0
    %405 = vmatpush1.msra.mxu0 0.0
    %406 = vmatprep.mubr.f32.mxu0 0.0
    %407 = vmatmul.mubr.f32.gmra.mrb[0].mxu0 %v340
    %v408 = vpop.f32.mrb[0].mxu0
    %v409 = vadd.f32 %v336, %v408
    %v410 = vpop.f32.mrb[0].mxu0
    %411 = vdwg.mxu0
    %v412 = vadd.f32 %v409, %v231
    %v413 = vmul.f32 %v412, %v55
    %v414 = vtanh.pop %v413
    %v415 = vmul.f32 %v414, 0.5
    %v416 = vadd.f32 %v415, 0.5
    %v417 = vsel %vm239, %v414, %v416
    %v418 = vmul.f32 %v417, %v255
    %420 = vrot.lane.b32.xlu0 %v417, 64
    %v421 = vpop.permute.xlu0 %420
    %v423 = vmul.f32 %v417, %v421
    %425 = vrot.lane.b32.xlu0 %v423, 32
    %v426 = vpop.permute.xlu0 %425
    %v428 = vadd.f32 %v418, %v426
    %v429 = vtanh.pop %v428
    %431 = vrot.lane.b32.xlu0 %v429, 64
    %v432 = vpop.permute.xlu0 %431
    %v434 = vmul.f32 %v417, %v432
    %v436 = vsel %vm79, %v74, 0
    %438 = vmatprep.subr.mxu0 0.0
    %439 = vmatpush1.msra.mxu0 %v66
    %440 = vmatprep.subr.mxu0 0.0
    %441 = vmatpush1.msra.mxu0 %v67
    %442 = vmatprep.subr.mxu0 0.0
    %443 = vmatpush1.msra.mxu0 %v68
    %444 = vmatprep.subr.mxu0 0.0
    %445 = vmatpush1.msra.mxu0 %v69
    %446 = vmatprep.subr.mxu0 0.0
    %447 = vmatpush1.msra.mxu0 0.0
    %448 = vmatprep.subr.mxu0 0.0
    %449 = vmatpush1.msra.mxu0 0.0
    %450 = vmatprep.subr.mxu0 0.0
    %451 = vmatpush1.msra.mxu0 0.0
    %452 = vmatprep.subr.mxu0 0.0
    %453 = vmatpush1.msra.mxu0 0.0
    %454 = vmatprep.subr.mxu0 0.0
    %455 = vmatpush1.msra.mxu0 0.0
    %456 = vmatprep.subr.mxu0 0.0
    %457 = vmatpush1.msra.mxu0 0.0
    %458 = vmatprep.subr.mxu0 0.0
    %459 = vmatpush1.msra.mxu0 0.0
    %460 = vmatprep.subr.mxu0 0.0
    %461 = vmatpush1.msra.mxu0 0.0
    %462 = vmatprep.subr.mxu0 0.0
    %463 = vmatpush1.msra.mxu0 0.0
    %464 = vmatprep.subr.mxu0 0.0
    %465 = vmatpush1.msra.mxu0 0.0
    %466 = vmatprep.subr.mxu0 0.0
    %467 = vmatpush1.msra.mxu0 0.0
    %468 = vmatprep.subr.mxu0 0.0
    %469 = vmatpush1.msra.mxu0 0.0
    %470 = vmatprep.subr.mxu0 0.0
    %471 = vmatpush1.msra.mxu0 0.0
    %472 = vmatprep.subr.mxu0 0.0
    %473 = vmatpush1.msra.mxu0 0.0
    %474 = vmatprep.subr.mxu0 0.0
    %475 = vmatpush1.msra.mxu0 0.0
    %476 = vmatprep.subr.mxu0 0.0
    %477 = vmatpush1.msra.mxu0 0.0
    %478 = vmatprep.subr.mxu0 0.0
    %479 = vmatpush1.msra.mxu0 0.0
    %480 = vmatprep.subr.mxu0 0.0
    %481 = vmatpush1.msra.mxu0 0.0
    %482 = vmatprep.subr.mxu0 0.0
    %483 = vmatpush1.msra.mxu0 0.0
    %484 = vmatprep.subr.mxu0 0.0
    %485 = vmatpush1.msra.mxu0 0.0
    %486 = vmatprep.subr.mxu0 0.0
    %487 = vmatpush1.msra.mxu0 0.0
    %488 = vmatprep.subr.mxu0 0.0
    %489 = vmatpush1.msra.mxu0 0.0
    %490 = vmatprep.subr.mxu0 0.0
    %491 = vmatpush1.msra.mxu0 0.0
    %492 = vmatprep.subr.mxu0 0.0
    %493 = vmatpush1.msra.mxu0 0.0
    %494 = vmatprep.subr.mxu0 0.0
    %495 = vmatpush1.msra.mxu0 0.0
    %496 = vmatprep.subr.mxu0 0.0
    %497 = vmatpush1.msra.mxu0 0.0
    %498 = vmatprep.subr.mxu0 0.0
    %499 = vmatpush1.msra.mxu0 0.0
    %500 = vmatprep.subr.mxu0 0.0
    %501 = vmatpush1.msra.mxu0 0.0
    %502 = vmatprep.mubr.f32.mxu0 0.0
    %503 = vmatmul.mubr.f32.gmra.mrb[0].mxu0 %v436
    %v504 = vpop.f32.mrb[0].mxu0
    %v505 = vadd.f32 0.0, %v504
    %v506 = vpop.f32.mrb[0].mxu0
    %507 = vdwg.mxu0
    %508 = vmatprep.subr.mxu0 0.0
    %509 = vmatpush1.msra.mxu0 %v58
    %510 = vmatprep.subr.mxu0 0.0
    %511 = vmatpush1.msra.mxu0 %v59
    %512 = vmatprep.subr.mxu0 0.0
    %513 = vmatpush1.msra.mxu0 %v60
    %514 = vmatprep.subr.mxu0 0.0
    %515 = vmatpush1.msra.mxu0 %v61
    %516 = vmatprep.subr.mxu0 0.0
    %517 = vmatpush1.msra.mxu0 0.0
    %518 = vmatprep.subr.mxu0 0.0
    %519 = vmatpush1.msra.mxu0 0.0
    %520 = vmatprep.subr.mxu0 0.0
    %521 = vmatpush1.msra.mxu0 0.0
    %522 = vmatprep.subr.mxu0 0.0
    %523 = vmatpush1.msra.mxu0 0.0
    %524 = vmatprep.subr.mxu0 0.0
    %525 = vmatpush1.msra.mxu0 0.0
    %526 = vmatprep.subr.mxu0 0.0
    %527 = vmatpush1.msra.mxu0 0.0
    %528 = vmatprep.subr.mxu0 0.0
    %529 = vmatpush1.msra.mxu0 0.0
    %530 = vmatprep.subr.mxu0 0.0
    %531 = vmatpush1.msra.mxu0 0.0
    %532 = vmatprep.subr.mxu0 0.0
    %533 = vmatpush1.msra.mxu0 0.0
    %534 = vmatprep.subr.mxu0 0.0
    %535 = vmatpush1.msra.mxu0 0.0
    %536 = vmatprep.subr.mxu0 0.0
    %537 = vmatpush1.msra.mxu0 0.0
    %538 = vmatprep.subr.mxu0 0.0
    %539 = vmatpush1.msra.mxu0 0.0
    %540 = vmatprep.subr.mxu0 0.0
    %541 = vmatpush1.msra.mxu0 0.0
    %542 = vmatprep.subr.mxu0 0.0
    %543 = vmatpush1.msra.mxu0 0.0
    %544 = vmatprep.subr.mxu0 0.0
    %545 = vmatpush1.msra.mxu0 0.0
    %546 = vmatprep.subr.mxu0 0.0
    %547 = vmatpush1.msra.mxu0 0.0
    %548 = vmatprep.subr.mxu0 0.0
    %549 = vmatpush1.msra.mxu0 0.0
    %550 = vmatprep.subr.mxu0 0.0
    %551 = vmatpush1.msra.mxu0 0.0
    %552 = vmatprep.subr.mxu0 0.0
    %553 = vmatpush1.msra.mxu0 0.0
    %554 = vmatprep.subr.mxu0 0.0
    %555 = vmatpush1.msra.mxu0 0.0
    %556 = vmatprep.subr.mxu0 0.0
    %557 = vmatpush1.msra.mxu0 0.0
    %558 = vmatprep.subr.mxu0 0.0
    %559 = vmatpush1.msra.mxu0 0.0
    %560 = vmatprep.subr.mxu0 0.0
    %561 = vmatpush1.msra.mxu0 0.0
    %562 = vmatprep.subr.mxu0 0.0
    %563 = vmatpush1.msra.mxu0 0.0
    %564 = vmatprep.subr.mxu0 0.0
    %565 = vmatpush1.msra.mxu0 0.0
    %566 = vmatprep.subr.mxu0 0.0
    %567 = vmatpush1.msra.mxu0 0.0
    %568 = vmatprep.subr.mxu0 0.0
    %569 = vmatpush1.msra.mxu0 0.0
    %570 = vmatprep.subr.mxu0 0.0
    %571 = vmatpush1.msra.mxu0 0.0
    %572 = vmatprep.mubr.f32.mxu0 0.0
    %573 = vmatmul.mubr.f32.gmra.mrb[0].mxu0 %v267
    %v574 = vpop.f32.mrb[0].mxu0
    %v575 = vadd.f32 %v505, %v574
    %v576 = vpop.f32.mrb[0].mxu0
    %577 = vdwg.mxu0
    %v579 = vlaneseq
    %v580 = vshrl.u32 %v579, 7
    %v581 = vsub.s32 0, %v580
    %v582 = vrot.slane %v71, %v581
    %v584 = vadd.f32 %v575, %v582
    %v585 = vmul.f32 %v584, %v55
    %v586 = vtanh.pop %v585
    %v587 = vmul.f32 %v586, 0.5
    %v588 = vadd.f32 %v587, 0.5
    %v589 = vsel %vm239, %v586, %v588
    %591 = vrot.lane.b32.xlu0 %v77, 32
    %v592 = vpop.permute.xlu0 %591
    %v594 = vmul.f32 %v589, %v592
    %596 = vrot.lane.b32.xlu0 %v589, 64
    %v597 = vpop.permute.xlu0 %596
    %v599 = vmul.f32 %v589, %v597
    %601 = vrot.lane.b32.xlu0 %v599, 32
    %v602 = vpop.permute.xlu0 %601
    %v604 = vadd.f32 %v594, %v602
    %v605 = vtanh.pop %v604
    %607 = vrot.lane.b32.xlu0 %v605, 64
    %v608 = vpop.permute.xlu0 %607
    %v610 = vmul.f32 %v589, %v608
    %s611 = scalar_lea.vmem %s1, 4
    %v612 = vld [vmem:[%s611] sm:$0x3]
    %614 = vrot.lane.b32.xlu0 %v434, 32
    %v615 = vpop.permute.xlu0 %614
    %v616 = vsel %vm79, %v615, 0
    %618 = vmatprep.subr.mxu0 0.0
    %619 = vmatpush1.msra.mxu0 %v62
    %620 = vmatprep.subr.mxu0 0.0
    %621 = vmatpush1.msra.mxu0 %v63
    %622 = vmatprep.subr.mxu0 0.0
    %623 = vmatpush1.msra.mxu0 %v64
    %624 = vmatprep.subr.mxu0 0.0
    %625 = vmatpush1.msra.mxu0 %v65
    %626 = vmatprep.subr.mxu0 0.0
    %627 = vmatpush1.msra.mxu0 0.0
    %628 = vmatprep.subr.mxu0 0.0
    %629 = vmatpush1.msra.mxu0 0.0
    %630 = vmatprep.subr.mxu0 0.0
    %631 = vmatpush1.msra.mxu0 0.0
    %632 = vmatprep.subr.mxu0 0.0
    %633 = vmatpush1.msra.mxu0 0.0
    %634 = vmatprep.subr.mxu0 0.0
    %635 = vmatpush1.msra.mxu0 0.0
    %636 = vmatprep.subr.mxu0 0.0
    %637 = vmatpush1.msra.mxu0 0.0
    %638 = vmatprep.subr.mxu0 0.0
    %639 = vmatpush1.msra.mxu0 0.0
    %640 = vmatprep.subr.mxu0 0.0
    %641 = vmatpush1.msra.mxu0 0.0
    %642 = vmatprep.subr.mxu0 0.0
    %643 = vmatpush1.msra.mxu0 0.0
    %644 = vmatprep.subr.mxu0 0.0
    %645 = vmatpush1.msra.mxu0 0.0
    %646 = vmatprep.subr.mxu0 0.0
    %647 = vmatpush1.msra.mxu0 0.0
    %648 = vmatprep.subr.mxu0 0.0
    %649 = vmatpush1.msra.mxu0 0.0
    %650 = vmatprep.subr.mxu0 0.0
    %651 = vmatpush1.msra.mxu0 0.0
    %652 = vmatprep.subr.mxu0 0.0
    %653 = vmatpush1.msra.mxu0 0.0
    %654 = vmatprep.subr.mxu0 0.0
    %655 = vmatpush1.msra.mxu0 0.0
    %656 = vmatprep.subr.mxu0 0.0
    %657 = vmatpush1.msra.mxu0 0.0
    %658 = vmatprep.subr.mxu0 0.0
    %659 = vmatpush1.msra.mxu0 0.0
    %660 = vmatprep.subr.mxu0 0.0
    %661 = vmatpush1.msra.mxu0 0.0
    %662 = vmatprep.subr.mxu0 0.0
    %663 = vmatpush1.msra.mxu0 0.0
    %664 = vmatprep.subr.mxu0 0.0
    %665 = vmatpush1.msra.mxu0 0.0
    %666 = vmatprep.subr.mxu0 0.0
    %667 = vmatpush1.msra.mxu0 0.0
    %668 = vmatprep.subr.mxu0 0.0
    %669 = vmatpush1.msra.mxu0 0.0
    %670 = vmatprep.subr.mxu0 0.0
    %671 = vmatpush1.msra.mxu0 0.0
    %672 = vmatprep.subr.mxu0 0.0
    %673 = vmatpush1.msra.mxu0 0.0
    %674 = vmatprep.subr.mxu0 0.0
    %675 = vmatpush1.msra.mxu0 0.0
    %676 = vmatprep.subr.mxu0 0.0
    %677 = vmatpush1.msra.mxu0 0.0
    %678 = vmatprep.subr.mxu0 0.0
    %679 = vmatpush1.msra.mxu0 0.0
    %680 = vmatprep.subr.mxu0 0.0
    %681 = vmatpush1.msra.mxu0 0.0
    %682 = vmatprep.mubr.f32.mxu0 0.0
    %683 = vmatmul.mubr.f32.gmra.mrb[0].mxu0 %v616
    %v684 = vpop.f32.mrb[0].mxu0
    %v685 = vadd.f32 0.0, %v684
    %v686 = vpop.f32.mrb[0].mxu0
    %687 = vdwg.mxu0
    %v689 = vsel %vm153, %v612, 0
    %691 = vmatprep.subr.mxu0 0.0
    %692 = vmatpush1.msra.mxu0 %v56
    %693 = vmatprep.subr.mxu0 0.0
    %694 = vmatpush1.msra.mxu0 %v57
    %695 = vmatprep.subr.mxu0 0.0
    %696 = vmatpush1.msra.mxu0 0.0
    %697 = vmatprep.subr.mxu0 0.0
    %698 = vmatpush1.msra.mxu0 0.0
    %699 = vmatprep.subr.mxu0 0.0
    %700 = vmatpush1.msra.mxu0 0.0
    %701 = vmatprep.subr.mxu0 0.0
    %702 = vmatpush1.msra.mxu0 0.0
    %703 = vmatprep.subr.mxu0 0.0
    %704 = vmatpush1.msra.mxu0 0.0
    %705 = vmatprep.subr.mxu0 0.0
    %706 = vmatpush1.msra.mxu0 0.0
    %707 = vmatprep.subr.mxu0 0.0
    %708 = vmatpush1.msra.mxu0 0.0
    %709 = vmatprep.subr.mxu0 0.0
    %710 = vmatpush1.msra.mxu0 0.0
    %711 = vmatprep.subr.mxu0 0.0
    %712 = vmatpush1.msra.mxu0 0.0
    %713 = vmatprep.subr.mxu0 0.0
    %714 = vmatpush1.msra.mxu0 0.0
    %715 = vmatprep.subr.mxu0 0.0
    %716 = vmatpush1.msra.mxu0 0.0
    %717 = vmatprep.subr.mxu0 0.0
    %718 = vmatpush1.msra.mxu0 0.0
    %719 = vmatprep.subr.mxu0 0.0
    %720 = vmatpush1.msra.mxu0 0.0
    %721 = vmatprep.subr.mxu0 0.0
    %722 = vmatpush1.msra.mxu0 0.0
    %723 = vmatprep.subr.mxu0 0.0
    %724 = vmatpush1.msra.mxu0 0.0
    %725 = vmatprep.subr.mxu0 0.0
    %726 = vmatpush1.msra.mxu0 0.0
    %727 = vmatprep.subr.mxu0 0.0
    %728 = vmatpush1.msra.mxu0 0.0
    %729 = vmatprep.subr.mxu0 0.0
    %730 = vmatpush1.msra.mxu0 0.0
    %731 = vmatprep.subr.mxu0 0.0
    %732 = vmatpush1.msra.mxu0 0.0
    %733 = vmatprep.subr.mxu0 0.0
    %734 = vmatpush1.msra.mxu0 0.0
    %735 = vmatprep.subr.mxu0 0.0
    %736 = vmatpush1.msra.mxu0 0.0
    %737 = vmatprep.subr.mxu0 0.0
    %738 = vmatpush1.msra.mxu0 0.0
    %739 = vmatprep.subr.mxu0 0.0
    %740 = vmatpush1.msra.mxu0 0.0
    %741 = vmatprep.subr.mxu0 0.0
    %742 = vmatpush1.msra.mxu0 0.0
    %743 = vmatprep.subr.mxu0 0.0
    %744 = vmatpush1.msra.mxu0 0.0
    %745 = vmatprep.subr.mxu0 0.0
    %746 = vmatpush1.msra.mxu0 0.0
    %747 = vmatprep.subr.mxu0 0.0
    %748 = vmatpush1.msra.mxu0 0.0
    %749 = vmatprep.subr.mxu0 0.0
    %750 = vmatpush1.msra.mxu0 0.0
    %751 = vmatprep.subr.mxu0 0.0
    %752 = vmatpush1.msra.mxu0 0.0
    %753 = vmatprep.subr.mxu0 0.0
    %754 = vmatpush1.msra.mxu0 0.0
    %755 = vmatprep.mubr.f32.mxu0 0.0
    %756 = vmatmul.mubr.f32.gmra.mrb[0].mxu0 %v689
    %v757 = vpop.f32.mrb[0].mxu0
    %v758 = vadd.f32 %v685, %v757
    %v759 = vpop.f32.mrb[0].mxu0
    %760 = vdwg.mxu0
    %v761 = vadd.f32 %v758, %v231
    %v762 = vmul.f32 %v761, %v55
    %v763 = vtanh.pop %v762
    %v764 = vmul.f32 %v763, 0.5
    %v765 = vadd.f32 %v764, 0.5
    %v766 = vsel %vm239, %v763, %v765
    %v767 = vmul.f32 %v766, %v428
    %769 = vrot.lane.b32.xlu0 %v766, 64
    %v770 = vpop.permute.xlu0 %769
    %v772 = vmul.f32 %v766, %v770
    %774 = vrot.lane.b32.xlu0 %v772, 32
    %v775 = vpop.permute.xlu0 %774
    %v777 = vadd.f32 %v767, %v775
    %v778 = vtanh.pop %v777
    %780 = vrot.lane.b32.xlu0 %v778, 64
    %v781 = vpop.permute.xlu0 %780
    %v783 = vmul.f32 %v766, %v781
    %785 = vrot.lane.b32.xlu0 %v610, 32
    %v786 = vpop.permute.xlu0 %785
    %v787 = vsel %vm79, %v786, 0
    %789 = vmatprep.subr.mxu0 0.0
    %790 = vmatpush1.msra.mxu0 %v66
    %791 = vmatprep.subr.mxu0 0.0
    %792 = vmatpush1.msra.mxu0 %v67
    %793 = vmatprep.subr.mxu0 0.0
    %794 = vmatpush1.msra.mxu0 %v68
    %795 = vmatprep.subr.mxu0 0.0
    %796 = vmatpush1.msra.mxu0 %v69
    %797 = vmatprep.subr.mxu0 0.0
    %798 = vmatpush1.msra.mxu0 0.0
    %799 = vmatprep.subr.mxu0 0.0
    %800 = vmatpush1.msra.mxu0 0.0
    %801 = vmatprep.subr.mxu0 0.0
    %802 = vmatpush1.msra.mxu0 0.0
    %803 = vmatprep.subr.mxu0 0.0
    %804 = vmatpush1.msra.mxu0 0.0
    %805 = vmatprep.subr.mxu0 0.0
    %806 = vmatpush1.msra.mxu0 0.0
    %807 = vmatprep.subr.mxu0 0.0
    %808 = vmatpush1.msra.mxu0 0.0
    %809 = vmatprep.subr.mxu0 0.0
    %810 = vmatpush1.msra.mxu0 0.0
    %811 = vmatprep.subr.mxu0 0.0
    %812 = vmatpush1.msra.mxu0 0.0
    %813 = vmatprep.subr.mxu0 0.0
    %814 = vmatpush1.msra.mxu0 0.0
    %815 = vmatprep.subr.mxu0 0.0
    %816 = vmatpush1.msra.mxu0 0.0
    %817 = vmatprep.subr.mxu0 0.0
    %818 = vmatpush1.msra.mxu0 0.0
    %819 = vmatprep.subr.mxu0 0.0
    %820 = vmatpush1.msra.mxu0 0.0
    %821 = vmatprep.subr.mxu0 0.0
    %822 = vmatpush1.msra.mxu0 0.0
    %823 = vmatprep.subr.mxu0 0.0
    %824 = vmatpush1.msra.mxu0 0.0
    %825 = vmatprep.subr.mxu0 0.0
    %826 = vmatpush1.msra.mxu0 0.0
    %827 = vmatprep.subr.mxu0 0.0
    %828 = vmatpush1.msra.mxu0 0.0
    %829 = vmatprep.subr.mxu0 0.0
    %830 = vmatpush1.msra.mxu0 0.0
    %831 = vmatprep.subr.mxu0 0.0
    %832 = vmatpush1.msra.mxu0 0.0
    %833 = vmatprep.subr.mxu0 0.0
    %834 = vmatpush1.msra.mxu0 0.0
    %835 = vmatprep.subr.mxu0 0.0
    %836 = vmatpush1.msra.mxu0 0.0
    %837 = vmatprep.subr.mxu0 0.0
    %838 = vmatpush1.msra.mxu0 0.0
    %839 = vmatprep.subr.mxu0 0.0
    %840 = vmatpush1.msra.mxu0 0.0
    %841 = vmatprep.subr.mxu0 0.0
    %842 = vmatpush1.msra.mxu0 0.0
    %843 = vmatprep.subr.mxu0 0.0
    %844 = vmatpush1.msra.mxu0 0.0
    %845 = vmatprep.subr.mxu0 0.0
    %846 = vmatpush1.msra.mxu0 0.0
    %847 = vmatprep.subr.mxu0 0.0
    %848 = vmatpush1.msra.mxu0 0.0
    %849 = vmatprep.subr.mxu0 0.0
    %850 = vmatpush1.msra.mxu0 0.0
    %851 = vmatprep.subr.mxu0 0.0
    %852 = vmatpush1.msra.mxu0 0.0
    %853 = vmatprep.mubr.f32.mxu0 0.0
    %854 = vmatmul.mubr.f32.gmra.mrb[0].mxu0 %v787
    %v855 = vpop.f32.mrb[0].mxu0
    %v856 = vadd.f32 0.0, %v855
    %v857 = vpop.f32.mrb[0].mxu0
    %858 = vdwg.mxu0
    %859 = vmatprep.subr.mxu0 0.0
    %860 = vmatpush1.msra.mxu0 %v58
    %861 = vmatprep.subr.mxu0 0.0
    %862 = vmatpush1.msra.mxu0 %v59
    %863 = vmatprep.subr.mxu0 0.0
    %864 = vmatpush1.msra.mxu0 %v60
    %865 = vmatprep.subr.mxu0 0.0
    %866 = vmatpush1.msra.mxu0 %v61
    %867 = vmatprep.subr.mxu0 0.0
    %868 = vmatpush1.msra.mxu0 0.0
    %869 = vmatprep.subr.mxu0 0.0
    %870 = vmatpush1.msra.mxu0 0.0
    %871 = vmatprep.subr.mxu0 0.0
    %872 = vmatpush1.msra.mxu0 0.0
    %873 = vmatprep.subr.mxu0 0.0
    %874 = vmatpush1.msra.mxu0 0.0
    %875 = vmatprep.subr.mxu0 0.0
    %876 = vmatpush1.msra.mxu0 0.0
    %877 = vmatprep.subr.mxu0 0.0
    %878 = vmatpush1.msra.mxu0 0.0
    %879 = vmatprep.subr.mxu0 0.0
    %880 = vmatpush1.msra.mxu0 0.0
    %881 = vmatprep.subr.mxu0 0.0
    %882 = vmatpush1.msra.mxu0 0.0
    %883 = vmatprep.subr.mxu0 0.0
    %884 = vmatpush1.msra.mxu0 0.0
    %885 = vmatprep.subr.mxu0 0.0
    %886 = vmatpush1.msra.mxu0 0.0
    %887 = vmatprep.subr.mxu0 0.0
    %888 = vmatpush1.msra.mxu0 0.0
    %889 = vmatprep.subr.mxu0 0.0
    %890 = vmatpush1.msra.mxu0 0.0
    %891 = vmatprep.subr.mxu0 0.0
    %892 = vmatpush1.msra.mxu0 0.0
    %893 = vmatprep.subr.mxu0 0.0
    %894 = vmatpush1.msra.mxu0 0.0
    %895 = vmatprep.subr.mxu0 0.0
    %896 = vmatpush1.msra.mxu0 0.0
    %897 = vmatprep.subr.mxu0 0.0
    %898 = vmatpush1.msra.mxu0 0.0
    %899 = vmatprep.subr.mxu0 0.0
    %900 = vmatpush1.msra.mxu0 0.0
    %901 = vmatprep.subr.mxu0 0.0
    %902 = vmatpush1.msra.mxu0 0.0
    %903 = vmatprep.subr.mxu0 0.0
    %904 = vmatpush1.msra.mxu0 0.0
    %905 = vmatprep.subr.mxu0 0.0
    %906 = vmatpush1.msra.mxu0 0.0
    %907 = vmatprep.subr.mxu0 0.0
    %908 = vmatpush1.msra.mxu0 0.0
    %909 = vmatprep.subr.mxu0 0.0
    %910 = vmatpush1.msra.mxu0 0.0
    %911 = vmatprep.subr.mxu0 0.0
    %912 = vmatpush1.msra.mxu0 0.0
    %913 = vmatprep.subr.mxu0 0.0
    %914 = vmatpush1.msra.mxu0 0.0
    %915 = vmatprep.subr.mxu0 0.0
    %916 = vmatpush1.msra.mxu0 0.0
    %917 = vmatprep.subr.mxu0 0.0
    %918 = vmatpush1.msra.mxu0 0.0
    %919 = vmatprep.subr.mxu0 0.0
    %920 = vmatpush1.msra.mxu0 0.0
    %921 = vmatprep.subr.mxu0 0.0
    %922 = vmatpush1.msra.mxu0 0.0
    %923 = vmatprep.mubr.f32.mxu0 0.0
    %924 = vmatmul.mubr.f32.gmra.mrb[0].mxu0 %v616
    %v925 = vpop.f32.mrb[0].mxu0
    %v926 = vadd.f32 %v856, %v925
    %v927 = vpop.f32.mrb[0].mxu0
    %928 = vdwg.mxu0
    %v929 = vadd.f32 %v926, %v582
    %v930 = vmul.f32 %v929, %v55
    %v931 = vtanh.pop %v930
    %v932 = vmul.f32 %v931, 0.5
    %v933 = vadd.f32 %v932, 0.5
    %v934 = vsel %vm239, %v931, %v933
    %v935 = vmul.f32 %v934, %v604
    %937 = vrot.lane.b32.xlu0 %v934, 64
    %v938 = vpop.permute.xlu0 %937
    %v940 = vmul.f32 %v934, %v938
    %942 = vrot.lane.b32.xlu0 %v940, 32
    %v943 = vpop.permute.xlu0 %942
    %v945 = vadd.f32 %v935, %v943
    %v946 = vtanh.pop %v945
    %948 = vrot.lane.b32.xlu0 %v946, 64
    %v949 = vpop.permute.xlu0 %948
    %v951 = vmul.f32 %v934, %v949
    %s952 = scalar_lea.vmem %s1, 6
    %v953 = vld [vmem:[%s952] sm:$0x3]
    %955 = vrot.lane.b32.xlu0 %v783, 32
    %v956 = vpop.permute.xlu0 %955
    %v957 = vsel %vm79, %v956, 0
    %959 = vmatprep.subr.mxu0 0.0
    %960 = vmatpush1.msra.mxu0 %v62
    %961 = vmatprep.subr.mxu0 0.0
    %962 = vmatpush1.msra.mxu0 %v63
    %963 = vmatprep.subr.mxu0 0.0
    %964 = vmatpush1.msra.mxu0 %v64
    %965 = vmatprep.subr.mxu0 0.0
    %966 = vmatpush1.msra.mxu0 %v65
    %967 = vmatprep.subr.mxu0 0.0
    %968 = vmatpush1.msra.mxu0 0.0
    %969 = vmatprep.subr.mxu0 0.0
    %970 = vmatpush1.msra.mxu0 0.0
    %971 = vmatprep.subr.mxu0 0.0
    %972 = vmatpush1.msra.mxu0 0.0
    %973 = vmatprep.subr.mxu0 0.0
    %974 = vmatpush1.msra.mxu0 0.0
    %975 = vmatprep.subr.mxu0 0.0
    %976 = vmatpush1.msra.mxu0 0.0
    %977 = vmatprep.subr.mxu0 0.0
    %978 = vmatpush1.msra.mxu0 0.0
    %979 = vmatprep.subr.mxu0 0.0
    %980 = vmatpush1.msra.mxu0 0.0
    %981 = vmatprep.subr.mxu0 0.0
    %982 = vmatpush1.msra.mxu0 0.0
    %983 = vmatprep.subr.mxu0 0.0
    %984 = vmatpush1.msra.mxu0 0.0
    %985 = vmatprep.subr.mxu0 0.0
    %986 = vmatpush1.msra.mxu0 0.0
    %987 = vmatprep.subr.mxu0 0.0
    %988 = vmatpush1.msra.mxu0 0.0
    %989 = vmatprep.subr.mxu0 0.0
    %990 = vmatpush1.msra.mxu0 0.0
    %991 = vmatprep.subr.mxu0 0.0
    %992 = vmatpush1.msra.mxu0 0.0
    %993 = vmatprep.subr.mxu0 0.0
    %994 = vmatpush1.msra.mxu0 0.0
    %995 = vmatprep.subr.mxu0 0.0
    %996 = vmatpush1.msra.mxu0 0.0
    %997 = vmatprep.subr.mxu0 0.0
    %998 = vmatpush1.msra.mxu0 0.0
    %999 = vmatprep.subr.mxu0 0.0
    %1000 = vmatpush1.msra.mxu0 0.0
    %1001 = vmatprep.subr.mxu0 0.0
    %1002 = vmatpush1.msra.mxu0 0.0
    %1003 = vmatprep.subr.mxu0 0.0
    %1004 = vmatpush1.msra.mxu0 0.0
    %1005 = vmatprep.subr.mxu0 0.0
    %1006 = vmatpush1.msra.mxu0 0.0
    %1007 = vmatprep.subr.mxu0 0.0
    %1008 = vmatpush1.msra.mxu0 0.0
    %1009 = vmatprep.subr.mxu0 0.0
    %1010 = vmatpush1.msra.mxu0 0.0
    %1011 = vmatprep.subr.mxu0 0.0
    %1012 = vmatpush1.msra.mxu0 0.0
    %1013 = vmatprep.subr.mxu0 0.0
    %1014 = vmatpush1.msra.mxu0 0.0
    %1015 = vmatprep.subr.mxu0 0.0
    %1016 = vmatpush1.msra.mxu0 0.0
    %1017 = vmatprep.subr.mxu0 0.0
    %1018 = vmatpush1.msra.mxu0 0.0
    %1019 = vmatprep.subr.mxu0 0.0
    %1020 = vmatpush1.msra.mxu0 0.0
    %1021 = vmatprep.subr.mxu0 0.0
    %1022 = vmatpush1.msra.mxu0 0.0
    %1023 = vmatprep.mubr.f32.mxu0 0.0
    %1024 = vmatmul.mubr.f32.gmra.mrb[0].mxu0 %v957
    %v1025 = vpop.f32.mrb[0].mxu0
    %v1026 = vadd.f32 0.0, %v1025
    %v1027 = vpop.f32.mrb[0].mxu0
    %1028 = vdwg.mxu0
    %v1030 = vsel %vm153, %v953, 0
    %1032 = vmatprep.subr.mxu0 0.0
    %1033 = vmatpush1.msra.mxu0 %v56
    %1034 = vmatprep.subr.mxu0 0.0
    %1035 = vmatpush1.msra.mxu0 %v57
    %1036 = vmatprep.subr.mxu0 0.0
    %1037 = vmatpush1.msra.mxu0 0.0
    %1038 = vmatprep.subr.mxu0 0.0
    %1039 = vmatpush1.msra.mxu0 0.0
    %1040 = vmatprep.subr.mxu0 0.0
    %1041 = vmatpush1.msra.mxu0 0.0
    %1042 = vmatprep.subr.mxu0 0.0
    %1043 = vmatpush1.msra.mxu0 0.0
    %1044 = vmatprep.subr.mxu0 0.0
    %1045 = vmatpush1.msra.mxu0 0.0
    %1046 = vmatprep.subr.mxu0 0.0
    %1047 = vmatpush1.msra.mxu0 0.0
    %1048 = vmatprep.subr.mxu0 0.0
    %1049 = vmatpush1.msra.mxu0 0.0
    %1050 = vmatprep.subr.mxu0 0.0
    %1051 = vmatpush1.msra.mxu0 0.0
    %1052 = vmatprep.subr.mxu0 0.0
    %1053 = vmatpush1.msra.mxu0 0.0
    %1054 = vmatprep.subr.mxu0 0.0
    %1055 = vmatpush1.msra.mxu0 0.0
    %1056 = vmatprep.subr.mxu0 0.0
    %1057 = vmatpush1.msra.mxu0 0.0
    %1058 = vmatprep.subr.mxu0 0.0
    %1059 = vmatpush1.msra.mxu0 0.0
    %1060 = vmatprep.subr.mxu0 0.0
    %1061 = vmatpush1.msra.mxu0 0.0
    %1062 = vmatprep.subr.mxu0 0.0
    %1063 = vmatpush1.msra.mxu0 0.0
    %1064 = vmatprep.subr.mxu0 0.0
    %1065 = vmatpush1.msra.mxu0 0.0
    %1066 = vmatprep.subr.mxu0 0.0
    %1067 = vmatpush1.msra.mxu0 0.0
    %1068 = vmatprep.subr.mxu0 0.0
    %1069 = vmatpush1.msra.mxu0 0.0
    %1070 = vmatprep.subr.mxu0 0.0
    %1071 = vmatpush1.msra.mxu0 0.0
    %1072 = vmatprep.subr.mxu0 0.0
    %1073 = vmatpush1.msra.mxu0 0.0
    %1074 = vmatprep.subr.mxu0 0.0
    %1075 = vmatpush1.msra.mxu0 0.0
    %1076 = vmatprep.subr.mxu0 0.0
    %1077 = vmatpush1.msra.mxu0 0.0
    %1078 = vmatprep.subr.mxu0 0.0
    %1079 = vmatpush1.msra.mxu0 0.0
    %1080 = vmatprep.subr.mxu0 0.0
    %1081 = vmatpush1.msra.mxu0 0.0
    %1082 = vmatprep.subr.mxu0 0.0
    %1083 = vmatpush1.msra.mxu0 0.0
    %1084 = vmatprep.subr.mxu0 0.0
    %1085 = vmatpush1.msra.mxu0 0.0
    %1086 = vmatprep.subr.mxu0 0.0
    %1087 = vmatpush1.msra.mxu0 0.0
    %1088 = vmatprep.subr.mxu0 0.0
    %1089 = vmatpush1.msra.mxu0 0.0
    %1090 = vmatprep.subr.mxu0 0.0
    %1091 = vmatpush1.msra.mxu0 0.0
    %1092 = vmatprep.subr.mxu0 0.0
    %1093 = vmatpush1.msra.mxu0 0.0
    %1094 = vmatprep.subr.mxu0 0.0
    %1095 = vmatpush1.msra.mxu0 0.0
    %1096 = vmatprep.mubr.f32.mxu0 0.0
    %1097 = vmatmul.mubr.f32.gmra.mrb[0].mxu0 %v1030
    %v1098 = vpop.f32.mrb[0].mxu0
    %v1099 = vadd.f32 %v1026, %v1098
    %v1100 = vpop.f32.mrb[0].mxu0
    %1101 = vdwg.mxu0
    %v1102 = vadd.f32 %v1099, %v231
    %v1103 = vmul.f32 %v1102, %v55
    %v1104 = vtanh.pop %v1103
    %v1105 = vmul.f32 %v1104, 0.5
    %v1106 = vadd.f32 %v1105, 0.5
    %v1107 = vsel %vm239, %v1104, %v1106
    %v1108 = vmul.f32 %v1107, %v777
    %1110 = vrot.lane.b32.xlu0 %v1107, 64
    %v1111 = vpop.permute.xlu0 %1110
    %v1113 = vmul.f32 %v1107, %v1111
    %1115 = vrot.lane.b32.xlu0 %v1113, 32
    %v1116 = vpop.permute.xlu0 %1115
    %v1118 = vadd.f32 %v1108, %v1116
    %v1119 = vtanh.pop %v1118
    %1121 = vrot.lane.b32.xlu0 %v1119, 64
    %v1122 = vpop.permute.xlu0 %1121
    %v1124 = vmul.f32 %v1107, %v1122
    %1126 = vrot.lane.b32.xlu0 %v951, 32
    %v1127 = vpop.permute.xlu0 %1126
    %v1128 = vsel %vm79, %v1127, 0
    %1130 = vmatprep.subr.mxu0 0.0
    %1131 = vmatpush1.msra.mxu0 %v66
    %1132 = vmatprep.subr.mxu0 0.0
    %1133 = vmatpush1.msra.mxu0 %v67
    %1134 = vmatprep.subr.mxu0 0.0
    %1135 = vmatpush1.msra.mxu0 %v68
    %1136 = vmatprep.subr.mxu0 0.0
    %1137 = vmatpush1.msra.mxu0 %v69
    %1138 = vmatprep.subr.mxu0 0.0
    %1139 = vmatpush1.msra.mxu0 0.0
    %1140 = vmatprep.subr.mxu0 0.0
    %1141 = vmatpush1.msra.mxu0 0.0
    %1142 = vmatprep.subr.mxu0 0.0
    %1143 = vmatpush1.msra.mxu0 0.0
    %1144 = vmatprep.subr.mxu0 0.0
    %1145 = vmatpush1.msra.mxu0 0.0
    %1146 = vmatprep.subr.mxu0 0.0
    %1147 = vmatpush1.msra.mxu0 0.0
    %1148 = vmatprep.subr.mxu0 0.0
    %1149 = vmatpush1.msra.mxu0 0.0
    %1150 = vmatprep.subr.mxu0 0.0
    %1151 = vmatpush1.msra.mxu0 0.0
    %1152 = vmatprep.subr.mxu0 0.0
    %1153 = vmatpush1.msra.mxu0 0.0
    %1154 = vmatprep.subr.mxu0 0.0
    %1155 = vmatpush1.msra.mxu0 0.0
    %1156 = vmatprep.subr.mxu0 0.0
    %1157 = vmatpush1.msra.mxu0 0.0
    %1158 = vmatprep.subr.mxu0 0.0
    %1159 = vmatpush1.msra.mxu0 0.0
    %1160 = vmatprep.subr.mxu0 0.0
    %1161 = vmatpush1.msra.mxu0 0.0
    %1162 = vmatprep.subr.mxu0 0.0
    %1163 = vmatpush1.msra.mxu0 0.0
    %1164 = vmatprep.subr.mxu0 0.0
    %1165 = vmatpush1.msra.mxu0 0.0
    %1166 = vmatprep.subr.mxu0 0.0
    %1167 = vmatpush1.msra.mxu0 0.0
    %1168 = vmatprep.subr.mxu0 0.0
    %1169 = vmatpush1.msra.mxu0 0.0
    %1170 = vmatprep.subr.mxu0 0.0
    %1171 = vmatpush1.msra.mxu0 0.0
    %1172 = vmatprep.subr.mxu0 0.0
    %1173 = vmatpush1.msra.mxu0 0.0
    %1174 = vmatprep.subr.mxu0 0.0
    %1175 = vmatpush1.msra.mxu0 0.0
    %1176 = vmatprep.subr.mxu0 0.0
    %1177 = vmatpush1.msra.mxu0 0.0
    %1178 = vmatprep.subr.mxu0 0.0
    %1179 = vmatpush1.msra.mxu0 0.0
    %1180 = vmatprep.subr.mxu0 0.0
    %1181 = vmatpush1.msra.mxu0 0.0
    %1182 = vmatprep.subr.mxu0 0.0
    %1183 = vmatpush1.msra.mxu0 0.0
    %1184 = vmatprep.subr.mxu0 0.0
    %1185 = vmatpush1.msra.mxu0 0.0
    %1186 = vmatprep.subr.mxu0 0.0
    %1187 = vmatpush1.msra.mxu0 0.0
    %1188 = vmatprep.subr.mxu0 0.0
    %1189 = vmatpush1.msra.mxu0 0.0
    %1190 = vmatprep.subr.mxu0 0.0
    %1191 = vmatpush1.msra.mxu0 0.0
    %1192 = vmatprep.subr.mxu0 0.0
    %1193 = vmatpush1.msra.mxu0 0.0
    %1194 = vmatprep.mubr.f32.mxu0 0.0
    %1195 = vmatmul.mubr.f32.gmra.mrb[0].mxu0 %v1128
    %v1196 = vpop.f32.mrb[0].mxu0
    %v1197 = vadd.f32 0.0, %v1196
    %v1198 = vpop.f32.mrb[0].mxu0
    %1199 = vdwg.mxu0
    %1200 = vmatprep.subr.mxu0 0.0
    %1201 = vmatpush1.msra.mxu0 %v58
    %1202 = vmatprep.subr.mxu0 0.0
    %1203 = vmatpush1.msra.mxu0 %v59
    %1204 = vmatprep.subr.mxu0 0.0
    %1205 = vmatpush1.msra.mxu0 %v60
    %1206 = vmatprep.subr.mxu0 0.0
    %1207 = vmatpush1.msra.mxu0 %v61
    %1208 = vmatprep.subr.mxu0 0.0
    %1209 = vmatpush1.msra.mxu0 0.0
    %1210 = vmatprep.subr.mxu0 0.0
    %1211 = vmatpush1.msra.mxu0 0.0
    %1212 = vmatprep.subr.mxu0 0.0
    %1213 = vmatpush1.msra.mxu0 0.0
    %1214 = vmatprep.subr.mxu0 0.0
    %1215 = vmatpush1.msra.mxu0 0.0
    %1216 = vmatprep.subr.mxu0 0.0
    %1217 = vmatpush1.msra.mxu0 0.0
    %1218 = vmatprep.subr.mxu0 0.0
    %1219 = vmatpush1.msra.mxu0 0.0
    %1220 = vmatprep.subr.mxu0 0.0
    %1221 = vmatpush1.msra.mxu0 0.0
    %1222 = vmatprep.subr.mxu0 0.0
    %1223 = vmatpush1.msra.mxu0 0.0
    %1224 = vmatprep.subr.mxu0 0.0
    %1225 = vmatpush1.msra.mxu0 0.0
    %1226 = vmatprep.subr.mxu0 0.0
    %1227 = vmatpush1.msra.mxu0 0.0
    %1228 = vmatprep.subr.mxu0 0.0
    %1229 = vmatpush1.msra.mxu0 0.0
    %1230 = vmatprep.subr.mxu0 0.0
    %1231 = vmatpush1.msra.mxu0 0.0
    %1232 = vmatprep.subr.mxu0 0.0
    %1233 = vmatpush1.msra.mxu0 0.0
    %1234 = vmatprep.subr.mxu0 0.0
    %1235 = vmatpush1.msra.mxu0 0.0
    %1236 = vmatprep.subr.mxu0 0.0
    %1237 = vmatpush1.msra.mxu0 0.0
    %1238 = vmatprep.subr.mxu0 0.0
    %1239 = vmatpush1.msra.mxu0 0.0
    %1240 = vmatprep.subr.mxu0 0.0
    %1241 = vmatpush1.msra.mxu0 0.0
    %1242 = vmatprep.subr.mxu0 0.0
    %1243 = vmatpush1.msra.mxu0 0.0
    %1244 = vmatprep.subr.mxu0 0.0
    %1245 = vmatpush1.msra.mxu0 0.0
    %1246 = vmatprep.subr.mxu0 0.0
    %1247 = vmatpush1.msra.mxu0 0.0
    %1248 = vmatprep.subr.mxu0 0.0
    %1249 = vmatpush1.msra.mxu0 0.0
    %1250 = vmatprep.subr.mxu0 0.0
    %1251 = vmatpush1.msra.mxu0 0.0
    %1252 = vmatprep.subr.mxu0 0.0
    %1253 = vmatpush1.msra.mxu0 0.0
    %1254 = vmatprep.subr.mxu0 0.0
    %1255 = vmatpush1.msra.mxu0 0.0
    %1256 = vmatprep.subr.mxu0 0.0
    %1257 = vmatpush1.msra.mxu0 0.0
    %1258 = vmatprep.subr.mxu0 0.0
    %1259 = vmatpush1.msra.mxu0 0.0
    %1260 = vmatprep.subr.mxu0 0.0
    %1261 = vmatpush1.msra.mxu0 0.0
    %1262 = vmatprep.subr.mxu0 0.0
    %1263 = vmatpush1.msra.mxu0 0.0
    %1264 = vmatprep.mubr.f32.mxu0 0.0
    %1265 = vmatmul.mubr.f32.gmra.mrb[0].mxu0 %v957
    %v1266 = vpop.f32.mrb[0].mxu0
    %v1267 = vadd.f32 %v1197, %v1266
    %v1268 = vpop.f32.mrb[0].mxu0
    %1269 = vdwg.mxu0
    %v1270 = vadd.f32 %v1267, %v582
    %v1271 = vmul.f32 %v1270, %v55
    %v1272 = vtanh.pop %v1271
    %v1273 = vmul.f32 %v1272, 0.5
    %v1274 = vadd.f32 %v1273, 0.5
    %v1275 = vsel %vm239, %v1272, %v1274
    %v1276 = vmul.f32 %v1275, %v945
    %1278 = vrot.lane.b32.xlu0 %v1275, 64
    %v1279 = vpop.permute.xlu0 %1278
    %v1281 = vmul.f32 %v1275, %v1279
    %1283 = vrot.lane.b32.xlu0 %v1281, 32
    %v1284 = vpop.permute.xlu0 %1283
    %v1286 = vadd.f32 %v1276, %v1284
    %v1287 = vtanh.pop %v1286
    %1289 = vrot.lane.b32.xlu0 %v1287, 64
    %v1290 = vpop.permute.xlu0 %1289
    %v1292 = vmul.f32 %v1275, %v1290
    %s1293 = scalar_lea.vmem %s1, 8
    %v1294 = vld [vmem:[%s1293] sm:$0x3]
    %1296 = vrot.lane.b32.xlu0 %v1124, 32
    %v1297 = vpop.permute.xlu0 %1296
    %v1298 = vsel %vm79, %v1297, 0
    %1300 = vmatprep.subr.mxu0 0.0
    %1301 = vmatpush1.msra.mxu0 %v62
    %1302 = vmatprep.subr.mxu0 0.0
    %1303 = vmatpush1.msra.mxu0 %v63
    %1304 = vmatprep.subr.mxu0 0.0
    %1305 = vmatpush1.msra.mxu0 %v64
    %1306 = vmatprep.subr.mxu0 0.0
    %1307 = vmatpush1.msra.mxu0 %v65
    %1308 = vmatprep.subr.mxu0 0.0
    %1309 = vmatpush1.msra.mxu0 0.0
    %1310 = vmatprep.subr.mxu0 0.0
    %1311 = vmatpush1.msra.mxu0 0.0
    %1312 = vmatprep.subr.mxu0 0.0
    %1313 = vmatpush1.msra.mxu0 0.0
    %1314 = vmatprep.subr.mxu0 0.0
    %1315 = vmatpush1.msra.mxu0 0.0
    %1316 = vmatprep.subr.mxu0 0.0
    %1317 = vmatpush1.msra.mxu0 0.0
    %1318 = vmatprep.subr.mxu0 0.0
    %1319 = vmatpush1.msra.mxu0 0.0
    %1320 = vmatprep.subr.mxu0 0.0
    %1321 = vmatpush1.msra.mxu0 0.0
    %1322 = vmatprep.subr.mxu0 0.0
    %1323 = vmatpush1.msra.mxu0 0.0
    %1324 = vmatprep.subr.mxu0 0.0
    %1325 = vmatpush1.msra.mxu0 0.0
    %1326 = vmatprep.subr.mxu0 0.0
    %1327 = vmatpush1.msra.mxu0 0.0
    %1328 = vmatprep.subr.mxu0 0.0
    %1329 = vmatpush1.msra.mxu0 0.0
    %1330 = vmatprep.subr.mxu0 0.0
    %1331 = vmatpush1.msra.mxu0 0.0
    %1332 = vmatprep.subr.mxu0 0.0
    %1333 = vmatpush1.msra.mxu0 0.0
    %1334 = vmatprep.subr.mxu0 0.0
    %1335 = vmatpush1.msra.mxu0 0.0
    %1336 = vmatprep.subr.mxu0 0.0
    %1337 = vmatpush1.msra.mxu0 0.0
    %1338 = vmatprep.subr.mxu0 0.0
    %1339 = vmatpush1.msra.mxu0 0.0
    %1340 = vmatprep.subr.mxu0 0.0
    %1341 = vmatpush1.msra.mxu0 0.0
    %1342 = vmatprep.subr.mxu0 0.0
    %1343 = vmatpush1.msra.mxu0 0.0
    %1344 = vmatprep.subr.mxu0 0.0
    %1345 = vmatpush1.msra.mxu0 0.0
    %1346 = vmatprep.subr.mxu0 0.0
    %1347 = vmatpush1.msra.mxu0 0.0
    %1348 = vmatprep.subr.mxu0 0.0
    %1349 = vmatpush1.msra.mxu0 0.0
    %1350 = vmatprep.subr.mxu0 0.0
    %1351 = vmatpush1.msra.mxu0 0.0
    %1352 = vmatprep.subr.mxu0 0.0
    %1353 = vmatpush1.msra.mxu0 0.0
    %1354 = vmatprep.subr.mxu0 0.0
    %1355 = vmatpush1.msra.mxu0 0.0
    %1356 = vmatprep.subr.mxu0 0.0
    %1357 = vmatpush1.msra.mxu0 0.0
    %1358 = vmatprep.subr.mxu0 0.0
    %1359 = vmatpush1.msra.mxu0 0.0
    %1360 = vmatprep.subr.mxu0 0.0
    %1361 = vmatpush1.msra.mxu0 0.0
    %1362 = vmatprep.subr.mxu0 0.0
    %1363 = vmatpush1.msra.mxu0 0.0
    %1364 = vmatprep.mubr.f32.mxu0 0.0
    %1365 = vmatmul.mubr.f32.gmra.mrb[0].mxu0 %v1298
    %v1366 = vpop.f32.mrb[0].mxu0
    %v1367 = vadd.f32 0.0, %v1366
    %v1368 = vpop.f32.mrb[0].mxu0
    %1369 = vdwg.mxu0
    %v1371 = vsel %vm153, %v1294, 0
    %1373 = vmatprep.subr.mxu0 0.0
    %1374 = vmatpush1.msra.mxu0 %v56
    %1375 = vmatprep.subr.mxu0 0.0
    %1376 = vmatpush1.msra.mxu0 %v57
    %1377 = vmatprep.subr.mxu0 0.0
    %1378 = vmatpush1.msra.mxu0 0.0
    %1379 = vmatprep.subr.mxu0 0.0
    %1380 = vmatpush1.msra.mxu0 0.0
    %1381 = vmatprep.subr.mxu0 0.0
    %1382 = vmatpush1.msra.mxu0 0.0
    %1383 = vmatprep.subr.mxu0 0.0
    %1384 = vmatpush1.msra.mxu0 0.0
    %1385 = vmatprep.subr.mxu0 0.0
    %1386 = vmatpush1.msra.mxu0 0.0
    %1387 = vmatprep.subr.mxu0 0.0
    %1388 = vmatpush1.msra.mxu0 0.0
    %1389 = vmatprep.subr.mxu0 0.0
    %1390 = vmatpush1.msra.mxu0 0.0
    %1391 = vmatprep.subr.mxu0 0.0
    %1392 = vmatpush1.msra.mxu0 0.0
    %1393 = vmatprep.subr.mxu0 0.0
    %1394 = vmatpush1.msra.mxu0 0.0
    %1395 = vmatprep.subr.mxu0 0.0
    %1396 = vmatpush1.msra.mxu0 0.0
    %1397 = vmatprep.subr.mxu0 0.0
    %1398 = vmatpush1.msra.mxu0 0.0
    %1399 = vmatprep.subr.mxu0 0.0
    %1400 = vmatpush1.msra.mxu0 0.0
    %1401 = vmatprep.subr.mxu0 0.0
    %1402 = vmatpush1.msra.mxu0 0.0
    %1403 = vmatprep.subr.mxu0 0.0
    %1404 = vmatpush1.msra.mxu0 0.0
    %1405 = vmatprep.subr.mxu0 0.0
    %1406 = vmatpush1.msra.mxu0 0.0
    %1407 = vmatprep.subr.mxu0 0.0
    %1408 = vmatpush1.msra.mxu0 0.0
    %1409 = vmatprep.subr.mxu0 0.0
    %1410 = vmatpush1.msra.mxu0 0.0
    %1411 = vmatprep.subr.mxu0 0.0
    %1412 = vmatpush1.msra.mxu0 0.0
    %1413 = vmatprep.subr.mxu0 0.0
    %1414 = vmatpush1.msra.mxu0 0.0
    %1415 = vmatprep.subr.mxu0 0.0
    %1416 = vmatpush1.msra.mxu0 0.0
    %1417 = vmatprep.subr.mxu0 0.0
    %1418 = vmatpush1.msra.mxu0 0.0
    %1419 = vmatprep.subr.mxu0 0.0
    %1420 = vmatpush1.msra.mxu0 0.0
    %1421 = vmatprep.subr.mxu0 0.0
    %1422 = vmatpush1.msra.mxu0 0.0
    %1423 = vmatprep.subr.mxu0 0.0
    %1424 = vmatpush1.msra.mxu0 0.0
    %1425 = vmatprep.subr.mxu0 0.0
    %1426 = vmatpush1.msra.mxu0 0.0
    %1427 = vmatprep.subr.mxu0 0.0
    %1428 = vmatpush1.msra.mxu0 0.0
    %1429 = vmatprep.subr.mxu0 0.0
    %1430 = vmatpush1.msra.mxu0 0.0
    %1431 = vmatprep.subr.mxu0 0.0
    %1432 = vmatpush1.msra.mxu0 0.0
    %1433 = vmatprep.subr.mxu0 0.0
    %1434 = vmatpush1.msra.mxu0 0.0
    %1435 = vmatprep.subr.mxu0 0.0
    %1436 = vmatpush1.msra.mxu0 0.0
    %1437 = vmatprep.mubr.f32.mxu0 0.0
    %1438 = vmatmul.mubr.f32.gmra.mrb[0].mxu0 %v1371
    %v1439 = vpop.f32.mrb[0].mxu0
    %v1440 = vadd.f32 %v1367, %v1439
    %v1441 = vpop.f32.mrb[0].mxu0
    %1442 = vdwg.mxu0
    %v1443 = vadd.f32 %v1440, %v231
    %v1444 = vmul.f32 %v1443, %v55
    %v1445 = vtanh.pop %v1444
    %v1446 = vmul.f32 %v1445, 0.5
    %v1447 = vadd.f32 %v1446, 0.5
    %v1448 = vsel %vm239, %v1445, %v1447
    %v1449 = vmul.f32 %v1448, %v1118
    %1451 = vrot.lane.b32.xlu0 %v1448, 64
    %v1452 = vpop.permute.xlu0 %1451
    %v1454 = vmul.f32 %v1448, %v1452
    %1456 = vrot.lane.b32.xlu0 %v1454, 32
    %v1457 = vpop.permute.xlu0 %1456
    %v1459 = vadd.f32 %v1449, %v1457
    %v1460 = vtanh.pop %v1459
    %1462 = vrot.lane.b32.xlu0 %v1460, 64
    %v1463 = vpop.permute.xlu0 %1462
    %v1465 = vmul.f32 %v1448, %v1463
    %1467 = vrot.lane.b32.xlu0 %v1292, 32
    %v1468 = vpop.permute.xlu0 %1467
    %v1469 = vsel %vm79, %v1468, 0
    %1471 = vmatprep.subr.mxu0 0.0
    %1472 = vmatpush1.msra.mxu0 %v66
    %1473 = vmatprep.subr.mxu0 0.0
    %1474 = vmatpush1.msra.mxu0 %v67
    %1475 = vmatprep.subr.mxu0 0.0
    %1476 = vmatpush1.msra.mxu0 %v68
    %1477 = vmatprep.subr.mxu0 0.0
    %1478 = vmatpush1.msra.mxu0 %v69
    %1479 = vmatprep.subr.mxu0 0.0
    %1480 = vmatpush1.msra.mxu0 0.0
    %1481 = vmatprep.subr.mxu0 0.0
    %1482 = vmatpush1.msra.mxu0 0.0
    %1483 = vmatprep.subr.mxu0 0.0
    %1484 = vmatpush1.msra.mxu0 0.0
    %1485 = vmatprep.subr.mxu0 0.0
    %1486 = vmatpush1.msra.mxu0 0.0
    %1487 = vmatprep.subr.mxu0 0.0
    %1488 = vmatpush1.msra.mxu0 0.0
    %1489 = vmatprep.subr.mxu0 0.0
    %1490 = vmatpush1.msra.mxu0 0.0
    %1491 = vmatprep.subr.mxu0 0.0
    %1492 = vmatpush1.msra.mxu0 0.0
    %1493 = vmatprep.subr.mxu0 0.0
    %1494 = vmatpush1.msra.mxu0 0.0
    %1495 = vmatprep.subr.mxu0 0.0
    %1496 = vmatpush1.msra.mxu0 0.0
    %1497 = vmatprep.subr.mxu0 0.0
    %1498 = vmatpush1.msra.mxu0 0.0
    %1499 = vmatprep.subr.mxu0 0.0
    %1500 = vmatpush1.msra.mxu0 0.0
    %1501 = vmatprep.subr.mxu0 0.0
    %1502 = vmatpush1.msra.mxu0 0.0
    %1503 = vmatprep.subr.mxu0 0.0
    %1504 = vmatpush1.msra.mxu0 0.0
    %1505 = vmatprep.subr.mxu0 0.0
    %1506 = vmatpush1.msra.mxu0 0.0
    %1507 = vmatprep.subr.mxu0 0.0
    %1508 = vmatpush1.msra.mxu0 0.0
    %1509 = vmatprep.subr.mxu0 0.0
    %1510 = vmatpush1.msra.mxu0 0.0
    %1511 = vmatprep.subr.mxu0 0.0
    %1512 = vmatpush1.msra.mxu0 0.0
    %1513 = vmatprep.subr.mxu0 0.0
    %1514 = vmatpush1.msra.mxu0 0.0
    %1515 = vmatprep.subr.mxu0 0.0
    %1516 = vmatpush1.msra.mxu0 0.0
    %1517 = vmatprep.subr.mxu0 0.0
    %1518 = vmatpush1.msra.mxu0 0.0
    %1519 = vmatprep.subr.mxu0 0.0
    %1520 = vmatpush1.msra.mxu0 0.0
    %1521 = vmatprep.subr.mxu0 0.0
    %1522 = vmatpush1.msra.mxu0 0.0
    %1523 = vmatprep.subr.mxu0 0.0
    %1524 = vmatpush1.msra.mxu0 0.0
    %1525 = vmatprep.subr.mxu0 0.0
    %1526 = vmatpush1.msra.mxu0 0.0
    %1527 = vmatprep.subr.mxu0 0.0
    %1528 = vmatpush1.msra.mxu0 0.0
    %1529 = vmatprep.subr.mxu0 0.0
    %1530 = vmatpush1.msra.mxu0 0.0
    %1531 = vmatprep.subr.mxu0 0.0
    %1532 = vmatpush1.msra.mxu0 0.0
    %1533 = vmatprep.subr.mxu0 0.0
    %1534 = vmatpush1.msra.mxu0 0.0
    %1535 = vmatprep.mubr.f32.mxu0 0.0
    %1536 = vmatmul.mubr.f32.gmra.mrb[0].mxu0 %v1469
    %v1537 = vpop.f32.mrb[0].mxu0
    %v1538 = vadd.f32 0.0, %v1537
    %v1539 = vpop.f32.mrb[0].mxu0
    %1540 = vdwg.mxu0
    %1541 = vmatprep.subr.mxu0 0.0
    %1542 = vmatpush1.msra.mxu0 %v58
    %1543 = vmatprep.subr.mxu0 0.0
    %1544 = vmatpush1.msra.mxu0 %v59
    %1545 = vmatprep.subr.mxu0 0.0
    %1546 = vmatpush1.msra.mxu0 %v60
    %1547 = vmatprep.subr.mxu0 0.0
    %1548 = vmatpush1.msra.mxu0 %v61
    %1549 = vmatprep.subr.mxu0 0.0
    %1550 = vmatpush1.msra.mxu0 0.0
    %1551 = vmatprep.subr.mxu0 0.0
    %1552 = vmatpush1.msra.mxu0 0.0
    %1553 = vmatprep.subr.mxu0 0.0
    %1554 = vmatpush1.msra.mxu0 0.0
    %1555 = vmatprep.subr.mxu0 0.0
    %1556 = vmatpush1.msra.mxu0 0.0
    %1557 = vmatprep.subr.mxu0 0.0
    %1558 = vmatpush1.msra.mxu0 0.0
    %1559 = vmatprep.subr.mxu0 0.0
    %1560 = vmatpush1.msra.mxu0 0.0
    %1561 = vmatprep.subr.mxu0 0.0
    %1562 = vmatpush1.msra.mxu0 0.0
    %1563 = vmatprep.subr.mxu0 0.0
    %1564 = vmatpush1.msra.mxu0 0.0
    %1565 = vmatprep.subr.mxu0 0.0
    %1566 = vmatpush1.msra.mxu0 0.0
    %1567 = vmatprep.subr.mxu0 0.0
    %1568 = vmatpush1.msra.mxu0 0.0
    %1569 = vmatprep.subr.mxu0 0.0
    %1570 = vmatpush1.msra.mxu0 0.0
    %1571 = vmatprep.subr.mxu0 0.0
    %1572 = vmatpush1.msra.mxu0 0.0
    %1573 = vmatprep.subr.mxu0 0.0
    %1574 = vmatpush1.msra.mxu0 0.0
    %1575 = vmatprep.subr.mxu0 0.0
    %1576 = vmatpush1.msra.mxu0 0.0
    %1577 = vmatprep.subr.mxu0 0.0
    %1578 = vmatpush1.msra.mxu0 0.0
    %1579 = vmatprep.subr.mxu0 0.0
    %1580 = vmatpush1.msra.mxu0 0.0
    %1581 = vmatprep.subr.mxu0 0.0
    %1582 = vmatpush1.msra.mxu0 0.0
    %1583 = vmatprep.subr.mxu0 0.0
    %1584 = vmatpush1.msra.mxu0 0.0
    %1585 = vmatprep.subr.mxu0 0.0
    %1586 = vmatpush1.msra.mxu0 0.0
    %1587 = vmatprep.subr.mxu0 0.0
    %1588 = vmatpush1.msra.mxu0 0.0
    %1589 = vmatprep.subr.mxu0 0.0
    %1590 = vmatpush1.msra.mxu0 0.0
    %1591 = vmatprep.subr.mxu0 0.0
    %1592 = vmatpush1.msra.mxu0 0.0
    %1593 = vmatprep.subr.mxu0 0.0
    %1594 = vmatpush1.msra.mxu0 0.0
    %1595 = vmatprep.subr.mxu0 0.0
    %1596 = vmatpush1.msra.mxu0 0.0
    %1597 = vmatprep.subr.mxu0 0.0
    %1598 = vmatpush1.msra.mxu0 0.0
    %1599 = vmatprep.subr.mxu0 0.0
    %1600 = vmatpush1.msra.mxu0 0.0
    %1601 = vmatprep.subr.mxu0 0.0
    %1602 = vmatpush1.msra.mxu0 0.0
    %1603 = vmatprep.subr.mxu0 0.0
    %1604 = vmatpush1.msra.mxu0 0.0
    %1605 = vmatprep.mubr.f32.mxu0 0.0
    %1606 = vmatmul.mubr.f32.gmra.mrb[0].mxu0 %v1298
    %v1607 = vpop.f32.mrb[0].mxu0
    %v1608 = vadd.f32 %v1538, %v1607
    %v1609 = vpop.f32.mrb[0].mxu0
    %1610 = vdwg.mxu0
    %v1611 = vadd.f32 %v1608, %v582
    %v1612 = vmul.f32 %v1611, %v55
    %v1613 = vtanh.pop %v1612
    %v1614 = vmul.f32 %v1613, 0.5
    %v1615 = vadd.f32 %v1614, 0.5
    %v1616 = vsel %vm239, %v1613, %v1615
    %v1617 = vmul.f32 %v1616, %v1286
    %1619 = vrot.lane.b32.xlu0 %v1616, 64
    %v1620 = vpop.permute.xlu0 %1619
    %v1622 = vmul.f32 %v1616, %v1620
    %1624 = vrot.lane.b32.xlu0 %v1622, 32
    %v1625 = vpop.permute.xlu0 %1624
    %v1627 = vadd.f32 %v1617, %v1625
    %v1628 = vtanh.pop %v1627
    %1630 = vrot.lane.b32.xlu0 %v1628, 64
    %v1631 = vpop.permute.xlu0 %1630
    %v1633 = vmul.f32 %v1616, %v1631
    %s1634 = scalar_lea.vmem %s1, 10
    %v1635 = vld [vmem:[%s1634] sm:$0x3]
    %1637 = vrot.lane.b32.xlu0 %v1465, 32
    %v1638 = vpop.permute.xlu0 %1637
    %v1639 = vsel %vm79, %v1638, 0
    %1641 = vmatprep.subr.mxu0 0.0
    %1642 = vmatpush1.msra.mxu0 %v62
    %1643 = vmatprep.subr.mxu0 0.0
    %1644 = vmatpush1.msra.mxu0 %v63
    %1645 = vmatprep.subr.mxu0 0.0
    %1646 = vmatpush1.msra.mxu0 %v64
    %1647 = vmatprep.subr.mxu0 0.0
    %1648 = vmatpush1.msra.mxu0 %v65
    %1649 = vmatprep.subr.mxu0 0.0
    %1650 = vmatpush1.msra.mxu0 0.0
    %1651 = vmatprep.subr.mxu0 0.0
    %1652 = vmatpush1.msra.mxu0 0.0
    %1653 = vmatprep.subr.mxu0 0.0
    %1654 = vmatpush1.msra.mxu0 0.0
    %1655 = vmatprep.subr.mxu0 0.0
    %1656 = vmatpush1.msra.mxu0 0.0
    %1657 = vmatprep.subr.mxu0 0.0
    %1658 = vmatpush1.msra.mxu0 0.0
    %1659 = vmatprep.subr.mxu0 0.0
    %1660 = vmatpush1.msra.mxu0 0.0
    %1661 = vmatprep.subr.mxu0 0.0
    %1662 = vmatpush1.msra.mxu0 0.0
    %1663 = vmatprep.subr.mxu0 0.0
    %1664 = vmatpush1.msra.mxu0 0.0
    %1665 = vmatprep.subr.mxu0 0.0
    %1666 = vmatpush1.msra.mxu0 0.0
    %1667 = vmatprep.subr.mxu0 0.0
    %1668 = vmatpush1.msra.mxu0 0.0
    %1669 = vmatprep.subr.mxu0 0.0
    %1670 = vmatpush1.msra.mxu0 0.0
    %1671 = vmatprep.subr.mxu0 0.0
    %1672 = vmatpush1.msra.mxu0 0.0
    %1673 = vmatprep.subr.mxu0 0.0
    %1674 = vmatpush1.msra.mxu0 0.0
    %1675 = vmatprep.subr.mxu0 0.0
    %1676 = vmatpush1.msra.mxu0 0.0
    %1677 = vmatprep.subr.mxu0 0.0
    %1678 = vmatpush1.msra.mxu0 0.0
    %1679 = vmatprep.subr.mxu0 0.0
    %1680 = vmatpush1.msra.mxu0 0.0
    %1681 = vmatprep.subr.mxu0 0.0
    %1682 = vmatpush1.msra.mxu0 0.0
    %1683 = vmatprep.subr.mxu0 0.0
    %1684 = vmatpush1.msra.mxu0 0.0
    %1685 = vmatprep.subr.mxu0 0.0
    %1686 = vmatpush1.msra.mxu0 0.0
    %1687 = vmatprep.subr.mxu0 0.0
    %1688 = vmatpush1.msra.mxu0 0.0
    %1689 = vmatprep.subr.mxu0 0.0
    %1690 = vmatpush1.msra.mxu0 0.0
    %1691 = vmatprep.subr.mxu0 0.0
    %1692 = vmatpush1.msra.mxu0 0.0
    %1693 = vmatprep.subr.mxu0 0.0
    %1694 = vmatpush1.msra.mxu0 0.0
    %1695 = vmatprep.subr.mxu0 0.0
    %1696 = vmatpush1.msra.mxu0 0.0
    %1697 = vmatprep.subr.mxu0 0.0
    %1698 = vmatpush1.msra.mxu0 0.0
    %1699 = vmatprep.subr.mxu0 0.0
    %1700 = vmatpush1.msra.mxu0 0.0
    %1701 = vmatprep.subr.mxu0 0.0
    %1702 = vmatpush1.msra.mxu0 0.0
    %1703 = vmatprep.subr.mxu0 0.0
    %1704 = vmatpush1.msra.mxu0 0.0
    %1705 = vmatprep.mubr.f32.mxu0 0.0
    %1706 = vmatmul.mubr.f32.gmra.mrb[0].mxu0 %v1639
    %v1707 = vpop.f32.mrb[0].mxu0
    %v1708 = vadd.f32 0.0, %v1707
    %v1709 = vpop.f32.mrb[0].mxu0
    %1710 = vdwg.mxu0
    %v1712 = vsel %vm153, %v1635, 0
    %1714 = vmatprep.subr.mxu0 0.0
    %1715 = vmatpush1.msra.mxu0 %v56
    %1716 = vmatprep.subr.mxu0 0.0
    %1717 = vmatpush1.msra.mxu0 %v57
    %1718 = vmatprep.subr.mxu0 0.0
    %1719 = vmatpush1.msra.mxu0 0.0
    %1720 = vmatprep.subr.mxu0 0.0
    %1721 = vmatpush1.msra.mxu0 0.0
    %1722 = vmatprep.subr.mxu0 0.0
    %1723 = vmatpush1.msra.mxu0 0.0
    %1724 = vmatprep.subr.mxu0 0.0
    %1725 = vmatpush1.msra.mxu0 0.0
    %1726 = vmatprep.subr.mxu0 0.0
    %1727 = vmatpush1.msra.mxu0 0.0
    %1728 = vmatprep.subr.mxu0 0.0
    %1729 = vmatpush1.msra.mxu0 0.0
    %1730 = vmatprep.subr.mxu0 0.0
    %1731 = vmatpush1.msra.mxu0 0.0
    %1732 = vmatprep.subr.mxu0 0.0
    %1733 = vmatpush1.msra.mxu0 0.0
    %1734 = vmatprep.subr.mxu0 0.0
    %1735 = vmatpush1.msra.mxu0 0.0
    %1736 = vmatprep.subr.mxu0 0.0
    %1737 = vmatpush1.msra.mxu0 0.0
    %1738 = vmatprep.subr.mxu0 0.0
    %1739 = vmatpush1.msra.mxu0 0.0
    %1740 = vmatprep.subr.mxu0 0.0
    %1741 = vmatpush1.msra.mxu0 0.0
    %1742 = vmatprep.subr.mxu0 0.0
    %1743 = vmatpush1.msra.mxu0 0.0
    %1744 = vmatprep.subr.mxu0 0.0
    %1745 = vmatpush1.msra.mxu0 0.0
    %1746 = vmatprep.subr.mxu0 0.0
    %1747 = vmatpush1.msra.mxu0 0.0
    %1748 = vmatprep.subr.mxu0 0.0
    %1749 = vmatpush1.msra.mxu0 0.0
    %1750 = vmatprep.subr.mxu0 0.0
    %1751 = vmatpush1.msra.mxu0 0.0
    %1752 = vmatprep.subr.mxu0 0.0
    %1753 = vmatpush1.msra.mxu0 0.0
    %1754 = vmatprep.subr.mxu0 0.0
    %1755 = vmatpush1.msra.mxu0 0.0
    %1756 = vmatprep.subr.mxu0 0.0
    %1757 = vmatpush1.msra.mxu0 0.0
    %1758 = vmatprep.subr.mxu0 0.0
    %1759 = vmatpush1.msra.mxu0 0.0
    %1760 = vmatprep.subr.mxu0 0.0
    %1761 = vmatpush1.msra.mxu0 0.0
    %1762 = vmatprep.subr.mxu0 0.0
    %1763 = vmatpush1.msra.mxu0 0.0
    %1764 = vmatprep.subr.mxu0 0.0
    %1765 = vmatpush1.msra.mxu0 0.0
    %1766 = vmatprep.subr.mxu0 0.0
    %1767 = vmatpush1.msra.mxu0 0.0
    %1768 = vmatprep.subr.mxu0 0.0
    %1769 = vmatpush1.msra.mxu0 0.0
    %1770 = vmatprep.subr.mxu0 0.0
    %1771 = vmatpush1.msra.mxu0 0.0
    %1772 = vmatprep.subr.mxu0 0.0
    %1773 = vmatpush1.msra.mxu0 0.0
    %1774 = vmatprep.subr.mxu0 0.0
    %1775 = vmatpush1.msra.mxu0 0.0
    %1776 = vmatprep.subr.mxu0 0.0
    %1777 = vmatpush1.msra.mxu0 0.0
    %1778 = vmatprep.mubr.f32.mxu0 0.0
    %1779 = vmatmul.mubr.f32.gmra.mrb[0].mxu0 %v1712
    %v1780 = vpop.f32.mrb[0].mxu0
    %v1781 = vadd.f32 %v1708, %v1780
    %v1782 = vpop.f32.mrb[0].mxu0
    %1783 = vdwg.mxu0
    %v1784 = vadd.f32 %v1781, %v231
    %v1785 = vmul.f32 %v1784, %v55
    %v1786 = vtanh.pop %v1785
    %v1787 = vmul.f32 %v1786, 0.5
    %v1788 = vadd.f32 %v1787, 0.5
    %v1789 = vsel %vm239, %v1786, %v1788
    %v1790 = vmul.f32 %v1789, %v1459
    %1792 = vrot.lane.b32.xlu0 %v1789, 64
    %v1793 = vpop.permute.xlu0 %1792
    %v1795 = vmul.f32 %v1789, %v1793
    %1797 = vrot.lane.b32.xlu0 %v1795, 32
    %v1798 = vpop.permute.xlu0 %1797
    %v1800 = vadd.f32 %v1790, %v1798
    %v1801 = vtanh.pop %v1800
    %1803 = vrot.lane.b32.xlu0 %v1801, 64
    %v1804 = vpop.permute.xlu0 %1803
    %v1806 = vmul.f32 %v1789, %v1804
    %1808 = vrot.lane.b32.xlu0 %v1633, 32
    %v1809 = vpop.permute.xlu0 %1808
    %v1810 = vsel %vm79, %v1809, 0
    %1812 = vmatprep.subr.mxu0 0.0
    %1813 = vmatpush1.msra.mxu0 %v66
    %1814 = vmatprep.subr.mxu0 0.0
    %1815 = vmatpush1.msra.mxu0 %v67
    %1816 = vmatprep.subr.mxu0 0.0
    %1817 = vmatpush1.msra.mxu0 %v68
    %1818 = vmatprep.subr.mxu0 0.0
    %1819 = vmatpush1.msra.mxu0 %v69
    %1820 = vmatprep.subr.mxu0 0.0
    %1821 = vmatpush1.msra.mxu0 0.0
    %1822 = vmatprep.subr.mxu0 0.0
    %1823 = vmatpush1.msra.mxu0 0.0
    %1824 = vmatprep.subr.mxu0 0.0
    %1825 = vmatpush1.msra.mxu0 0.0
    %1826 = vmatprep.subr.mxu0 0.0
    %1827 = vmatpush1.msra.mxu0 0.0
    %1828 = vmatprep.subr.mxu0 0.0
    %1829 = vmatpush1.msra.mxu0 0.0
    %1830 = vmatprep.subr.mxu0 0.0
    %1831 = vmatpush1.msra.mxu0 0.0
    %1832 = vmatprep.subr.mxu0 0.0
    %1833 = vmatpush1.msra.mxu0 0.0
    %1834 = vmatprep.subr.mxu0 0.0
    %1835 = vmatpush1.msra.mxu0 0.0
    %1836 = vmatprep.subr.mxu0 0.0
    %1837 = vmatpush1.msra.mxu0 0.0
    %1838 = vmatprep.subr.mxu0 0.0
    %1839 = vmatpush1.msra.mxu0 0.0
    %1840 = vmatprep.subr.mxu0 0.0
    %1841 = vmatpush1.msra.mxu0 0.0
    %1842 = vmatprep.subr.mxu0 0.0
    %1843 = vmatpush1.msra.mxu0 0.0
    %1844 = vmatprep.subr.mxu0 0.0
    %1845 = vmatpush1.msra.mxu0 0.0
    %1846 = vmatprep.subr.mxu0 0.0
    %1847 = vmatpush1.msra.mxu0 0.0
    %1848 = vmatprep.subr.mxu0 0.0
    %1849 = vmatpush1.msra.mxu0 0.0
    %1850 = vmatprep.subr.mxu0 0.0
    %1851 = vmatpush1.msra.mxu0 0.0
    %1852 = vmatprep.subr.mxu0 0.0
    %1853 = vmatpush1.msra.mxu0 0.0
    %1854 = vmatprep.subr.mxu0 0.0
    %1855 = vmatpush1.msra.mxu0 0.0
    %1856 = vmatprep.subr.mxu0 0.0
    %1857 = vmatpush1.msra.mxu0 0.0
    %1858 = vmatprep.subr.mxu0 0.0
    %1859 = vmatpush1.msra.mxu0 0.0
    %1860 = vmatprep.subr.mxu0 0.0
    %1861 = vmatpush1.msra.mxu0 0.0
    %1862 = vmatprep.subr.mxu0 0.0
    %1863 = vmatpush1.msra.mxu0 0.0
    %1864 = vmatprep.subr.mxu0 0.0
    %1865 = vmatpush1.msra.mxu0 0.0
    %1866 = vmatprep.subr.mxu0 0.0
    %1867 = vmatpush1.msra.mxu0 0.0
    %1868 = vmatprep.subr.mxu0 0.0
    %1869 = vmatpush1.msra.mxu0 0.0
    %1870 = vmatprep.subr.mxu0 0.0
    %1871 = vmatpush1.msra.mxu0 0.0
    %1872 = vmatprep.subr.mxu0 0.0
    %1873 = vmatpush1.msra.mxu0 0.0
    %1874 = vmatprep.subr.mxu0 0.0
    %1875 = vmatpush1.msra.mxu0 0.0
    %1876 = vmatprep.mubr.f32.mxu0 0.0
    %1877 = vmatmul.mubr.f32.gmra.mrb[0].mxu0 %v1810
    %v1878 = vpop.f32.mrb[0].mxu0
    %v1879 = vadd.f32 0.0, %v1878
    %v1880 = vpop.f32.mrb[0].mxu0
    %1881 = vdwg.mxu0
    %1882 = vmatprep.subr.mxu0 0.0
    %1883 = vmatpush1.msra.mxu0 %v58
    %1884 = vmatprep.subr.mxu0 0.0
    %1885 = vmatpush1.msra.mxu0 %v59
    %1886 = vmatprep.subr.mxu0 0.0
    %1887 = vmatpush1.msra.mxu0 %v60
    %1888 = vmatprep.subr.mxu0 0.0
    %1889 = vmatpush1.msra.mxu0 %v61
    %1890 = vmatprep.subr.mxu0 0.0
    %1891 = vmatpush1.msra.mxu0 0.0
    %1892 = vmatprep.subr.mxu0 0.0
    %1893 = vmatpush1.msra.mxu0 0.0
    %1894 = vmatprep.subr.mxu0 0.0
    %1895 = vmatpush1.msra.mxu0 0.0
    %1896 = vmatprep.subr.mxu0 0.0
    %1897 = vmatpush1.msra.mxu0 0.0
    %1898 = vmatprep.subr.mxu0 0.0
    %1899 = vmatpush1.msra.mxu0 0.0
    %1900 = vmatprep.subr.mxu0 0.0
    %1901 = vmatpush1.msra.mxu0 0.0
    %1902 = vmatprep.subr.mxu0 0.0
    %1903 = vmatpush1.msra.mxu0 0.0
    %1904 = vmatprep.subr.mxu0 0.0
    %1905 = vmatpush1.msra.mxu0 0.0
    %1906 = vmatprep.subr.mxu0 0.0
    %1907 = vmatpush1.msra.mxu0 0.0
    %1908 = vmatprep.subr.mxu0 0.0
    %1909 = vmatpush1.msra.mxu0 0.0
    %1910 = vmatprep.subr.mxu0 0.0
    %1911 = vmatpush1.msra.mxu0 0.0
    %1912 = vmatprep.subr.mxu0 0.0
    %1913 = vmatpush1.msra.mxu0 0.0
    %1914 = vmatprep.subr.mxu0 0.0
    %1915 = vmatpush1.msra.mxu0 0.0
    %1916 = vmatprep.subr.mxu0 0.0
    %1917 = vmatpush1.msra.mxu0 0.0
    %1918 = vmatprep.subr.mxu0 0.0
    %1919 = vmatpush1.msra.mxu0 0.0
    %1920 = vmatprep.subr.mxu0 0.0
    %1921 = vmatpush1.msra.mxu0 0.0
    %1922 = vmatprep.subr.mxu0 0.0
    %1923 = vmatpush1.msra.mxu0 0.0
    %1924 = vmatprep.subr.mxu0 0.0
    %1925 = vmatpush1.msra.mxu0 0.0
    %1926 = vmatprep.subr.mxu0 0.0
    %1927 = vmatpush1.msra.mxu0 0.0
    %1928 = vmatprep.subr.mxu0 0.0
    %1929 = vmatpush1.msra.mxu0 0.0
    %1930 = vmatprep.subr.mxu0 0.0
    %1931 = vmatpush1.msra.mxu0 0.0
    %1932 = vmatprep.subr.mxu0 0.0
    %1933 = vmatpush1.msra.mxu0 0.0
    %1934 = vmatprep.subr.mxu0 0.0
    %1935 = vmatpush1.msra.mxu0 0.0
    %1936 = vmatprep.subr.mxu0 0.0
    %1937 = vmatpush1.msra.mxu0 0.0
    %1938 = vmatprep.subr.mxu0 0.0
    %1939 = vmatpush1.msra.mxu0 0.0
    %1940 = vmatprep.subr.mxu0 0.0
    %1941 = vmatpush1.msra.mxu0 0.0
    %1942 = vmatprep.subr.mxu0 0.0
    %1943 = vmatpush1.msra.mxu0 0.0
    %1944 = vmatprep.subr.mxu0 0.0
    %1945 = vmatpush1.msra.mxu0 0.0
    %1946 = vmatprep.mubr.f32.mxu0 0.0
    %1947 = vmatmul.mubr.f32.gmra.mrb[0].mxu0 %v1639
    %v1948 = vpop.f32.mrb[0].mxu0
    %v1949 = vadd.f32 %v1879, %v1948
    %v1950 = vpop.f32.mrb[0].mxu0
    %1951 = vdwg.mxu0
    %v1952 = vadd.f32 %v1949, %v582
    %v1953 = vmul.f32 %v1952, %v55
    %v1954 = vtanh.pop %v1953
    %v1955 = vmul.f32 %v1954, 0.5
    %v1956 = vadd.f32 %v1955, 0.5
    %v1957 = vsel %vm239, %v1954, %v1956
    %v1958 = vmul.f32 %v1957, %v1627
    %1960 = vrot.lane.b32.xlu0 %v1957, 64
    %v1961 = vpop.permute.xlu0 %1960
    %v1963 = vmul.f32 %v1957, %v1961
    %1965 = vrot.lane.b32.xlu0 %v1963, 32
    %v1966 = vpop.permute.xlu0 %1965
    %v1968 = vadd.f32 %v1958, %v1966
    %v1969 = vtanh.pop %v1968
    %1971 = vrot.lane.b32.xlu0 %v1969, 64
    %v1972 = vpop.permute.xlu0 %1971
    %v1974 = vmul.f32 %v1957, %v1972
    %s1975 = scalar_lea.vmem %s1, 12
    %v1976 = vld [vmem:[%s1975] sm:$0x3]
    %1978 = vrot.lane.b32.xlu0 %v1806, 32
    %v1979 = vpop.permute.xlu0 %1978
    %v1980 = vsel %vm79, %v1979, 0
    %1982 = vmatprep.subr.mxu0 0.0
    %1983 = vmatpush1.msra.mxu0 %v62
    %1984 = vmatprep.subr.mxu0 0.0
    %1985 = vmatpush1.msra.mxu0 %v63
    %1986 = vmatprep.subr.mxu0 0.0
    %1987 = vmatpush1.msra.mxu0 %v64
    %1988 = vmatprep.subr.mxu0 0.0
    %1989 = vmatpush1.msra.mxu0 %v65
    %1990 = vmatprep.subr.mxu0 0.0
    %1991 = vmatpush1.msra.mxu0 0.0
    %1992 = vmatprep.subr.mxu0 0.0
    %1993 = vmatpush1.msra.mxu0 0.0
    %1994 = vmatprep.subr.mxu0 0.0
    %1995 = vmatpush1.msra.mxu0 0.0
    %1996 = vmatprep.subr.mxu0 0.0
    %1997 = vmatpush1.msra.mxu0 0.0
    %1998 = vmatprep.subr.mxu0 0.0
    %1999 = vmatpush1.msra.mxu0 0.0
    %2000 = vmatprep.subr.mxu0 0.0
    %2001 = vmatpush1.msra.mxu0 0.0
    %2002 = vmatprep.subr.mxu0 0.0
    %2003 = vmatpush1.msra.mxu0 0.0
    %2004 = vmatprep.subr.mxu0 0.0
    %2005 = vmatpush1.msra.mxu0 0.0
    %2006 = vmatprep.subr.mxu0 0.0
    %2007 = vmatpush1.msra.mxu0 0.0
    %2008 = vmatprep.subr.mxu0 0.0
    %2009 = vmatpush1.msra.mxu0 0.0
    %2010 = vmatprep.subr.mxu0 0.0
    %2011 = vmatpush1.msra.mxu0 0.0
    %2012 = vmatprep.subr.mxu0 0.0
    %2013 = vmatpush1.msra.mxu0 0.0
    %2014 = vmatprep.subr.mxu0 0.0
    %2015 = vmatpush1.msra.mxu0 0.0
    %2016 = vmatprep.subr.mxu0 0.0
    %2017 = vmatpush1.msra.mxu0 0.0
    %2018 = vmatprep.subr.mxu0 0.0
    %2019 = vmatpush1.msra.mxu0 0.0
    %2020 = vmatprep.subr.mxu0 0.0
    %2021 = vmatpush1.msra.mxu0 0.0
    %2022 = vmatprep.subr.mxu0 0.0
    %2023 = vmatpush1.msra.mxu0 0.0
    %2024 = vmatprep.subr.mxu0 0.0
    %2025 = vmatpush1.msra.mxu0 0.0
    %2026 = vmatprep.subr.mxu0 0.0
    %2027 = vmatpush1.msra.mxu0 0.0
    %2028 = vmatprep.subr.mxu0 0.0
    %2029 = vmatpush1.msra.mxu0 0.0
    %2030 = vmatprep.subr.mxu0 0.0
    %2031 = vmatpush1.msra.mxu0 0.0
    %2032 = vmatprep.subr.mxu0 0.0
    %2033 = vmatpush1.msra.mxu0 0.0
    %2034 = vmatprep.subr.mxu0 0.0
    %2035 = vmatpush1.msra.mxu0 0.0
    %2036 = vmatprep.subr.mxu0 0.0
    %2037 = vmatpush1.msra.mxu0 0.0
    %2038 = vmatprep.subr.mxu0 0.0
    %2039 = vmatpush1.msra.mxu0 0.0
    %2040 = vmatprep.subr.mxu0 0.0
    %2041 = vmatpush1.msra.mxu0 0.0
    %2042 = vmatprep.subr.mxu0 0.0
    %2043 = vmatpush1.msra.mxu0 0.0
    %2044 = vmatprep.subr.mxu0 0.0
    %2045 = vmatpush1.msra.mxu0 0.0
    %2046 = vmatprep.mubr.f32.mxu0 0.0
    %2047 = vmatmul.mubr.f32.gmra.mrb[0].mxu0 %v1980
    %v2048 = vpop.f32.mrb[0].mxu0
    %v2049 = vadd.f32 0.0, %v2048
    %v2050 = vpop.f32.mrb[0].mxu0
    %2051 = vdwg.mxu0
    %v2053 = vsel %vm153, %v1976, 0
    %2055 = vmatprep.subr.mxu0 0.0
    %2056 = vmatpush1.msra.mxu0 %v56
    %2057 = vmatprep.subr.mxu0 0.0
    %2058 = vmatpush1.msra.mxu0 %v57
    %2059 = vmatprep.subr.mxu0 0.0
    %2060 = vmatpush1.msra.mxu0 0.0
    %2061 = vmatprep.subr.mxu0 0.0
    %2062 = vmatpush1.msra.mxu0 0.0
    %2063 = vmatprep.subr.mxu0 0.0
    %2064 = vmatpush1.msra.mxu0 0.0
    %2065 = vmatprep.subr.mxu0 0.0
    %2066 = vmatpush1.msra.mxu0 0.0
    %2067 = vmatprep.subr.mxu0 0.0
    %2068 = vmatpush1.msra.mxu0 0.0
    %2069 = vmatprep.subr.mxu0 0.0
    %2070 = vmatpush1.msra.mxu0 0.0
    %2071 = vmatprep.subr.mxu0 0.0
    %2072 = vmatpush1.msra.mxu0 0.0
    %2073 = vmatprep.subr.mxu0 0.0
    %2074 = vmatpush1.msra.mxu0 0.0
    %2075 = vmatprep.subr.mxu0 0.0
    %2076 = vmatpush1.msra.mxu0 0.0
    %2077 = vmatprep.subr.mxu0 0.0
    %2078 = vmatpush1.msra.mxu0 0.0
    %2079 = vmatprep.subr.mxu0 0.0
    %2080 = vmatpush1.msra.mxu0 0.0
    %2081 = vmatprep.subr.mxu0 0.0
    %2082 = vmatpush1.msra.mxu0 0.0
    %2083 = vmatprep.subr.mxu0 0.0
    %2084 = vmatpush1.msra.mxu0 0.0
    %2085 = vmatprep.subr.mxu0 0.0
    %2086 = vmatpush1.msra.mxu0 0.0
    %2087 = vmatprep.subr.mxu0 0.0
    %2088 = vmatpush1.msra.mxu0 0.0
    %2089 = vmatprep.subr.mxu0 0.0
    %2090 = vmatpush1.msra.mxu0 0.0
    %2091 = vmatprep.subr.mxu0 0.0
    %2092 = vmatpush1.msra.mxu0 0.0
    %2093 = vmatprep.subr.mxu0 0.0
    %2094 = vmatpush1.msra.mxu0 0.0
    %2095 = vmatprep.subr.mxu0 0.0
    %2096 = vmatpush1.msra.mxu0 0.0
    %2097 = vmatprep.subr.mxu0 0.0
    %2098 = vmatpush1.msra.mxu0 0.0
    %2099 = vmatprep.subr.mxu0 0.0
    %2100 = vmatpush1.msra.mxu0 0.0
    %2101 = vmatprep.subr.mxu0 0.0
    %2102 = vmatpush1.msra.mxu0 0.0
    %2103 = vmatprep.subr.mxu0 0.0
    %2104 = vmatpush1.msra.mxu0 0.0
    %2105 = vmatprep.subr.mxu0 0.0
    %2106 = vmatpush1.msra.mxu0 0.0
    %2107 = vmatprep.subr.mxu0 0.0
    %2108 = vmatpush1.msra.mxu0 0.0
    %2109 = vmatprep.subr.mxu0 0.0
    %2110 = vmatpush1.msra.mxu0 0.0
    %2111 = vmatprep.subr.mxu0 0.0
    %2112 = vmatpush1.msra.mxu0 0.0
    %2113 = vmatprep.subr.mxu0 0.0
    %2114 = vmatpush1.msra.mxu0 0.0
    %2115 = vmatprep.subr.mxu0 0.0
    %2116 = vmatpush1.msra.mxu0 0.0
    %2117 = vmatprep.subr.mxu0 0.0
    %2118 = vmatpush1.msra.mxu0 0.0
    %2119 = vmatprep.mubr.f32.mxu0 0.0
    %2120 = vmatmul.mubr.f32.gmra.mrb[0].mxu0 %v2053
    %v2121 = vpop.f32.mrb[0].mxu0
    %v2122 = vadd.f32 %v2049, %v2121
    %v2123 = vpop.f32.mrb[0].mxu0
    %2124 = vdwg.mxu0
    %v2125 = vadd.f32 %v2122, %v231
    %v2126 = vmul.f32 %v2125, %v55
    %v2127 = vtanh.pop %v2126
    %v2128 = vmul.f32 %v2127, 0.5
    %v2129 = vadd.f32 %v2128, 0.5
    %v2130 = vsel %vm239, %v2127, %v2129
    %v2131 = vmul.f32 %v2130, %v1800
    %2133 = vrot.lane.b32.xlu0 %v2130, 64
    %v2134 = vpop.permute.xlu0 %2133
    %v2136 = vmul.f32 %v2130, %v2134
    %2138 = vrot.lane.b32.xlu0 %v2136, 32
    %v2139 = vpop.permute.xlu0 %2138
    %v2141 = vadd.f32 %v2131, %v2139
    %v2142 = vtanh.pop %v2141
    %2144 = vrot.lane.b32.xlu0 %v2142, 64
    %v2145 = vpop.permute.xlu0 %2144
    %v2147 = vmul.f32 %v2130, %v2145
    %2149 = vrot.lane.b32.xlu0 %v1974, 32
    %v2150 = vpop.permute.xlu0 %2149
    %v2151 = vsel %vm79, %v2150, 0
    %2153 = vmatprep.subr.mxu0 0.0
    %2154 = vmatpush1.msra.mxu0 %v66
    %2155 = vmatprep.subr.mxu0 0.0
    %2156 = vmatpush1.msra.mxu0 %v67
    %2157 = vmatprep.subr.mxu0 0.0
    %2158 = vmatpush1.msra.mxu0 %v68
    %2159 = vmatprep.subr.mxu0 0.0
    %2160 = vmatpush1.msra.mxu0 %v69
    %2161 = vmatprep.subr.mxu0 0.0
    %2162 = vmatpush1.msra.mxu0 0.0
    %2163 = vmatprep.subr.mxu0 0.0
    %2164 = vmatpush1.msra.mxu0 0.0
    %2165 = vmatprep.subr.mxu0 0.0
    %2166 = vmatpush1.msra.mxu0 0.0
    %2167 = vmatprep.subr.mxu0 0.0
    %2168 = vmatpush1.msra.mxu0 0.0
    %2169 = vmatprep.subr.mxu0 0.0
    %2170 = vmatpush1.msra.mxu0 0.0
    %2171 = vmatprep.subr.mxu0 0.0
    %2172 = vmatpush1.msra.mxu0 0.0
    %2173 = vmatprep.subr.mxu0 0.0
    %2174 = vmatpush1.msra.mxu0 0.0
    %2175 = vmatprep.subr.mxu0 0.0
    %2176 = vmatpush1.msra.mxu0 0.0
    %2177 = vmatprep.subr.mxu0 0.0
    %2178 = vmatpush1.msra.mxu0 0.0
    %2179 = vmatprep.subr.mxu0 0.0
    %2180 = vmatpush1.msra.mxu0 0.0
    %2181 = vmatprep.subr.mxu0 0.0
    %2182 = vmatpush1.msra.mxu0 0.0
    %2183 = vmatprep.subr.mxu0 0.0
    %2184 = vmatpush1.msra.mxu0 0.0
    %2185 = vmatprep.subr.mxu0 0.0
    %2186 = vmatpush1.msra.mxu0 0.0
    %2187 = vmatprep.subr.mxu0 0.0
    %2188 = vmatpush1.msra.mxu0 0.0
    %2189 = vmatprep.subr.mxu0 0.0
    %2190 = vmatpush1.msra.mxu0 0.0
    %2191 = vmatprep.subr.mxu0 0.0
    %2192 = vmatpush1.msra.mxu0 0.0
    %2193 = vmatprep.subr.mxu0 0.0
    %2194 = vmatpush1.msra.mxu0 0.0
    %2195 = vmatprep.subr.mxu0 0.0
    %2196 = vmatpush1.msra.mxu0 0.0
    %2197 = vmatprep.subr.mxu0 0.0
    %2198 = vmatpush1.msra.mxu0 0.0
    %2199 = vmatprep.subr.mxu0 0.0
    %2200 = vmatpush1.msra.mxu0 0.0
    %2201 = vmatprep.subr.mxu0 0.0
    %2202 = vmatpush1.msra.mxu0 0.0
    %2203 = vmatprep.subr.mxu0 0.0
    %2204 = vmatpush1.msra.mxu0 0.0
    %2205 = vmatprep.subr.mxu0 0.0
    %2206 = vmatpush1.msra.mxu0 0.0
    %2207 = vmatprep.subr.mxu0 0.0
    %2208 = vmatpush1.msra.mxu0 0.0
    %2209 = vmatprep.subr.mxu0 0.0
    %2210 = vmatpush1.msra.mxu0 0.0
    %2211 = vmatprep.subr.mxu0 0.0
    %2212 = vmatpush1.msra.mxu0 0.0
    %2213 = vmatprep.subr.mxu0 0.0
    %2214 = vmatpush1.msra.mxu0 0.0
    %2215 = vmatprep.subr.mxu0 0.0
    %2216 = vmatpush1.msra.mxu0 0.0
    %2217 = vmatprep.mubr.f32.mxu0 0.0
    %2218 = vmatmul.mubr.f32.gmra.mrb[0].mxu0 %v2151
    %v2219 = vpop.f32.mrb[0].mxu0
    %v2220 = vadd.f32 0.0, %v2219
    %v2221 = vpop.f32.mrb[0].mxu0
    %2222 = vdwg.mxu0
    %2223 = vmatprep.subr.mxu0 0.0
    %2224 = vmatpush1.msra.mxu0 %v58
    %2225 = vmatprep.subr.mxu0 0.0
    %2226 = vmatpush1.msra.mxu0 %v59
    %2227 = vmatprep.subr.mxu0 0.0
    %2228 = vmatpush1.msra.mxu0 %v60
    %2229 = vmatprep.subr.mxu0 0.0
    %2230 = vmatpush1.msra.mxu0 %v61
    %2231 = vmatprep.subr.mxu0 0.0
    %2232 = vmatpush1.msra.mxu0 0.0
    %2233 = vmatprep.subr.mxu0 0.0
    %2234 = vmatpush1.msra.mxu0 0.0
    %2235 = vmatprep.subr.mxu0 0.0
    %2236 = vmatpush1.msra.mxu0 0.0
    %2237 = vmatprep.subr.mxu0 0.0
    %2238 = vmatpush1.msra.mxu0 0.0
    %2239 = vmatprep.subr.mxu0 0.0
    %2240 = vmatpush1.msra.mxu0 0.0
    %2241 = vmatprep.subr.mxu0 0.0
    %2242 = vmatpush1.msra.mxu0 0.0
    %2243 = vmatprep.subr.mxu0 0.0
    %2244 = vmatpush1.msra.mxu0 0.0
    %2245 = vmatprep.subr.mxu0 0.0
    %2246 = vmatpush1.msra.mxu0 0.0
    %2247 = vmatprep.subr.mxu0 0.0
    %2248 = vmatpush1.msra.mxu0 0.0
    %2249 = vmatprep.subr.mxu0 0.0
    %2250 = vmatpush1.msra.mxu0 0.0
    %2251 = vmatprep.subr.mxu0 0.0
    %2252 = vmatpush1.msra.mxu0 0.0
    %2253 = vmatprep.subr.mxu0 0.0
    %2254 = vmatpush1.msra.mxu0 0.0
    %2255 = vmatprep.subr.mxu0 0.0
    %2256 = vmatpush1.msra.mxu0 0.0
    %2257 = vmatprep.subr.mxu0 0.0
    %2258 = vmatpush1.msra.mxu0 0.0
    %2259 = vmatprep.subr.mxu0 0.0
    %2260 = vmatpush1.msra.mxu0 0.0
    %2261 = vmatprep.subr.mxu0 0.0
    %2262 = vmatpush1.msra.mxu0 0.0
    %2263 = vmatprep.subr.mxu0 0.0
    %2264 = vmatpush1.msra.mxu0 0.0
    %2265 = vmatprep.subr.mxu0 0.0
    %2266 = vmatpush1.msra.mxu0 0.0
    %2267 = vmatprep.subr.mxu0 0.0
    %2268 = vmatpush1.msra.mxu0 0.0
    %2269 = vmatprep.subr.mxu0 0.0
    %2270 = vmatpush1.msra.mxu0 0.0
    %2271 = vmatprep.subr.mxu0 0.0
    %2272 = vmatpush1.msra.mxu0 0.0
    %2273 = vmatprep.subr.mxu0 0.0
    %2274 = vmatpush1.msra.mxu0 0.0
    %2275 = vmatprep.subr.mxu0 0.0
    %2276 = vmatpush1.msra.mxu0 0.0
    %2277 = vmatprep.subr.mxu0 0.0
    %2278 = vmatpush1.msra.mxu0 0.0
    %2279 = vmatprep.subr.mxu0 0.0
    %2280 = vmatpush1.msra.mxu0 0.0
    %2281 = vmatprep.subr.mxu0 0.0
    %2282 = vmatpush1.msra.mxu0 0.0
    %2283 = vmatprep.subr.mxu0 0.0
    %2284 = vmatpush1.msra.mxu0 0.0
    %2285 = vmatprep.subr.mxu0 0.0
    %2286 = vmatpush1.msra.mxu0 0.0
    %2287 = vmatprep.mubr.f32.mxu0 0.0
    %2288 = vmatmul.mubr.f32.gmra.mrb[0].mxu0 %v1980
    %v2289 = vpop.f32.mrb[0].mxu0
    %v2290 = vadd.f32 %v2220, %v2289
    %v2291 = vpop.f32.mrb[0].mxu0
    %2292 = vdwg.mxu0
    %v2293 = vadd.f32 %v2290, %v582
    %v2294 = vmul.f32 %v2293, %v55
    %v2295 = vtanh.pop %v2294
    %v2296 = vmul.f32 %v2295, 0.5
    %v2297 = vadd.f32 %v2296, 0.5
    %v2298 = vsel %vm239, %v2295, %v2297
    %v2299 = vmul.f32 %v2298, %v1968
    %2301 = vrot.lane.b32.xlu0 %v2298, 64
    %v2302 = vpop.permute.xlu0 %2301
    %v2304 = vmul.f32 %v2298, %v2302
    %2306 = vrot.lane.b32.xlu0 %v2304, 32
    %v2307 = vpop.permute.xlu0 %2306
    %v2309 = vadd.f32 %v2299, %v2307
    %v2310 = vtanh.pop %v2309
    %2312 = vrot.lane.b32.xlu0 %v2310, 64
    %v2313 = vpop.permute.xlu0 %2312
    %v2315 = vmul.f32 %v2298, %v2313
    %s2316 = scalar_lea.vmem %s1, 14
    %v2317 = vld [vmem:[%s2316] sm:$0x3]
    %2319 = vrot.lane.b32.xlu0 %v2147, 32
    %v2320 = vpop.permute.xlu0 %2319
    %v2321 = vsel %vm79, %v2320, 0
    %2323 = vmatprep.subr.mxu0 0.0
    %2324 = vmatpush1.msra.mxu0 %v62
    %2325 = vmatprep.subr.mxu0 0.0
    %2326 = vmatpush1.msra.mxu0 %v63
    %2327 = vmatprep.subr.mxu0 0.0
    %2328 = vmatpush1.msra.mxu0 %v64
    %2329 = vmatprep.subr.mxu0 0.0
    %2330 = vmatpush1.msra.mxu0 %v65
    %2331 = vmatprep.subr.mxu0 0.0
    %2332 = vmatpush1.msra.mxu0 0.0
    %2333 = vmatprep.subr.mxu0 0.0
    %2334 = vmatpush1.msra.mxu0 0.0
    %2335 = vmatprep.subr.mxu0 0.0
    %2336 = vmatpush1.msra.mxu0 0.0
    %2337 = vmatprep.subr.mxu0 0.0
    %2338 = vmatpush1.msra.mxu0 0.0
    %2339 = vmatprep.subr.mxu0 0.0
    %2340 = vmatpush1.msra.mxu0 0.0
    %2341 = vmatprep.subr.mxu0 0.0
    %2342 = vmatpush1.msra.mxu0 0.0
    %2343 = vmatprep.subr.mxu0 0.0
    %2344 = vmatpush1.msra.mxu0 0.0
    %2345 = vmatprep.subr.mxu0 0.0
    %2346 = vmatpush1.msra.mxu0 0.0
    %2347 = vmatprep.subr.mxu0 0.0
    %2348 = vmatpush1.msra.mxu0 0.0
    %2349 = vmatprep.subr.mxu0 0.0
    %2350 = vmatpush1.msra.mxu0 0.0
    %2351 = vmatprep.subr.mxu0 0.0
    %2352 = vmatpush1.msra.mxu0 0.0
    %2353 = vmatprep.subr.mxu0 0.0
    %2354 = vmatpush1.msra.mxu0 0.0
    %2355 = vmatprep.subr.mxu0 0.0
    %2356 = vmatpush1.msra.mxu0 0.0
    %2357 = vmatprep.subr.mxu0 0.0
    %2358 = vmatpush1.msra.mxu0 0.0
    %2359 = vmatprep.subr.mxu0 0.0
    %2360 = vmatpush1.msra.mxu0 0.0
    %2361 = vmatprep.subr.mxu0 0.0
    %2362 = vmatpush1.msra.mxu0 0.0
    %2363 = vmatprep.subr.mxu0 0.0
    %2364 = vmatpush1.msra.mxu0 0.0
    %2365 = vmatprep.subr.mxu0 0.0
    %2366 = vmatpush1.msra.mxu0 0.0
    %2367 = vmatprep.subr.mxu0 0.0
    %2368 = vmatpush1.msra.mxu0 0.0
    %2369 = vmatprep.subr.mxu0 0.0
    %2370 = vmatpush1.msra.mxu0 0.0
    %2371 = vmatprep.subr.mxu0 0.0
    %2372 = vmatpush1.msra.mxu0 0.0
    %2373 = vmatprep.subr.mxu0 0.0
    %2374 = vmatpush1.msra.mxu0 0.0
    %2375 = vmatprep.subr.mxu0 0.0
    %2376 = vmatpush1.msra.mxu0 0.0
    %2377 = vmatprep.subr.mxu0 0.0
    %2378 = vmatpush1.msra.mxu0 0.0
    %2379 = vmatprep.subr.mxu0 0.0
    %2380 = vmatpush1.msra.mxu0 0.0
    %2381 = vmatprep.subr.mxu0 0.0
    %2382 = vmatpush1.msra.mxu0 0.0
    %2383 = vmatprep.subr.mxu0 0.0
    %2384 = vmatpush1.msra.mxu0 0.0
    %2385 = vmatprep.subr.mxu0 0.0
    %2386 = vmatpush1.msra.mxu0 0.0
    %2387 = vmatprep.mubr.f32.mxu0 0.0
    %2388 = vmatmul.mubr.f32.gmra.mrb[0].mxu0 %v2321
    %v2389 = vpop.f32.mrb[0].mxu0
    %v2390 = vadd.f32 0.0, %v2389
    %v2391 = vpop.f32.mrb[0].mxu0
    %2392 = vdwg.mxu0
    %v2394 = vsel %vm153, %v2317, 0
    %2396 = vmatprep.subr.mxu0 0.0
    %2397 = vmatpush1.msra.mxu0 %v56
    %2398 = vmatprep.subr.mxu0 0.0
    %2399 = vmatpush1.msra.mxu0 %v57
    %2400 = vmatprep.subr.mxu0 0.0
    %2401 = vmatpush1.msra.mxu0 0.0
    %2402 = vmatprep.subr.mxu0 0.0
    %2403 = vmatpush1.msra.mxu0 0.0
    %2404 = vmatprep.subr.mxu0 0.0
    %2405 = vmatpush1.msra.mxu0 0.0
    %2406 = vmatprep.subr.mxu0 0.0
    %2407 = vmatpush1.msra.mxu0 0.0
    %2408 = vmatprep.subr.mxu0 0.0
    %2409 = vmatpush1.msra.mxu0 0.0
    %2410 = vmatprep.subr.mxu0 0.0
    %2411 = vmatpush1.msra.mxu0 0.0
    %2412 = vmatprep.subr.mxu0 0.0
    %2413 = vmatpush1.msra.mxu0 0.0
    %2414 = vmatprep.subr.mxu0 0.0
    %2415 = vmatpush1.msra.mxu0 0.0
    %2416 = vmatprep.subr.mxu0 0.0
    %2417 = vmatpush1.msra.mxu0 0.0
    %2418 = vmatprep.subr.mxu0 0.0
    %2419 = vmatpush1.msra.mxu0 0.0
    %2420 = vmatprep.subr.mxu0 0.0
    %2421 = vmatpush1.msra.mxu0 0.0
    %2422 = vmatprep.subr.mxu0 0.0
    %2423 = vmatpush1.msra.mxu0 0.0
    %2424 = vmatprep.subr.mxu0 0.0
    %2425 = vmatpush1.msra.mxu0 0.0
    %2426 = vmatprep.subr.mxu0 0.0
    %2427 = vmatpush1.msra.mxu0 0.0
    %2428 = vmatprep.subr.mxu0 0.0
    %2429 = vmatpush1.msra.mxu0 0.0
    %2430 = vmatprep.subr.mxu0 0.0
    %2431 = vmatpush1.msra.mxu0 0.0
    %2432 = vmatprep.subr.mxu0 0.0
    %2433 = vmatpush1.msra.mxu0 0.0
    %2434 = vmatprep.subr.mxu0 0.0
    %2435 = vmatpush1.msra.mxu0 0.0
    %2436 = vmatprep.subr.mxu0 0.0
    %2437 = vmatpush1.msra.mxu0 0.0
    %2438 = vmatprep.subr.mxu0 0.0
    %2439 = vmatpush1.msra.mxu0 0.0
    %2440 = vmatprep.subr.mxu0 0.0
    %2441 = vmatpush1.msra.mxu0 0.0
    %2442 = vmatprep.subr.mxu0 0.0
    %2443 = vmatpush1.msra.mxu0 0.0
    %2444 = vmatprep.subr.mxu0 0.0
    %2445 = vmatpush1.msra.mxu0 0.0
    %2446 = vmatprep.subr.mxu0 0.0
    %2447 = vmatpush1.msra.mxu0 0.0
    %2448 = vmatprep.subr.mxu0 0.0
    %2449 = vmatpush1.msra.mxu0 0.0
    %2450 = vmatprep.subr.mxu0 0.0
    %2451 = vmatpush1.msra.mxu0 0.0
    %2452 = vmatprep.subr.mxu0 0.0
    %2453 = vmatpush1.msra.mxu0 0.0
    %2454 = vmatprep.subr.mxu0 0.0
    %2455 = vmatpush1.msra.mxu0 0.0
    %2456 = vmatprep.subr.mxu0 0.0
    %2457 = vmatpush1.msra.mxu0 0.0
    %2458 = vmatprep.subr.mxu0 0.0
    %2459 = vmatpush1.msra.mxu0 0.0
    %2460 = vmatprep.mubr.f32.mxu0 0.0
    %2461 = vmatmul.mubr.f32.gmra.mrb[0].mxu0 %v2394
    %v2462 = vpop.f32.mrb[0].mxu0
    %v2463 = vadd.f32 %v2390, %v2462
    %v2464 = vpop.f32.mrb[0].mxu0
    %2465 = vdwg.mxu0
    %v2466 = vadd.f32 %v2463, %v231
    %v2467 = vmul.f32 %v2466, %v55
    %v2468 = vtanh.pop %v2467
    %v2469 = vmul.f32 %v2468, 0.5
    %v2470 = vadd.f32 %v2469, 0.5
    %v2471 = vsel %vm239, %v2468, %v2470
    %v2472 = vmul.f32 %v2471, %v2141
    %2474 = vrot.lane.b32.xlu0 %v2471, 64
    %v2475 = vpop.permute.xlu0 %2474
    %v2477 = vmul.f32 %v2471, %v2475
    %2479 = vrot.lane.b32.xlu0 %v2477, 32
    %v2480 = vpop.permute.xlu0 %2479
    %v2482 = vadd.f32 %v2472, %v2480
    %v2483 = vtanh.pop %v2482
    %2485 = vrot.lane.b32.xlu0 %v2483, 64
    %v2486 = vpop.permute.xlu0 %2485
    %v2488 = vmul.f32 %v2471, %v2486
    %2490 = vrot.lane.b32.xlu0 %v2315, 32
    %v2491 = vpop.permute.xlu0 %2490
    %v2492 = vsel %vm79, %v2491, 0
    %2494 = vmatprep.subr.mxu0 0.0
    %2495 = vmatpush1.msra.mxu0 %v66
    %2496 = vmatprep.subr.mxu0 0.0
    %2497 = vmatpush1.msra.mxu0 %v67
    %2498 = vmatprep.subr.mxu0 0.0
    %2499 = vmatpush1.msra.mxu0 %v68
    %2500 = vmatprep.subr.mxu0 0.0
    %2501 = vmatpush1.msra.mxu0 %v69
    %2502 = vmatprep.subr.mxu0 0.0
    %2503 = vmatpush1.msra.mxu0 0.0
    %2504 = vmatprep.subr.mxu0 0.0
    %2505 = vmatpush1.msra.mxu0 0.0
    %2506 = vmatprep.subr.mxu0 0.0
    %2507 = vmatpush1.msra.mxu0 0.0
    %2508 = vmatprep.subr.mxu0 0.0
    %2509 = vmatpush1.msra.mxu0 0.0
    %2510 = vmatprep.subr.mxu0 0.0
    %2511 = vmatpush1.msra.mxu0 0.0
    %2512 = vmatprep.subr.mxu0 0.0
    %2513 = vmatpush1.msra.mxu0 0.0
    %2514 = vmatprep.subr.mxu0 0.0
    %2515 = vmatpush1.msra.mxu0 0.0
    %2516 = vmatprep.subr.mxu0 0.0
    %2517 = vmatpush1.msra.mxu0 0.0
    %2518 = vmatprep.subr.mxu0 0.0
    %2519 = vmatpush1.msra.mxu0 0.0
    %2520 = vmatprep.subr.mxu0 0.0
    %2521 = vmatpush1.msra.mxu0 0.0
    %2522 = vmatprep.subr.mxu0 0.0
    %2523 = vmatpush1.msra.mxu0 0.0
    %2524 = vmatprep.subr.mxu0 0.0
    %2525 = vmatpush1.msra.mxu0 0.0
    %2526 = vmatprep.subr.mxu0 0.0
    %2527 = vmatpush1.msra.mxu0 0.0
    %2528 = vmatprep.subr.mxu0 0.0
    %2529 = vmatpush1.msra.mxu0 0.0
    %2530 = vmatprep.subr.mxu0 0.0
    %2531 = vmatpush1.msra.mxu0 0.0
    %2532 = vmatprep.subr.mxu0 0.0
    %2533 = vmatpush1.msra.mxu0 0.0
    %2534 = vmatprep.subr.mxu0 0.0
    %2535 = vmatpush1.msra.mxu0 0.0
    %2536 = vmatprep.subr.mxu0 0.0
    %2537 = vmatpush1.msra.mxu0 0.0
    %2538 = vmatprep.subr.mxu0 0.0
    %2539 = vmatpush1.msra.mxu0 0.0
    %2540 = vmatprep.subr.mxu0 0.0
    %2541 = vmatpush1.msra.mxu0 0.0
    %2542 = vmatprep.subr.mxu0 0.0
    %2543 = vmatpush1.msra.mxu0 0.0
    %2544 = vmatprep.subr.mxu0 0.0
    %2545 = vmatpush1.msra.mxu0 0.0
    %2546 = vmatprep.subr.mxu0 0.0
    %2547 = vmatpush1.msra.mxu0 0.0
    %2548 = vmatprep.subr.mxu0 0.0
    %2549 = vmatpush1.msra.mxu0 0.0
    %2550 = vmatprep.subr.mxu0 0.0
    %2551 = vmatpush1.msra.mxu0 0.0
    %2552 = vmatprep.subr.mxu0 0.0
    %2553 = vmatpush1.msra.mxu0 0.0
    %2554 = vmatprep.subr.mxu0 0.0
    %2555 = vmatpush1.msra.mxu0 0.0
    %2556 = vmatprep.subr.mxu0 0.0
    %2557 = vmatpush1.msra.mxu0 0.0
    %2558 = vmatprep.mubr.f32.mxu0 0.0
    %2559 = vmatmul.mubr.f32.gmra.mrb[0].mxu0 %v2492
    %v2560 = vpop.f32.mrb[0].mxu0
    %v2561 = vadd.f32 0.0, %v2560
    %v2562 = vpop.f32.mrb[0].mxu0
    %2563 = vdwg.mxu0
    %2564 = vmatprep.subr.mxu0 0.0
    %2565 = vmatpush1.msra.mxu0 %v58
    %2566 = vmatprep.subr.mxu0 0.0
    %2567 = vmatpush1.msra.mxu0 %v59
    %2568 = vmatprep.subr.mxu0 0.0
    %2569 = vmatpush1.msra.mxu0 %v60
    %2570 = vmatprep.subr.mxu0 0.0
    %2571 = vmatpush1.msra.mxu0 %v61
    %2572 = vmatprep.subr.mxu0 0.0
    %2573 = vmatpush1.msra.mxu0 0.0
    %2574 = vmatprep.subr.mxu0 0.0
    %2575 = vmatpush1.msra.mxu0 0.0
    %2576 = vmatprep.subr.mxu0 0.0
    %2577 = vmatpush1.msra.mxu0 0.0
    %2578 = vmatprep.subr.mxu0 0.0
    %2579 = vmatpush1.msra.mxu0 0.0
    %2580 = vmatprep.subr.mxu0 0.0
    %2581 = vmatpush1.msra.mxu0 0.0
    %2582 = vmatprep.subr.mxu0 0.0
    %2583 = vmatpush1.msra.mxu0 0.0
    %2584 = vmatprep.subr.mxu0 0.0
    %2585 = vmatpush1.msra.mxu0 0.0
    %2586 = vmatprep.subr.mxu0 0.0
    %2587 = vmatpush1.msra.mxu0 0.0
    %2588 = vmatprep.subr.mxu0 0.0
    %2589 = vmatpush1.msra.mxu0 0.0
    %2590 = vmatprep.subr.mxu0 0.0
    %2591 = vmatpush1.msra.mxu0 0.0
    %2592 = vmatprep.subr.mxu0 0.0
    %2593 = vmatpush1.msra.mxu0 0.0
    %2594 = vmatprep.subr.mxu0 0.0
    %2595 = vmatpush1.msra.mxu0 0.0
    %2596 = vmatprep.subr.mxu0 0.0
    %2597 = vmatpush1.msra.mxu0 0.0
    %2598 = vmatprep.subr.mxu0 0.0
    %2599 = vmatpush1.msra.mxu0 0.0
    %2600 = vmatprep.subr.mxu0 0.0
    %2601 = vmatpush1.msra.mxu0 0.0
    %2602 = vmatprep.subr.mxu0 0.0
    %2603 = vmatpush1.msra.mxu0 0.0
    %2604 = vmatprep.subr.mxu0 0.0
    %2605 = vmatpush1.msra.mxu0 0.0
    %2606 = vmatprep.subr.mxu0 0.0
    %2607 = vmatpush1.msra.mxu0 0.0
    %2608 = vmatprep.subr.mxu0 0.0
    %2609 = vmatpush1.msra.mxu0 0.0
    %2610 = vmatprep.subr.mxu0 0.0
    %2611 = vmatpush1.msra.mxu0 0.0
    %2612 = vmatprep.subr.mxu0 0.0
    %2613 = vmatpush1.msra.mxu0 0.0
    %2614 = vmatprep.subr.mxu0 0.0
    %2615 = vmatpush1.msra.mxu0 0.0
    %2616 = vmatprep.subr.mxu0 0.0
    %2617 = vmatpush1.msra.mxu0 0.0
    %2618 = vmatprep.subr.mxu0 0.0
    %2619 = vmatpush1.msra.mxu0 0.0
    %2620 = vmatprep.subr.mxu0 0.0
    %2621 = vmatpush1.msra.mxu0 0.0
    %2622 = vmatprep.subr.mxu0 0.0
    %2623 = vmatpush1.msra.mxu0 0.0
    %2624 = vmatprep.subr.mxu0 0.0
    %2625 = vmatpush1.msra.mxu0 0.0
    %2626 = vmatprep.subr.mxu0 0.0
    %2627 = vmatpush1.msra.mxu0 0.0
    %2628 = vmatprep.mubr.f32.mxu0 0.0
    %2629 = vmatmul.mubr.f32.gmra.mrb[0].mxu0 %v2321
    %v2630 = vpop.f32.mrb[0].mxu0
    %v2631 = vadd.f32 %v2561, %v2630
    %v2632 = vpop.f32.mrb[0].mxu0
    %2633 = vdwg.mxu0
    %v2634 = vadd.f32 %v2631, %v582
    %v2635 = vmul.f32 %v2634, %v55
    %v2636 = vtanh.pop %v2635
    %v2637 = vmul.f32 %v2636, 0.5
    %v2638 = vadd.f32 %v2637, 0.5
    %v2639 = vsel %vm239, %v2636, %v2638
    %v2640 = vmul.f32 %v2639, %v2309
    %2642 = vrot.lane.b32.xlu0 %v2639, 64
    %v2643 = vpop.permute.xlu0 %2642
    %v2645 = vmul.f32 %v2639, %v2643
    %2647 = vrot.lane.b32.xlu0 %v2645, 32
    %v2648 = vpop.permute.xlu0 %2647
    %v2650 = vadd.f32 %v2640, %v2648
    %v2651 = vtanh.pop %v2650
    %2653 = vrot.lane.b32.xlu0 %v2651, 64
    %v2654 = vpop.permute.xlu0 %2653
    %v2656 = vmul.f32 %v2639, %v2654
    %2658 = vrot.lane.b32.xlu0 %v2656, 32
    %v2659 = vpop.permute.xlu0 %2658
    %v2660 = vsel %vm79, %v2659, 0
    %2662 = vmatprep.subr.mxu0 0.0
    %2663 = vmatpush1.msra.mxu0 %v66
    %2664 = vmatprep.subr.mxu0 0.0
    %2665 = vmatpush1.msra.mxu0 %v67
    %2666 = vmatprep.subr.mxu0 0.0
    %2667 = vmatpush1.msra.mxu0 %v68
    %2668 = vmatprep.subr.mxu0 0.0
    %2669 = vmatpush1.msra.mxu0 %v69
    %2670 = vmatprep.subr.mxu0 0.0
    %2671 = vmatpush1.msra.mxu0 0.0
    %2672 = vmatprep.subr.mxu0 0.0
    %2673 = vmatpush1.msra.mxu0 0.0
    %2674 = vmatprep.subr.mxu0 0.0
    %2675 = vmatpush1.msra.mxu0 0.0
    %2676 = vmatprep.subr.mxu0 0.0
    %2677 = vmatpush1.msra.mxu0 0.0
    %2678 = vmatprep.subr.mxu0 0.0
    %2679 = vmatpush1.msra.mxu0 0.0
    %2680 = vmatprep.subr.mxu0 0.0
    %2681 = vmatpush1.msra.mxu0 0.0
    %2682 = vmatprep.subr.mxu0 0.0
    %2683 = vmatpush1.msra.mxu0 0.0
    %2684 = vmatprep.subr.mxu0 0.0
    %2685 = vmatpush1.msra.mxu0 0.0
    %2686 = vmatprep.subr.mxu0 0.0
    %2687 = vmatpush1.msra.mxu0 0.0
    %2688 = vmatprep.subr.mxu0 0.0
    %2689 = vmatpush1.msra.mxu0 0.0
    %2690 = vmatprep.subr.mxu0 0.0
    %2691 = vmatpush1.msra.mxu0 0.0
    %2692 = vmatprep.subr.mxu0 0.0
    %2693 = vmatpush1.msra.mxu0 0.0
    %2694 = vmatprep.subr.mxu0 0.0
    %2695 = vmatpush1.msra.mxu0 0.0
    %2696 = vmatprep.subr.mxu0 0.0
    %2697 = vmatpush1.msra.mxu0 0.0
    %2698 = vmatprep.subr.mxu0 0.0
    %2699 = vmatpush1.msra.mxu0 0.0
    %2700 = vmatprep.subr.mxu0 0.0
    %2701 = vmatpush1.msra.mxu0 0.0
    %2702 = vmatprep.subr.mxu0 0.0
    %2703 = vmatpush1.msra.mxu0 0.0
    %2704 = vmatprep.subr.mxu0 0.0
    %2705 = vmatpush1.msra.mxu0 0.0
    %2706 = vmatprep.subr.mxu0 0.0
    %2707 = vmatpush1.msra.mxu0 0.0
    %2708 = vmatprep.subr.mxu0 0.0
    %2709 = vmatpush1.msra.mxu0 0.0
    %2710 = vmatprep.subr.mxu0 0.0
    %2711 = vmatpush1.msra.mxu0 0.0
    %2712 = vmatprep.subr.mxu0 0.0
    %2713 = vmatpush1.msra.mxu0 0.0
    %2714 = vmatprep.subr.mxu0 0.0
    %2715 = vmatpush1.msra.mxu0 0.0
    %2716 = vmatprep.subr.mxu0 0.0
    %2717 = vmatpush1.msra.mxu0 0.0
    %2718 = vmatprep.subr.mxu0 0.0
    %2719 = vmatpush1.msra.mxu0 0.0
    %2720 = vmatprep.subr.mxu0 0.0
    %2721 = vmatpush1.msra.mxu0 0.0
    %2722 = vmatprep.subr.mxu0 0.0
    %2723 = vmatpush1.msra.mxu0 0.0
    %2724 = vmatprep.subr.mxu0 0.0
    %2725 = vmatpush1.msra.mxu0 0.0
    %2726 = vmatprep.mubr.f32.mxu0 0.0
    %2727 = vmatmul.mubr.f32.gmra.mrb[0].mxu0 %v2660
    %v2728 = vpop.f32.mrb[0].mxu0
    %v2729 = vadd.f32 0.0, %v2728
    %v2730 = vpop.f32.mrb[0].mxu0
    %2731 = vdwg.mxu0
    %2733 = vrot.lane.b32.xlu0 %v2488, 32
    %v2734 = vpop.permute.xlu0 %2733
    %v2735 = vsel %vm79, %v2734, 0
    %2737 = vmatprep.subr.mxu0 0.0
    %2738 = vmatpush1.msra.mxu0 %v58
    %2739 = vmatprep.subr.mxu0 0.0
    %2740 = vmatpush1.msra.mxu0 %v59
    %2741 = vmatprep.subr.mxu0 0.0
    %2742 = vmatpush1.msra.mxu0 %v60
    %2743 = vmatprep.subr.mxu0 0.0
    %2744 = vmatpush1.msra.mxu0 %v61
    %2745 = vmatprep.subr.mxu0 0.0
    %2746 = vmatpush1.msra.mxu0 0.0
    %2747 = vmatprep.subr.mxu0 0.0
    %2748 = vmatpush1.msra.mxu0 0.0
    %2749 = vmatprep.subr.mxu0 0.0
    %2750 = vmatpush1.msra.mxu0 0.0
    %2751 = vmatprep.subr.mxu0 0.0
    %2752 = vmatpush1.msra.mxu0 0.0
    %2753 = vmatprep.subr.mxu0 0.0
    %2754 = vmatpush1.msra.mxu0 0.0
    %2755 = vmatprep.subr.mxu0 0.0
    %2756 = vmatpush1.msra.mxu0 0.0
    %2757 = vmatprep.subr.mxu0 0.0
    %2758 = vmatpush1.msra.mxu0 0.0
    %2759 = vmatprep.subr.mxu0 0.0
    %2760 = vmatpush1.msra.mxu0 0.0
    %2761 = vmatprep.subr.mxu0 0.0
    %2762 = vmatpush1.msra.mxu0 0.0
    %2763 = vmatprep.subr.mxu0 0.0
    %2764 = vmatpush1.msra.mxu0 0.0
    %2765 = vmatprep.subr.mxu0 0.0
    %2766 = vmatpush1.msra.mxu0 0.0
    %2767 = vmatprep.subr.mxu0 0.0
    %2768 = vmatpush1.msra.mxu0 0.0
    %2769 = vmatprep.subr.mxu0 0.0
    %2770 = vmatpush1.msra.mxu0 0.0
    %2771 = vmatprep.subr.mxu0 0.0
    %2772 = vmatpush1.msra.mxu0 0.0
    %2773 = vmatprep.subr.mxu0 0.0
    %2774 = vmatpush1.msra.mxu0 0.0
    %2775 = vmatprep.subr.mxu0 0.0
    %2776 = vmatpush1.msra.mxu0 0.0
    %2777 = vmatprep.subr.mxu0 0.0
    %2778 = vmatpush1.msra.mxu0 0.0
    %2779 = vmatprep.subr.mxu0 0.0
    %2780 = vmatpush1.msra.mxu0 0.0
    %2781 = vmatprep.subr.mxu0 0.0
    %2782 = vmatpush1.msra.mxu0 0.0
    %2783 = vmatprep.subr.mxu0 0.0
    %2784 = vmatpush1.msra.mxu0 0.0
    %2785 = vmatprep.subr.mxu0 0.0
    %2786 = vmatpush1.msra.mxu0 0.0
    %2787 = vmatprep.subr.mxu0 0.0
    %2788 = vmatpush1.msra.mxu0 0.0
    %2789 = vmatprep.subr.mxu0 0.0
    %2790 = vmatpush1.msra.mxu0 0.0
    %2791 = vmatprep.subr.mxu0 0.0
    %2792 = vmatpush1.msra.mxu0 0.0
    %2793 = vmatprep.subr.mxu0 0.0
    %2794 = vmatpush1.msra.mxu0 0.0
    %2795 = vmatprep.subr.mxu0 0.0
    %2796 = vmatpush1.msra.mxu0 0.0
    %2797 = vmatprep.subr.mxu0 0.0
    %2798 = vmatpush1.msra.mxu0 0.0
    %2799 = vmatprep.subr.mxu0 0.0
    %2800 = vmatpush1.msra.mxu0 0.0
    %2801 = vmatprep.mubr.f32.mxu0 0.0
    %2802 = vmatmul.mubr.f32.gmra.mrb[0].mxu0 %v2735
    %v2803 = vpop.f32.mrb[0].mxu0
    %v2804 = vadd.f32 %v2729, %v2803
    %v2805 = vpop.f32.mrb[0].mxu0
    %2806 = vdwg.mxu0
    %v2807 = vadd.f32 %v2804, %v582
    %v2808 = vmul.f32 %v2807, %v55
    %v2809 = vtanh.pop %v2808
    %v2810 = vmul.f32 %v2809, 0.5
    %v2811 = vadd.f32 %v2810, 0.5
    %v2812 = vsel %vm239, %v2809, %v2811
    %v2813 = vmul.f32 %v2812, %v2650
    %2815 = vrot.lane.b32.xlu0 %v2812, 64
    %v2816 = vpop.permute.xlu0 %2815
    %v2818 = vmul.f32 %v2812, %v2816
    %2820 = vrot.lane.b32.xlu0 %v2818, 32
    %v2821 = vpop.permute.xlu0 %2820
    %v2823 = vadd.f32 %v2813, %v2821
    %v2824 = vtanh.pop %v2823
    %2826 = vrot.lane.b32.xlu0 %v2824, 64
    %v2827 = vpop.permute.xlu0 %2826
    %v2829 = vmul.f32 %v2812, %v2827
    %vm2831 = vcmask 254976
    %2832 = vst.msk [vmem:[#allocation2] sm:$0x3] %vm2831, %v2734
    %2834 = vrot.lane.b32.xlu0 %v2482, 96
    %v2835 = vpop.permute.xlu0 %2834
    %2837 = vst.msk [vmem:[#allocation4] sm:$0x3] %vm2831, %v2835
    %2839 = vrot.lane.b32.xlu0 %v2829, 32
    %v2840 = vpop.permute.xlu0 %2839
    %s2842 = scalar_lea.vmem [#allocation2], 2
    %2843 = vst.msk [vmem:[%s2842] sm:$0x3] %vm2831, %v2840
    %2845 = vrot.lane.b32.xlu0 %v2823, 96
    %v2846 = vpop.permute.xlu0 %2845
    %s2848 = scalar_lea.vmem [#allocation4], 2
    %2849 = vst.msk [vmem:[%s2848] sm:$0x3] %vm2831, %v2846
    %v2851 = vunpack.c.l.s4 1966171168
    %v2852 = vunpack.c.0.s8 %v2851
    %v2853 = vlaneseq
    %v2854 = vshrl.u32 %v2853, 7
    %v2855 = vsub.s32 %v2852, %v2854
    %v2856 = vrot.slane %v610, %v2855
    %v2857 = vcombine.high %v2856, %v2856
    %v2859 = vunpack.c.l.s4 1966171168
    %v2860 = vunpack.c.0.s8 %v2859
    %v2861 = vlaneseq
    %v2862 = vshrl.u32 %v2861, 7
    %v2863 = vsub.s32 %v2860, %v2862
    %v2864 = vrot.slane %v2856, %v2863
    %v2866 = vunpack.c.l.s4 1966171168
    %v2867 = vunpack.c.0.s8 %v2866
    %v2868 = vlaneseq
    %v2869 = vshrl.u32 %v2868, 7
    %v2870 = vsub.s32 %v2867, %v2869
    %v2871 = vrot.slane %v2857, %v2870
    %v2875 = vunpack.c.l.s4 1966171168
    %v2876 = vunpack.c.0.s8 %v2875
    %v2877 = vlaneseq
    %v2878 = vshrl.u32 %v2877, 7
    %v2879 = vsub.s32 %v2876, %v2878
    %v2880 = vrot.slane %v951, %v2879
    %v2881 = vcombine.high %v2880, %v2880
    %v2883 = vunpack.c.l.s4 1966171168
    %v2884 = vunpack.c.0.s8 %v2883
    %v2885 = vlaneseq
    %v2886 = vshrl.u32 %v2885, 7
    %v2887 = vsub.s32 %v2884, %v2886
    %v2888 = vrot.slane %v2880, %v2887
    %v2890 = vunpack.c.l.s4 1966171168
    %v2891 = vunpack.c.0.s8 %v2890
    %v2892 = vlaneseq
    %v2893 = vshrl.u32 %v2892, 7
    %v2894 = vsub.s32 %v2891, %v2893
    %v2895 = vrot.slane %v2881, %v2894
    %v2897 = vunpack.c.l.s4 1966171168
    %v2898 = vunpack.c.0.s8 %v2897
    %v2899 = vlaneseq
    %v2900 = vshrl.u32 %v2899, 7
    %v2901 = vsub.s32 %v2898, %v2900
    %v2902 = vrot.slane %v1292, %v2901
    %v2903 = vcombine.high %v2902, %v2902
    %v2905 = vunpack.c.l.s4 1966171168
    %v2906 = vunpack.c.0.s8 %v2905
    %v2907 = vlaneseq
    %v2908 = vshrl.u32 %v2907, 7
    %v2909 = vsub.s32 %v2906, %v2908
    %v2910 = vrot.slane %v2902, %v2909
    %v2912 = vunpack.c.l.s4 1966171168
    %v2913 = vunpack.c.0.s8 %v2912
    %v2914 = vlaneseq
    %v2915 = vshrl.u32 %v2914, 7
    %v2916 = vsub.s32 %v2913, %v2915
    %v2917 = vrot.slane %v2903, %v2916
    %v2919 = vunpack.c.l.s4 1966171168
    %v2920 = vunpack.c.0.s8 %v2919
    %v2921 = vlaneseq
    %v2922 = vshrl.u32 %v2921, 7
    %v2923 = vsub.s32 %v2920, %v2922
    %v2924 = vrot.slane %v1633, %v2923
    %v2925 = vcombine.high %v2924, %v2924
    %v2927 = vunpack.c.l.s4 1966171168
    %v2928 = vunpack.c.0.s8 %v2927
    %v2929 = vlaneseq
    %v2930 = vshrl.u32 %v2929, 7
    %v2931 = vsub.s32 %v2928, %v2930
    %v2932 = vrot.slane %v2924, %v2931
    %v2934 = vunpack.c.l.s4 1966171168
    %v2935 = vunpack.c.0.s8 %v2934
    %v2936 = vlaneseq
    %v2937 = vshrl.u32 %v2936, 7
    %v2938 = vsub.s32 %v2935, %v2937
    %v2939 = vrot.slane %v2925, %v2938
    %v2941 = vunpack.c.l.s4 1966171168
    %v2942 = vunpack.c.0.s8 %v2941
    %v2943 = vlaneseq
    %v2944 = vshrl.u32 %v2943, 7
    %v2945 = vsub.s32 %v2942, %v2944
    %v2946 = vrot.slane %v1974, %v2945
    %v2947 = vcombine.high %v2946, %v2946
    %v2949 = vunpack.c.l.s4 1966171168
    %v2950 = vunpack.c.0.s8 %v2949
    %v2951 = vlaneseq
    %v2952 = vshrl.u32 %v2951, 7
    %v2953 = vsub.s32 %v2950, %v2952
    %v2954 = vrot.slane %v2946, %v2953
    %v2956 = vunpack.c.l.s4 1966171168
    %v2957 = vunpack.c.0.s8 %v2956
    %v2958 = vlaneseq
    %v2959 = vshrl.u32 %v2958, 7
    %v2960 = vsub.s32 %v2957, %v2959
    %v2961 = vrot.slane %v2947, %v2960
    %v2963 = vunpack.c.l.s4 1966171168
    %v2964 = vunpack.c.0.s8 %v2963
    %v2965 = vlaneseq
    %v2966 = vshrl.u32 %v2965, 7
    %v2967 = vsub.s32 %v2964, %v2966
    %v2968 = vrot.slane %v2315, %v2967
    %v2969 = vcombine.high %v2968, %v2968
    %v2971 = vunpack.c.l.s4 1966171168
    %v2972 = vunpack.c.0.s8 %v2971
    %v2973 = vlaneseq
    %v2974 = vshrl.u32 %v2973, 7
    %v2975 = vsub.s32 %v2972, %v2974
    %v2976 = vrot.slane %v2968, %v2975
    %v2978 = vunpack.c.l.s4 1966171168
    %v2979 = vunpack.c.0.s8 %v2978
    %v2980 = vlaneseq
    %v2981 = vshrl.u32 %v2980, 7
    %v2982 = vsub.s32 %v2979, %v2981
    %v2983 = vrot.slane %v2969, %v2982
    %v2985 = vunpack.c.l.s4 1966171168
    %v2986 = vunpack.c.0.s8 %v2985
    %v2987 = vlaneseq
    %v2988 = vshrl.u32 %v2987, 7
    %v2989 = vsub.s32 %v2986, %v2988
    %v2990 = vrot.slane %v2656, %v2989
    %v2991 = vcombine.high %v2990, %v2990
    %v2993 = vunpack.c.l.s4 1966171168
    %v2994 = vunpack.c.0.s8 %v2993
    %v2995 = vlaneseq
    %v2996 = vshrl.u32 %v2995, 7
    %v2997 = vsub.s32 %v2994, %v2996
    %v2998 = vrot.slane %v2990, %v2997
    %v3000 = vunpack.c.l.s4 1966171168
    %v3001 = vunpack.c.0.s8 %v3000
    %v3002 = vlaneseq
    %v3003 = vshrl.u32 %v3002, 7
    %v3004 = vsub.s32 %v3001, %v3003
    %v3005 = vrot.slane %v2991, %v3004
    %v3007 = vunpack.c.l.s4 1966171168
    %v3008 = vunpack.c.0.s8 %v3007
    %v3009 = vlaneseq
    %v3010 = vshrl.u32 %v3009, 7
    %v3011 = vsub.s32 %v3008, %v3010
    %v3012 = vrot.slane %v2829, %v3011
    %v3013 = vcombine.high %v3012, %v3012
    %v3015 = vunpack.c.l.s4 1966171168
    %v3016 = vunpack.c.0.s8 %v3015
    %v3017 = vlaneseq
    %v3018 = vshrl.u32 %v3017, 7
    %v3019 = vsub.s32 %v3016, %v3018
    %v3020 = vrot.slane %v3012, %v3019
    %v3022 = vunpack.c.l.s4 1966171168
    %v3023 = vunpack.c.0.s8 %v3022
    %v3024 = vlaneseq
    %v3025 = vshrl.u32 %v3024, 7
    %v3026 = vsub.s32 %v3023, %v3025
    %v3027 = vrot.slane %v3013, %v3026
    %v3028 = vlaneseq
    %v3029 = vshrl.u32 %v3028, 7
    %v3030 = vsub.s32 0, %v3029
    %v3031 = vrot.slane %v2888, %v3030
    %v3032 = vlaneseq
    %v3033 = vshrl.u32 %v3032, 7
    %v3034 = vsub.s32 0, %v3033
    %v3035 = vrot.slane %v2895, %v3034
    %v3038 = vlaneseq
    %v3039 = vshrl.u32 %v3038, 7
    %v3040 = vsub.s32 0, %v3039
    %v3041 = vrot.slane %v2910, %v3040
    %v3042 = vlaneseq
    %v3043 = vshrl.u32 %v3042, 7
    %v3044 = vsub.s32 0, %v3043
    %v3045 = vrot.slane %v2917, %v3044
    %v3048 = vlaneseq
    %v3049 = vshrl.u32 %v3048, 7
    %v3050 = vsub.s32 0, %v3049
    %v3051 = vrot.slane %v2932, %v3050
    %v3052 = vlaneseq
    %v3053 = vshrl.u32 %v3052, 7
    %v3054 = vsub.s32 0, %v3053
    %v3055 = vrot.slane %v2939, %v3054
    %v3058 = vlaneseq
    %v3059 = vshrl.u32 %v3058, 7
    %v3060 = vsub.s32 0, %v3059
    %v3061 = vrot.slane %v2954, %v3060
    %v3062 = vlaneseq
    %v3063 = vshrl.u32 %v3062, 7
    %v3064 = vsub.s32 0, %v3063
    %v3065 = vrot.slane %v2961, %v3064
    %v3068 = vlaneseq
    %v3069 = vshrl.u32 %v3068, 7
    %v3070 = vsub.s32 0, %v3069
    %v3071 = vrot.slane %v2976, %v3070
    %v3072 = vlaneseq
    %v3073 = vshrl.u32 %v3072, 7
    %v3074 = vsub.s32 0, %v3073
    %v3075 = vrot.slane %v2983, %v3074
    %v3078 = vlaneseq
    %v3079 = vshrl.u32 %v3078, 7
    %v3080 = vsub.s32 0, %v3079
    %v3081 = vrot.slane %v2998, %v3080
    %v3082 = vlaneseq
    %v3083 = vshrl.u32 %v3082, 7
    %v3084 = vsub.s32 0, %v3083
    %v3085 = vrot.slane %v3005, %v3084
    %v3088 = vlaneseq
    %v3089 = vshrl.u32 %v3088, 7
    %v3090 = vsub.s32 0, %v3089
    %v3091 = vrot.slane %v3020, %v3090
    %v3092 = vlaneseq
    %v3093 = vshrl.u32 %v3092, 7
    %v3094 = vsub.s32 0, %v3093
    %v3095 = vrot.slane %v3027, %v3094
    %vm3098 = vcmask 1040384
    %v3099 = vsel %vm3098, %v2864, %v3031
    %v3100 = vsel %vm3098, %v2871, %v3035
    %vm3101 = vcmask 1041408
    %v3102 = vsel %vm3101, %v3099, %v3041
    %v3103 = vsel %vm3101, %v3100, %v3045
    %vm3104 = vcmask 1042432
    %v3105 = vsel %vm3104, %v3102, %v3051
    %v3106 = vsel %vm3104, %v3103, %v3055
    %vm3107 = vcmask 1043456
    %v3108 = vsel %vm3107, %v3105, %v3061
    %v3109 = vsel %vm3107, %v3106, %v3065
    %vm3110 = vcmask 1044480
    %v3111 = vsel %vm3110, %v3108, %v3071
    %v3112 = vsel %vm3110, %v3109, %v3075
    %vm3113 = vcmask 1045504
    %v3114 = vsel %vm3113, %v3111, %v3081
    %v3115 = vsel %vm3113, %v3112, %v3085
    %vm3116 = vcmask 1046528
    %v3117 = vsel %vm3116, %v3114, %v3091
    %v3118 = vsel %vm3116, %v3115, %v3095
    %v3119 = vld [vmem:[%s5] sm:$0xff]
    %v3120 = vld [vmem:[%s5 + $0x8] sm:$0xff]
    %v3121 = vld [vmem:[%s5 + $0x10] sm:$0xff]
    %v3122 = vld [vmem:[%s5 + $0x18] sm:$0xff]
    %v3123 = vld [vmem:[%s5 + $0x20] sm:$0xff]
    %v3124 = vld [vmem:[%s5 + $0x28] sm:$0xff]
    %v3125 = vld [vmem:[%s5 + $0x30] sm:$0xff]
    %v3126 = vld [vmem:[%s5 + $0x38] sm:$0xff]
    %3128 = vrot.lane.b32.xlu0 %v3117, 32
    %v3129 = vpop.permute.xlu0 %3128
    %v3130 = vsel %vm79, %v3129, 0
    %3132 = vmatprep.subr.mxu0 0.0
    %3133 = vmatpush1.msra.mxu0 %v3119
    %3134 = vmatprep.subr.mxu0 0.0
    %3135 = vmatpush1.msra.mxu0 %v3120
    %3136 = vmatprep.subr.mxu0 0.0
    %3137 = vmatpush1.msra.mxu0 %v3121
    %3138 = vmatprep.subr.mxu0 0.0
    %3139 = vmatpush1.msra.mxu0 %v3122
    %3140 = vmatprep.subr.mxu0 0.0
    %3141 = vmatpush1.msra.mxu0 0.0
    %3142 = vmatprep.subr.mxu0 0.0
    %3143 = vmatpush1.msra.mxu0 0.0
    %3144 = vmatprep.subr.mxu0 0.0
    %3145 = vmatpush1.msra.mxu0 0.0
    %3146 = vmatprep.subr.mxu0 0.0
    %3147 = vmatpush1.msra.mxu0 0.0
    %3148 = vmatprep.subr.mxu0 0.0
    %3149 = vmatpush1.msra.mxu0 0.0
    %3150 = vmatprep.subr.mxu0 0.0
    %3151 = vmatpush1.msra.mxu0 0.0
    %3152 = vmatprep.subr.mxu0 0.0
    %3153 = vmatpush1.msra.mxu0 0.0
    %3154 = vmatprep.subr.mxu0 0.0
    %3155 = vmatpush1.msra.mxu0 0.0
    %3156 = vmatprep.subr.mxu0 0.0
    %3157 = vmatpush1.msra.mxu0 0.0
    %3158 = vmatprep.subr.mxu0 0.0
    %3159 = vmatpush1.msra.mxu0 0.0
    %3160 = vmatprep.subr.mxu0 0.0
    %3161 = vmatpush1.msra.mxu0 0.0
    %3162 = vmatprep.subr.mxu0 0.0
    %3163 = vmatpush1.msra.mxu0 0.0
    %3164 = vmatprep.subr.mxu0 0.0
    %3165 = vmatpush1.msra.mxu0 0.0
    %3166 = vmatprep.subr.mxu0 0.0
    %3167 = vmatpush1.msra.mxu0 0.0
    %3168 = vmatprep.subr.mxu0 0.0
    %3169 = vmatpush1.msra.mxu0 0.0
    %3170 = vmatprep.subr.mxu0 0.0
    %3171 = vmatpush1.msra.mxu0 0.0
    %3172 = vmatprep.subr.mxu0 0.0
    %3173 = vmatpush1.msra.mxu0 0.0
    %3174 = vmatprep.subr.mxu0 0.0
    %3175 = vmatpush1.msra.mxu0 0.0
    %3176 = vmatprep.subr.mxu0 0.0
    %3177 = vmatpush1.msra.mxu0 0.0
    %3178 = vmatprep.subr.mxu0 0.0
    %3179 = vmatpush1.msra.mxu0 0.0
    %3180 = vmatprep.subr.mxu0 0.0
    %3181 = vmatpush1.msra.mxu0 0.0
    %3182 = vmatprep.subr.mxu0 0.0
    %3183 = vmatpush1.msra.mxu0 0.0
    %3184 = vmatprep.subr.mxu0 0.0
    %3185 = vmatpush1.msra.mxu0 0.0
    %3186 = vmatprep.subr.mxu0 0.0
    %3187 = vmatpush1.msra.mxu0 0.0
    %3188 = vmatprep.subr.mxu0 0.0
    %3189 = vmatpush1.msra.mxu0 0.0
    %3190 = vmatprep.subr.mxu0 0.0
    %3191 = vmatpush1.msra.mxu0 0.0
    %3192 = vmatprep.subr.mxu0 0.0
    %3193 = vmatpush1.msra.mxu0 0.0
    %3194 = vmatprep.subr.mxu0 0.0
    %3195 = vmatpush1.msra.mxu0 0.0
    %3196 = vmatprep.mubr.f32.mxu0 0.0
    %3197 = vmatmul.mubr.f32.gmra.mrb[0].mxu0 %v3130
    %v3198 = vpop.f32.mrb[0].mxu0
    %v3199 = vadd.f32 0.0, %v3198
    %v3200 = vpop.f32.mrb[0].mxu0
    %3201 = vdwg.mxu0
    %3203 = vrot.lane.b32.xlu0 %v3118, 32
    %v3204 = vpop.permute.xlu0 %3203
    %v3205 = vsel %vm79, %v3204, 0
    %3207 = vmatprep.subr.mxu0 0.0
    %3208 = vmatpush1.msra.mxu0 %v3123
    %3209 = vmatprep.subr.mxu0 0.0
    %3210 = vmatpush1.msra.mxu0 %v3124
    %3211 = vmatprep.subr.mxu0 0.0
    %3212 = vmatpush1.msra.mxu0 %v3125
    %3213 = vmatprep.subr.mxu0 0.0
    %3214 = vmatpush1.msra.mxu0 %v3126
    %3215 = vmatprep.subr.mxu0 0.0
    %3216 = vmatpush1.msra.mxu0 0.0
    %3217 = vmatprep.subr.mxu0 0.0
    %3218 = vmatpush1.msra.mxu0 0.0
    %3219 = vmatprep.subr.mxu0 0.0
    %3220 = vmatpush1.msra.mxu0 0.0
    %3221 = vmatprep.subr.mxu0 0.0
    %3222 = vmatpush1.msra.mxu0 0.0
    %3223 = vmatprep.subr.mxu0 0.0
    %3224 = vmatpush1.msra.mxu0 0.0
    %3225 = vmatprep.subr.mxu0 0.0
    %3226 = vmatpush1.msra.mxu0 0.0
    %3227 = vmatprep.subr.mxu0 0.0
    %3228 = vmatpush1.msra.mxu0 0.0
    %3229 = vmatprep.subr.mxu0 0.0
    %3230 = vmatpush1.msra.mxu0 0.0
    %3231 = vmatprep.subr.mxu0 0.0
    %3232 = vmatpush1.msra.mxu0 0.0
    %3233 = vmatprep.subr.mxu0 0.0
    %3234 = vmatpush1.msra.mxu0 0.0
    %3235 = vmatprep.subr.mxu0 0.0
    %3236 = vmatpush1.msra.mxu0 0.0
    %3237 = vmatprep.subr.mxu0 0.0
    %3238 = vmatpush1.msra.mxu0 0.0
    %3239 = vmatprep.subr.mxu0 0.0
    %3240 = vmatpush1.msra.mxu0 0.0
    %3241 = vmatprep.subr.mxu0 0.0
    %3242 = vmatpush1.msra.mxu0 0.0
    %3243 = vmatprep.subr.mxu0 0.0
    %3244 = vmatpush1.msra.mxu0 0.0
    %3245 = vmatprep.subr.mxu0 0.0
    %3246 = vmatpush1.msra.mxu0 0.0
    %3247 = vmatprep.subr.mxu0 0.0
    %3248 = vmatpush1.msra.mxu0 0.0
    %3249 = vmatprep.subr.mxu0 0.0
    %3250 = vmatpush1.msra.mxu0 0.0
    %3251 = vmatprep.subr.mxu0 0.0
    %3252 = vmatpush1.msra.mxu0 0.0
    %3253 = vmatprep.subr.mxu0 0.0
    %3254 = vmatpush1.msra.mxu0 0.0
    %3255 = vmatprep.subr.mxu0 0.0
    %3256 = vmatpush1.msra.mxu0 0.0
    %3257 = vmatprep.subr.mxu0 0.0
    %3258 = vmatpush1.msra.mxu0 0.0
    %3259 = vmatprep.subr.mxu0 0.0
    %3260 = vmatpush1.msra.mxu0 0.0
    %3261 = vmatprep.subr.mxu0 0.0
    %3262 = vmatpush1.msra.mxu0 0.0
    %3263 = vmatprep.subr.mxu0 0.0
    %3264 = vmatpush1.msra.mxu0 0.0
    %3265 = vmatprep.subr.mxu0 0.0
    %3266 = vmatpush1.msra.mxu0 0.0
    %3267 = vmatprep.subr.mxu0 0.0
    %3268 = vmatpush1.msra.mxu0 0.0
    %3269 = vmatprep.subr.mxu0 0.0
    %3270 = vmatpush1.msra.mxu0 0.0
    %3271 = vmatprep.mubr.f32.mxu0 0.0
    %3272 = vmatmul.mubr.f32.gmra.mrb[0].mxu0 %v3205
    %v3273 = vpop.f32.mrb[0].mxu0
    %v3274 = vadd.f32 0.0, %v3273
    %v3275 = vpop.f32.mrb[0].mxu0
    %3276 = vdwg.mxu0
    %v3277 = vld [vmem:[%s0] sm:$0x1]
    %v3278 = vld [vmem:[%s0 + $0x1] sm:$0x1]
    %v3279 = vlaneseq
    %v3280 = vshrl.u32 %v3279, 7
    %v3281 = vsub.s32 0, %v3280
    %v3282 = vrot.slane %v3277, %v3281
    %v3283 = vlaneseq
    %v3284 = vshrl.u32 %v3283, 7
    %v3285 = vsub.s32 0, %v3284
    %v3286 = vrot.slane %v3278, %v3285
    %3287 = vset.pattern.permute.xlu0 0
    %3288 = vperm.xlu0 %3287, %v3282
    %v3289 = vpop.permute.xlu0 %3288
    %3290 = vset.pattern.permute.xlu0 0
    %3291 = vperm.xlu0 %3290, %v3286
    %v3292 = vpop.permute.xlu0 %3291
    %vm3293 = vcmp.lt.s32.totalorder %v51, %v3289
    %vm3294 = vcmp.lt.s32.totalorder %v51, %v3292
    %v3295 = vsel %vm3293, %v3199, -1e+30
    %v3296 = vsel %vm3294, %v3274, -1e+30
    %vm3297 = vcmask 80896
    %v3298 = vsel %vm3297, %v3295, -inf
    %3299 = vmax.xlane.f32.xlu0 %v3298
    %v3300 = vpop.xlane.xlu0 %3299
    %v3301 = vsel %vm3297, %v3296, -inf
    %3302 = vmax.xlane.f32.xlu0 %v3301
    %v3303 = vpop.xlane.xlu0 %3302
    %v3304 = vsub.f32 %v3295, %v3300
    %v3305 = vsub.f32 %v3296, %v3303
    %v3306 = vmul.f32 %v3304, 1.442695
    %v3307 = vpow.pop %v3306
    %v3308 = vmul.f32 %v3305, 1.442695
    %v3309 = vpow.pop %v3308
    %v3310 = vsel %vm3297, %v3307, 0.0
    %3311 = vadd.xlane.f32.xlu0 %v3310
    %v3312 = vpop.xlane.xlu0 %3311
    %v3313 = vsel %vm3297, %v3309, 0.0
    %3314 = vadd.xlane.f32.xlu0 %v3313
    %v3315 = vpop.xlane.xlu0 %3314
    %v3316 = vrcp.pop %v3312
    %v3317 = vrcp.pop %v3315
    %v3318 = vmul.f32 %v3312, %v3316
    %v3319 = vmul.f32 %v3315, %v3317
    %v3320 = vsub.f32 2.0, %v3318
    %v3321 = vsub.f32 2.0, %v3319
    %v3322 = vmul.f32 %v3316, %v3320
    %v3323 = vmul.f32 %v3317, %v3321
    %v3324 = vmul.f32 %v3307, %v3322
    %v3325 = vmul.f32 %v3309, %v3323
    %v3326 = vld [vmem:[%s4] sm:$0xff]
    %v3327 = vld [vmem:[%s4 + $0x8] sm:$0x3]
    %v3328 = vld [vmem:[%s4 + $0x10] sm:$0xff]
    %v3329 = vld [vmem:[%s4 + $0x18] sm:$0x3]
    %v3331 = vsel %vm3297, %v3324, 0
    %v3334 = vsel %vm3101, %v3327, 0
    %3336 = vmatprep.subr.mxu0 0.0
    %3337 = vmatpush1.msra.mxu0 %v3326
    %3338 = vmatprep.subr.mxu0 0.0
    %3339 = vmatpush1.msra.mxu0 %v3334
    %3340 = vmatprep.subr.mxu0 0.0
    %3341 = vmatpush1.msra.mxu0 0.0
    %3342 = vmatprep.subr.mxu0 0.0
    %3343 = vmatpush1.msra.mxu0 0.0
    %3344 = vmatprep.subr.mxu0 0.0
    %3345 = vmatpush1.msra.mxu0 0.0
    %3346 = vmatprep.subr.mxu0 0.0
    %3347 = vmatpush1.msra.mxu0 0.0
    %3348 = vmatprep.subr.mxu0 0.0
    %3349 = vmatpush1.msra.mxu0 0.0
    %3350 = vmatprep.subr.mxu0 0.0
    %3351 = vmatpush1.msra.mxu0 0.0
    %3352 = vmatprep.subr.mxu0 0.0
    %3353 = vmatpush1.msra.mxu0 0.0
    %3354 = vmatprep.subr.mxu0 0.0
    %3355 = vmatpush1.msra.mxu0 0.0
    %3356 = vmatprep.subr.mxu0 0.0
    %3357 = vmatpush1.msra.mxu0 0.0
    %3358 = vmatprep.subr.mxu0 0.0
    %3359 = vmatpush1.msra.mxu0 0.0
    %3360 = vmatprep.subr.mxu0 0.0
    %3361 = vmatpush1.msra.mxu0 0.0
    %3362 = vmatprep.subr.mxu0 0.0
    %3363 = vmatpush1.msra.mxu0 0.0
    %3364 = vmatprep.subr.mxu0 0.0
    %3365 = vmatpush1.msra.mxu0 0.0
    %3366 = vmatprep.subr.mxu0 0.0
    %3367 = vmatpush1.msra.mxu0 0.0
    %3368 = vmatprep.subr.mxu0 0.0
    %3369 = vmatpush1.msra.mxu0 0.0
    %3370 = vmatprep.subr.mxu0 0.0
    %3371 = vmatpush1.msra.mxu0 0.0
    %3372 = vmatprep.subr.mxu0 0.0
    %3373 = vmatpush1.msra.mxu0 0.0
    %3374 = vmatprep.subr.mxu0 0.0
    %3375 = vmatpush1.msra.mxu0 0.0
    %3376 = vmatprep.subr.mxu0 0.0
    %3377 = vmatpush1.msra.mxu0 0.0
    %3378 = vmatprep.subr.mxu0 0.0
    %3379 = vmatpush1.msra.mxu0 0.0
    %3380 = vmatprep.subr.mxu0 0.0
    %3381 = vmatpush1.msra.mxu0 0.0
    %3382 = vmatprep.subr.mxu0 0.0
    %3383 = vmatpush1.msra.mxu0 0.0
    %3384 = vmatprep.subr.mxu0 0.0
    %3385 = vmatpush1.msra.mxu0 0.0
    %3386 = vmatprep.subr.mxu0 0.0
    %3387 = vmatpush1.msra.mxu0 0.0
    %3388 = vmatprep.subr.mxu0 0.0
    %3389 = vmatpush1.msra.mxu0 0.0
    %3390 = vmatprep.subr.mxu0 0.0
    %3391 = vmatpush1.msra.mxu0 0.0
    %3392 = vmatprep.subr.mxu0 0.0
    %3393 = vmatpush1.msra.mxu0 0.0
    %3394 = vmatprep.subr.mxu0 0.0
    %3395 = vmatpush1.msra.mxu0 0.0
    %3396 = vmatprep.subr.mxu0 0.0
    %3397 = vmatpush1.msra.mxu0 0.0
    %3398 = vmatprep.subr.mxu0 0.0
    %3399 = vmatpush1.msra.mxu0 0.0
    %3400 = vmatprep.mubr.f32.mxu0 0.0
    %3401 = vmatmul.mubr.f32.gmra.mrb[0].mxu0 %v3331
    %v3402 = vpop.f32.mrb[0].mxu0
    %v3403 = vadd.f32 0.0, %v3402
    %v3404 = vpop.f32.mrb[0].mxu0
    %3405 = vdwg.mxu0
    %v3407 = vsel %vm3297, %v3325, 0
    %v3410 = vsel %vm3101, %v3329, 0
    %3412 = vmatprep.subr.mxu0 0.0
    %3413 = vmatpush1.msra.mxu0 %v3328
    %3414 = vmatprep.subr.mxu0 0.0
    %3415 = vmatpush1.msra.mxu0 %v3410
    %3416 = vmatprep.subr.mxu0 0.0
    %3417 = vmatpush1.msra.mxu0 0.0
    %3418 = vmatprep.subr.mxu0 0.0
    %3419 = vmatpush1.msra.mxu0 0.0
    %3420 = vmatprep.subr.mxu0 0.0
    %3421 = vmatpush1.msra.mxu0 0.0
    %3422 = vmatprep.subr.mxu0 0.0
    %3423 = vmatpush1.msra.mxu0 0.0
    %3424 = vmatprep.subr.mxu0 0.0
    %3425 = vmatpush1.msra.mxu0 0.0
    %3426 = vmatprep.subr.mxu0 0.0
    %3427 = vmatpush1.msra.mxu0 0.0
    %3428 = vmatprep.subr.mxu0 0.0
    %3429 = vmatpush1.msra.mxu0 0.0
    %3430 = vmatprep.subr.mxu0 0.0
    %3431 = vmatpush1.msra.mxu0 0.0
    %3432 = vmatprep.subr.mxu0 0.0
    %3433 = vmatpush1.msra.mxu0 0.0
    %3434 = vmatprep.subr.mxu0 0.0
    %3435 = vmatpush1.msra.mxu0 0.0
    %3436 = vmatprep.subr.mxu0 0.0
    %3437 = vmatpush1.msra.mxu0 0.0
    %3438 = vmatprep.subr.mxu0 0.0
    %3439 = vmatpush1.msra.mxu0 0.0
    %3440 = vmatprep.subr.mxu0 0.0
    %3441 = vmatpush1.msra.mxu0 0.0
    %3442 = vmatprep.subr.mxu0 0.0
    %3443 = vmatpush1.msra.mxu0 0.0
    %3444 = vmatprep.subr.mxu0 0.0
    %3445 = vmatpush1.msra.mxu0 0.0
    %3446 = vmatprep.subr.mxu0 0.0
    %3447 = vmatpush1.msra.mxu0 0.0
    %3448 = vmatprep.subr.mxu0 0.0
    %3449 = vmatpush1.msra.mxu0 0.0
    %3450 = vmatprep.subr.mxu0 0.0
    %3451 = vmatpush1.msra.mxu0 0.0
    %3452 = vmatprep.subr.mxu0 0.0
    %3453 = vmatpush1.msra.mxu0 0.0
    %3454 = vmatprep.subr.mxu0 0.0
    %3455 = vmatpush1.msra.mxu0 0.0
    %3456 = vmatprep.subr.mxu0 0.0
    %3457 = vmatpush1.msra.mxu0 0.0
    %3458 = vmatprep.subr.mxu0 0.0
    %3459 = vmatpush1.msra.mxu0 0.0
    %3460 = vmatprep.subr.mxu0 0.0
    %3461 = vmatpush1.msra.mxu0 0.0
    %3462 = vmatprep.subr.mxu0 0.0
    %3463 = vmatpush1.msra.mxu0 0.0
    %3464 = vmatprep.subr.mxu0 0.0
    %3465 = vmatpush1.msra.mxu0 0.0
    %3466 = vmatprep.subr.mxu0 0.0
    %3467 = vmatpush1.msra.mxu0 0.0
    %3468 = vmatprep.subr.mxu0 0.0
    %3469 = vmatpush1.msra.mxu0 0.0
    %3470 = vmatprep.subr.mxu0 0.0
    %3471 = vmatpush1.msra.mxu0 0.0
    %3472 = vmatprep.subr.mxu0 0.0
    %3473 = vmatpush1.msra.mxu0 0.0
    %3474 = vmatprep.subr.mxu0 0.0
    %3475 = vmatpush1.msra.mxu0 0.0
    %3476 = vmatprep.mubr.f32.mxu0 0.0
    %3477 = vmatmul.mubr.f32.gmra.mrb[0].mxu0 %v3407
    %v3478 = vpop.f32.mrb[0].mxu0
    %v3479 = vadd.f32 0.0, %v3478
    %v3480 = vpop.f32.mrb[0].mxu0
    %3481 = vdwg.mxu0
    %3482 = vrot.lane.b32.xlu0 %v3117, 64
    %v3483 = vpop.permute.xlu0 %3482
    %3484 = vrot.lane.b32.xlu0 %v3118, 64
    %v3485 = vpop.permute.xlu0 %3484
    %v3488 = vsel %vm79, %v3403, %v3483
    %v3489 = vsel %vm79, %v3479, %v3485
    %v3490 = vld [vmem:[%s12] sm:$0xff]
    %v3491 = vld [vmem:[%s12 + $0x8] sm:$0xff]
    %v3492 = vld [vmem:[%s12 + $0x10] sm:$0xff]
    %v3493 = vld [vmem:[%s12 + $0x18] sm:$0xff]
    %v3494 = vld [vmem:[%s12 + $0x20] sm:$0xff]
    %v3495 = vld [vmem:[%s12 + $0x28] sm:$0xff]
    %v3496 = vld [vmem:[%s12 + $0x30] sm:$0xff]
    %v3497 = vld [vmem:[%s12 + $0x38] sm:$0xff]
    %vm3498 = vcmask 523264
    %v3500 = vsel %vm3498, %v3488, 0
    %v3503 = vsel %vm3498, %v3489, 0
    %3505 = vmatprep.subr.mxu0 0.0
    %3506 = vmatpush1.msra.mxu0 %v3490
    %3507 = vmatprep.subr.mxu0 0.0
    %3508 = vmatpush1.msra.mxu0 %v3491
    %3509 = vmatprep.subr.mxu0 0.0
    %3510 = vmatpush1.msra.mxu0 %v3492
    %3511 = vmatprep.subr.mxu0 0.0
    %3512 = vmatpush1.msra.mxu0 %v3493
    %3513 = vmatprep.subr.mxu0 0.0
    %3514 = vmatpush1.msra.mxu0 %v3494
    %3515 = vmatprep.subr.mxu0 0.0
    %3516 = vmatpush1.msra.mxu0 %v3495
    %3517 = vmatprep.subr.mxu0 0.0
    %3518 = vmatpush1.msra.mxu0 %v3496
    %3519 = vmatprep.subr.mxu0 0.0
    %3520 = vmatpush1.msra.mxu0 %v3497
    %3521 = vmatprep.subr.mxu0 0.0
    %3522 = vmatpush1.msra.mxu0 0.0
    %3523 = vmatprep.subr.mxu0 0.0
    %3524 = vmatpush1.msra.mxu0 0.0
    %3525 = vmatprep.subr.mxu0 0.0
    %3526 = vmatpush1.msra.mxu0 0.0
    %3527 = vmatprep.subr.mxu0 0.0
    %3528 = vmatpush1.msra.mxu0 0.0
    %3529 = vmatprep.subr.mxu0 0.0
    %3530 = vmatpush1.msra.mxu0 0.0
    %3531 = vmatprep.subr.mxu0 0.0
    %3532 = vmatpush1.msra.mxu0 0.0
    %3533 = vmatprep.subr.mxu0 0.0
    %3534 = vmatpush1.msra.mxu0 0.0
    %3535 = vmatprep.subr.mxu0 0.0
    %3536 = vmatpush1.msra.mxu0 0.0
    %3537 = vmatprep.subr.mxu0 0.0
    %3538 = vmatpush1.msra.mxu0 0.0
    %3539 = vmatprep.subr.mxu0 0.0
    %3540 = vmatpush1.msra.mxu0 0.0
    %3541 = vmatprep.subr.mxu0 0.0
    %3542 = vmatpush1.msra.mxu0 0.0
    %3543 = vmatprep.subr.mxu0 0.0
    %3544 = vmatpush1.msra.mxu0 0.0
    %3545 = vmatprep.subr.mxu0 0.0
    %3546 = vmatpush1.msra.mxu0 0.0
    %3547 = vmatprep.subr.mxu0 0.0
    %3548 = vmatpush1.msra.mxu0 0.0
    %3549 = vmatprep.subr.mxu0 0.0
    %3550 = vmatpush1.msra.mxu0 0.0
    %3551 = vmatprep.subr.mxu0 0.0
    %3552 = vmatpush1.msra.mxu0 0.0
    %3553 = vmatprep.subr.mxu0 0.0
    %3554 = vmatpush1.msra.mxu0 0.0
    %3555 = vmatprep.subr.mxu0 0.0
    %3556 = vmatpush1.msra.mxu0 0.0
    %3557 = vmatprep.subr.mxu0 0.0
    %3558 = vmatpush1.msra.mxu0 0.0
    %3559 = vmatprep.subr.mxu0 0.0
    %3560 = vmatpush1.msra.mxu0 0.0
    %3561 = vmatprep.subr.mxu0 0.0
    %3562 = vmatpush1.msra.mxu0 0.0
    %3563 = vmatprep.subr.mxu0 0.0
    %3564 = vmatpush1.msra.mxu0 0.0
    %3565 = vmatprep.subr.mxu0 0.0
    %3566 = vmatpush1.msra.mxu0 0.0
    %3567 = vmatprep.subr.mxu0 0.0
    %3568 = vmatpush1.msra.mxu0 0.0
    %3569 = vmatprep.mubr.f32.mxu0 0.0
    %3570 = vmatmul.mubr.f32.gmra.mrb[0].mxu0 %v3500
    %v3571 = vpop.f32.mrb[0].mxu0
    %v3572 = vadd.f32 0.0, %v3571
    %v3573 = vpop.f32.mrb[0].mxu0
    %3574 = vmatprep.mubr.f32.mxu0 0.0
    %3575 = vmatmul.mubr.f32.gmra.mrb[0].mxu0 %v3503
    %v3576 = vpop.f32.mrb[0].mxu0
    %v3577 = vadd.f32 0.0, %v3576
    %v3578 = vpop.f32.mrb[0].mxu0
    %3579 = vdwg.mxu0
    %v3580 = vtanh.pop %v3572
    %v3581 = vtanh.pop %v3577
    %3582 = vst.msk [vmem:[%s13] sm:$0xff] %vm79, %v3580
    %3583 = vst.msk [vmem:[%s13 + $0x8] sm:$0xff] %vm79, %v3581
    %3584 = vst.msk [vmem:[%s14] sm:$0xff] %vm3297, %v3324
    %3585 = vst.msk [vmem:[%s14 + $0x8] sm:$0xff] %vm3297, %v3325
    // Predicated region
    $region54: #{rnn_decoder_forward.1} parent=1 // pred_check
      _
    $region55: #{rnn_decoder_forward.1} parent=1 // pred_check_branch
      %3587 = sbr.rel (0) target = $region57
    $region56: #{rnn_decoder_forward.1} parent=1 // pred_region
      _
    $region57: #{rnn_decoder_forward.1} parent=1 // pred_fallthru
      _
    // Predicated region
    $region58: #{rnn_decoder_forward.1} parent=1 // pred_check
      _
    $region59: #{rnn_decoder_forward.1} parent=1 // pred_check_branch
      %3589 = sbr.rel (0) target = $region61
    $region60: #{rnn_decoder_forward.1} parent=1 // pred_region
      _
    $region61: #{rnn_decoder_forward.1} parent=1 // pred_fallthru
      _
    // Predicated region
    $region62: #{rnn_decoder_forward.1} parent=1 // pred_check
      _
    $region63: #{rnn_decoder_forward.1} parent=1 // pred_check_branch
      %3591 = sbr.rel (0) target = $region65
    $region64: #{rnn_decoder_forward.1} parent=1 // pred_region
      %s3593 = ssub.s32 64, 64
      %3594 = vsyncadd [#allocation3], %s3593
      %s3595 = sshll.u32 [#allocation2], 4
      %s3596 = int_to_ptr.vmem [resolvable:$true] %s3595
      %3601 = dma.vmem_to_hbm [thread:$0]  %s3596, 64, %s15, [#allocation3], 32, 32, 2
    $region65: #{rnn_decoder_forward.1} parent=1 // pred_fallthru
      _
    // Predicated region
    $region66: #{rnn_decoder_forward.1} parent=1 // pred_check
      _
    $region67: #{rnn_decoder_forward.1} parent=1 // pred_check_branch
      %3603 = sbr.rel (0) target = $region69
    $region68: #{rnn_decoder_forward.1} parent=1 // pred_region
      %s3605 = ssub.s32 64, 64
      %3606 = vsyncadd [#allocation5], %s3605
      %s3607 = sshll.u32 [#allocation4], 4
      %s3608 = int_to_ptr.vmem [resolvable:$true] %s3607
      %3613 = dma.vmem_to_hbm [thread:$0]  %s3608, 64, %s16, [#allocation5], 32, 32, 2
    $region69: #{rnn_decoder_forward.1} parent=1 // pred_fallthru
      _
    // Predicated region
    $region70: #{rnn_decoder_forward.1} parent=1 // pred_check
      _
    $region71: #{rnn_decoder_forward.1} parent=1 // pred_check_branch
      %3615 = sbr.rel (0) target = $region73
    $region72: #{rnn_decoder_forward.1} parent=1 // pred_region
      _
    $region73: #{rnn_decoder_forward.1} parent=1 // pred_fallthru
      _
    // Predicated region
    $region74: #{rnn_decoder_forward.1} parent=1 // pred_check
      _
    $region75: #{rnn_decoder_forward.1} parent=1 // pred_check_branch
      %3617 = sbr.rel (0) target = $region77
    $region76: #{rnn_decoder_forward.1} parent=1 // pred_region
      _
    $region77: #{rnn_decoder_forward.1} parent=1 // pred_fallthru
      _
    // Predicated region
    $region78: #{rnn_decoder_forward.1} parent=1 // pred_check
      _
    $region79: #{rnn_decoder_forward.1} parent=1 // pred_check_branch
      %3619 = sbr.rel (0) target = $region81
    $region80: #{rnn_decoder_forward.1} parent=1 // pred_region
      %3620 = dma.done [#allocation3], 64
    $region81: #{rnn_decoder_forward.1} parent=1 // pred_fallthru
      _
    // Predicated region
    $region82: #{rnn_decoder_forward.1} parent=1 // pred_check
      _
    $region83: #{rnn_decoder_forward.1} parent=1 // pred_check_branch
      %3622 = sbr.rel (0) target = $region85
    $region84: #{rnn_decoder_forward.1} parent=1 // pred_region
      %3623 = dma.done [#allocation5], 64
    $region85: #{rnn_decoder_forward.1} parent=1 // pred_fallthru
      _
    %3624 = vsyncpa [#allocation3], 1
    %3625 = vsyncpa [#allocation5], 1

</llo_original>
